<compile_context>
chip_gen: v6e
topology: v6e:2x2x1
jax: 0.10.0
libtpu: 0.0.40
codegen_flags: <defaults>
</compile_context>

<pallas_src>
import functools

import jax
import jax.numpy as jnp
from jax.experimental import pallas as pl
from jax.experimental.pallas import tpu as pltpu

_Buffered = getattr(pl, "Buffered", None)


# --------------------------------------------------------------------------- kernel
def _bottleneck_kernel(x_ref, top_ref, bot_ref,
                       w1_ref, b1_ref, w2_ref, b2_ref, w3_ref, b3_ref,
                       o_ref):
    # x_ref  : (Nb, tH, W, Cin)   current spatial tile (Nb batch rows folded into M)
    # top_ref: (Nb, 1,  W, Cin)   row just above each tile (zeros at image border)
    # bot_ref: (Nb, 1,  W, Cin)   row just below each tile (zeros at image border)
    Nb, tH, W, Cin = x_ref.shape
    P = w1_ref.shape[1]
    Cout = o_ref.shape[-1]
    Hh = tH + 2
    rows = Nb * tH * W
    bf16 = jnp.bfloat16

    # ---- conv1 (1x1, BN scale folded into w1) + bias + relu -----------------
    # Applied separately to the tile and the halo rows; concatenated at the P-wide output
    # instead of concatenating the Cin-wide inputs (4x smaller copy).
    w1 = w1_ref[...]
    b1 = b1_ref[...]

    def conv1(v):                                     # (..., Cin) -> f32 (M, P)
        return jnp.dot(v.reshape(-1, Cin).astype(bf16), w1,
                       preferred_element_type=jnp.float32)

    t1_mid = jnp.maximum(conv1(x_ref[...]) + b1, 0.0).astype(bf16).reshape(Nb, tH, W, P)
    t1_top = jnp.maximum(conv1(top_ref[...]) + b1, 0.0).astype(bf16).reshape(Nb, 1, W, P)
    t1_bot = jnp.maximum(conv1(bot_ref[...]) + b1, 0.0).astype(bf16).reshape(Nb, 1, W, P)
    t1 = jnp.concatenate([t1_top, t1_mid, t1_bot], axis=1)        # (Nb, Hh, W, P)

    # ---- conv2 (3x3, pad=1): zero-pad W, three accumulated row-slabs (K = 3P) ----
    zcol = jnp.zeros((Nb, Hh, 1, P), bf16)
    t1p = jnp.concatenate([zcol, t1, zcol], axis=2)               # (Nb, Hh, W+2, P)
    t2 = None
    for dh in range(3):                                           # static unroll
        slab = jnp.concatenate(
            [t1p[:, dh:dh + tH, dw:dw + W, :] for dw in range(3)],
            axis=-1).reshape(rows, 3 * P)                         # (rows, 3P)
        part = jnp.dot(slab, w2_ref[dh], preferred_element_type=jnp.float32)
        t2 = part if t2 is None else t2 + part
    t2 = jnp.maximum(t2 + b2_ref[...], 0.0).astype(bf16)          # (rows, P)

    # ---- conv3 (1x1) + bias + residual add + relu ---------------------------
    t3 = jnp.dot(t2, w3_ref[...], preferred_element_type=jnp.float32)   # (rows, Cout)
    t3 = t3 + b3_ref[...]
    # residual re-read from the already-resident input block (not kept live in f32).
    t3 = t3 + x_ref[...].reshape(rows, Cin).astype(jnp.float32)
    t3 = jnp.maximum(t3, 0.0)
    o_ref[...] = t3.reshape(Nb, tH, W, Cout).astype(o_ref.dtype)


# ------------------------------------------------------------------- param folding
def prepare_params(params):
    """Fold BN scales into conv weights, cast to bf16, pre-reshape w2 into 3 row-slab mats."""
    w1, s1, b1, w2, s2, b2, w3, s3, b3 = params
    P = w2.shape[2]
    w1f = (w1 * s1).astype(jnp.bfloat16)                               # (Cin, P)
    w2f = (w2 * s2.reshape(1, 1, 1, -1)).reshape(3, 3 * P, P)          # rows = (dw, cin) per dh
    w2f = w2f.astype(jnp.bfloat16)
    w3f = (w3 * s3).astype(jnp.bfloat16)                               # (P, 4P)
    return (w1f, b1.astype(jnp.float32), w2f, b2.astype(jnp.float32),
            w3f, b3.astype(jnp.float32))


# ----------------------------------------------------------------- VMEM model / tiling
def _vmem_budget():
    """Returns (vmem_limit_bytes for CompilerParams, working-set budget for the picker)."""
    try:
        cap = pltpu.get_tpu_info().vmem_capacity_bytes
    except Exception:
        cap = 0
    if cap >= (100 << 20):           # v5e / v6e: 128 MiB physical VMEM
        return 96 << 20, 40 << 20
    return 48 << 20, 20 << 20        # v7x (64 MiB physical) or unknown: be conservative


def _footprint_bytes(Nb, tH, W, Cin, P, Cout, x_itemsize):
    """Conservative per-grid-step VMEM footprint model (bytes)."""
    rows = Nb * tH * W
    Hh = tH + 2
    # double-buffered x / halo / out blocks
    blocks = 2 * Nb * (tH * W * Cin + 2 * W * Cin + tH * W * Cout) * x_itemsize
    # weights single-buffered (pl.Buffered(1)); biases f32
    weights = (Cin * P + 9 * P * P + P * Cout) * 2 + (2 * P + Cout) * 4
    inter = (Nb * Hh * W * P * 2            # t1 (bf16)
             + Nb * Hh * (W + 2) * P * 2    # t1p (bf16)
             + rows * 3 * P * 2             # one row-slab (bf16)
             + rows * P * 4                 # conv2 accumulator (f32)
             + rows * P * 2                 # t2 (bf16)
             + rows * Cout * 4              # t3 (f32)
             + rows * Cin * 4)              # residual re-read (f32)
    return blocks + weights + int(1.25 * inter)


def _pick_tiles(N, H, W, Cin, P, Cout, x_itemsize, budget, *, tile_h=None, tile_n=None):
    """Pick (Nb, tH): batch block and H tile.  tH is a real divisor of H, the footprint is
    checked against the generation-aware budget, and batch rows are folded into the matmul
    M dimension when the per-step M would otherwise starve the MXU."""
    fits = lambda nb, t: _footprint_bytes(nb, t, W, Cin, P, Cout, x_itemsize) <= budget
    divs = [d for d in range(1, H + 1) if H % d == 0]

    if tile_h is not None and H % tile_h == 0 and fits(1, tile_h):
        tH = tile_h
    else:
        # prefer >=2 total grid steps (pipeline overlap / v7x two-TC sharding)
        cand = [d for d in divs if fits(1, d) and (N >= 2 or H // d >= 2)]
        if tile_h is not None:
            cand = [d for d in cand if d <= tile_h] or cand
        if not cand:
            cand = [d for d in divs if fits(1, d)] or [1]
        tH = max(cand)

    nb_divs = [d for d in range(1, N + 1) if N % d == 0]
    if tile_n is not None and N % tile_n == 0 and fits(tile_n, tH):
        return tile_n, tH
    Nb = 1
    for nb in nb_divs[1:]:
        if Nb * tH * W >= 256:                 # M already fills the MXU rows
            break
        if not fits(nb, tH):
            break
        if (N // nb) * (H // tH) < 2 and (N // Nb) * (H // tH) >= 2:
            break                              # don't collapse the grid to one step
        Nb = nb
    return Nb, tH


# ----------------------------------------------------------------------- entry points
def bottleneck_pallas_nhwc(x, folded_params, *, tile_h=None, tile_n=None):
    """x: (N, H, W, Cin) NHWC.  Preferred (transpose-free) entry point.
    Pass a bf16 x for the bf16 activation-I/O path (output follows x.dtype)."""
    w1f, b1, w2f, b2, w3f, b3 = folded_params
    N, H, W, Cin = x.shape
    P = w1f.shape[1]
    Cout = w3f.shape[1]
    assert Cout == Cin, "downsample=None requires inplanes == 4 * planes"
    # TODO(synk): W not a multiple of 8 makes the in-kernel reshapes cross (8,128) tile
    #             boundaries (relayout copies); pad W in the caller for W=7/14/28 stages.

    vmem_limit, budget = _vmem_budget()
    Nb, tH = _pick_tiles(N, H, W, Cin, P, Cout, x.dtype.itemsize, budget,
                         tile_h=tile_h, tile_n=tile_n)
    nH, nB = H // tH, N // Nb

    # Halo rows for the 3x3 conv: row i*tH-1 (top) and row (i+1)*tH (bottom) per tile,
    # zeros at the image border.  Supplied as separate arrays so every operand keeps a
    # plain Blocked BlockSpec and stays auto-pipelined.
    zero_row = jnp.zeros((N, 1, W, Cin), x.dtype)
    if nH > 1:
        top_rows = x[:, tH - 1:H - 1:tH][:, :nH - 1]
        bot_rows = x[:, tH::tH][:, :nH - 1]
        halo_top = jnp.concatenate([zero_row, top_rows], axis=1)        # (N, nH, W, Cin)
        halo_bot = jnp.concatenate([bot_rows, zero_row], axis=1)        # (N, nH, W, Cin)
    else:
        halo_top = zero_row
        halo_bot = zero_row

    rows = Nb * tH * W
    steps = nB * nH
    weight_bytes = int((w1f.size + w2f.size + w3f.size) * 2
                       + (b1.size + b2.size + b3.size) * 4)
    cost = pl.CostEstimate(
        flops=2 * steps * rows * (Cin * P + 9 * P * P + P * Cout),
        transcendentals=0,
        bytes_accessed=steps * (rows * (Cin + Cout) + 2 * Nb * W * Cin) * x.dtype.itemsize
                       + weight_bytes)

    def _call(single_buffer_weights):
        def wspec(a):
            idx = lambda b, i: (0,) * a.ndim
            if single_buffer_weights and _Buffered is not None:
                # constant-index operands: single buffer, halves their VMEM footprint
                return pl.BlockSpec(a.shape, idx, pipeline_mode=_Buffered(1))
            return pl.BlockSpec(a.shape, idx)

        return pl.pallas_call(
            _bottleneck_kernel,
            out_shape=jax.ShapeDtypeStruct((N, H, W, Cout), x.dtype),
            grid_spec=pltpu.PrefetchScalarGridSpec(
                num_scalar_prefetch=0,
                grid=(nB, nH),
                in_specs=[
                    pl.BlockSpec((Nb, tH, W, Cin), lambda b, i: (b, i, 0, 0)),  # x tile
                    pl.BlockSpec((Nb, 1, W, Cin), lambda b, i: (b, i, 0, 0)),   # top halo
                    pl.BlockSpec((Nb, 1, W, Cin), lambda b, i: (b, i, 0, 0)),   # bottom halo
                    wspec(w1f), wspec(b1),
                    wspec(w2f), wspec(b2),
                    wspec(w3f), wspec(b3),
                ],
                out_specs=pl.BlockSpec((Nb, tH, W, Cout), lambda b, i: (b, i, 0, 0)),
            ),
            compiler_params=pltpu.CompilerParams(
                dimension_semantics=("parallel", "parallel"),
                vmem_limit_bytes=vmem_limit),
            cost_estimate=cost,
        )(x, halo_top, halo_bot, w1f, b1, w2f, b2, w3f, b3)

    try:
        return _call(True)
    except Exception:
        # Fallback: identical kernel, default (double-buffered) weight specs, in case this
        # JAX build rejects pipeline_mode=Buffered(1).
        return _call(False)


def bottleneck_pallas(x_nchw, params, *, tile_h=None, tile_n=None):
    """PyTorch-compatible interface: x (N, Cin, H, W) -> (N, Cin, H, W).
    The two NCHW<->NHWC transposes here are two extra full HBM passes; NHWC models should
    call bottleneck_pallas_nhwc directly (it is the mem-bound-friendly entry point)."""
    folded = prepare_params(params)
    x = jnp.transpose(x_nchw, (0, 2, 3, 1))
    out = bottleneck_pallas_nhwc(x, folded, tile_h=tile_h, tile_n=tile_n)
    return jnp.transpose(out, (0, 3, 1, 2))


# ----------------------------------------------------------------- params & reference
def _fold_bn(gamma, beta, mean, var, eps=1e-5):
    scale = gamma / jnp.sqrt(var + eps)
    bias = beta - mean * scale
    return scale[None, :], bias[None, :]           # (1, C)


def make_params(key, inplanes, planes):
    """Deterministic synthetic weights. 1x1 convs stored as (Cin, Cout); 3x3 conv as HWIO."""
    ks = jax.random.split(key, 15)
    f32 = jnp.float32
    w1 = 0.2 * jax.random.normal(ks[0], (inplanes, planes), f32)
    w2 = 0.2 * jax.random.normal(ks[1], (3, 3, planes, planes), f32)
    w3 = 0.2 * jax.random.normal(ks[2], (planes, planes * 4), f32)

    def bn_params(k0, k1, k2, k3, c):
        gamma = 1.0 + 0.1 * jax.random.normal(k0, (c,), f32)
        beta = 0.1 * jax.random.normal(k1, (c,), f32)
        mean = 0.1 * jax.random.normal(k2, (c,), f32)
        var = jnp.abs(1.0 + 0.1 * jax.random.normal(k3, (c,), f32))
        return _fold_bn(gamma, beta, mean, var)

    s1, b1 = bn_params(ks[3], ks[4], ks[5], ks[6], planes)
    s2, b2 = bn_params(ks[7], ks[8], ks[9], ks[10], planes)
    s3, b3 = bn_params(ks[11], ks[12], ks[13], ks[14], planes * 4)
    return (w1, s1, b1, w2, s2, b2, w3, s3, b3)


def bottleneck_reference(x_nchw, params):
    """Plain-JAX f32 reference (same eval-mode BN folding) for verification."""
    w1, s1, b1, w2, s2, b2, w3, s3, b3 = params
    x = jnp.transpose(x_nchw, (0, 2, 3, 1))
    dn = ("NHWC", "HWIO", "NHWC")
    conv = functools.partial(jax.lax.conv_general_dilated,
                             window_strides=(1, 1), dimension_numbers=dn)
    t = conv(x, w1[None, None], padding="VALID")
    t = jnp.maximum(t * s1[0] + b1[0], 0.0)
    t = conv(t, w2, padding="SAME")
    t = jnp.maximum(t * s2[0] + b2[0], 0.0)
    t = conv(t, w3[None, None], padding="VALID")
    t = t * s3[0] + b3[0]
    t = jnp.maximum(t + x, 0.0)
    return jnp.transpose(t, (0, 3, 1, 2))


if __name__ == "__main__":
    key = jax.random.PRNGKey(0)
    k_x, k_p = jax.random.split(key)

    planes = 8
    inplanes = planes * 4          # downsample=None => residual add requires this
    N, H, W = 2, 16, 16

    x = jax.random.normal(k_x, (N, inplanes, H, W), jnp.float32)   # NCHW, like PyTorch
    params = make_params(k_p, inplanes, planes)

    out = bottleneck_pallas(x, params)
    out = jax.block_until_ready(out)

    ref = bottleneck_reference(x, params)
    assert out.shape == (N, planes * 4, H, W)
    # bf16 MXU inputs with f32 accumulation => slightly looser tolerance vs the f32 reference.
    assert jnp.allclose(out, ref, rtol=2e-2, atol=2e-2), "mismatch vs JAX reference"

    print("KERNEL_OK")
</pallas_src>

<mosaic_0001>
module attributes {stable_mosaic.version = 11 : i64} {
  func.func @_bottleneck_kernel(%arg0: i32, %arg1: i32, %arg2: memref<1x16x16x32xf32, #tpu.memory_space<vmem>>, %arg3: memref<1x1x16x32xf32, #tpu.memory_space<vmem>>, %arg4: memref<1x1x16x32xf32, #tpu.memory_space<vmem>>, %arg5: memref<32x8xbf16, #tpu.memory_space<vmem>>, %arg6: memref<1x8xf32, #tpu.memory_space<vmem>>, %arg7: memref<3x24x8xbf16, #tpu.memory_space<vmem>>, %arg8: memref<1x8xf32, #tpu.memory_space<vmem>>, %arg9: memref<8x32xbf16, #tpu.memory_space<vmem>>, %arg10: memref<1x32xf32, #tpu.memory_space<vmem>>, %arg11: memref<1x16x16x32xf32, #tpu.memory_space<vmem>>) attributes {dimension_semantics = [#tpu.dimension_semantics<parallel>, #tpu.dimension_semantics<parallel>], iteration_bounds = array<i64: 2, 1>, scalar_prefetch = 0 : i64, scratch_operands = 0 : i64, tpu.core_type = #tpu.core_type<tc>, window_params = [{transform_indices = @transform_0, window_bounds = array<i64: 1, 16, 16, 32>}, {transform_indices = @transform_1, window_bounds = array<i64: 1, 1, 16, 32>}, {transform_indices = @transform_2, window_bounds = array<i64: 1, 1, 16, 32>}, {pipeline_mode = #tpu.pipeline_mode<synchronous>, transform_indices = @transform_3, window_bounds = array<i64: 32, 8>}, {pipeline_mode = #tpu.pipeline_mode<synchronous>, transform_indices = @transform_4, window_bounds = array<i64: 1, 8>}, {pipeline_mode = #tpu.pipeline_mode<synchronous>, transform_indices = @transform_5, window_bounds = array<i64: 3, 24, 8>}, {pipeline_mode = #tpu.pipeline_mode<synchronous>, transform_indices = @transform_6, window_bounds = array<i64: 1, 8>}, {pipeline_mode = #tpu.pipeline_mode<synchronous>, transform_indices = @transform_7, window_bounds = array<i64: 8, 32>}, {pipeline_mode = #tpu.pipeline_mode<synchronous>, transform_indices = @transform_8, window_bounds = array<i64: 1, 32>}, {transform_indices = @transform_9, window_bounds = array<i64: 1, 16, 16, 32>}]} {
    %c0 = arith.constant 0 : index
    %c0_0 = arith.constant 0 : index
    %0 = vector.load %arg5[%c0, %c0_0] : memref<32x8xbf16, #tpu.memory_space<vmem>>, vector<32x8xbf16>
    %c0_1 = arith.constant 0 : index
    %c0_2 = arith.constant 0 : index
    %1 = vector.load %arg6[%c0_1, %c0_2] : memref<1x8xf32, #tpu.memory_space<vmem>>, vector<1x8xf32>
    %c0_3 = arith.constant 0 : index
    %c0_4 = arith.constant 0 : index
    %c0_5 = arith.constant 0 : index
    %c0_6 = arith.constant 0 : index
    %2 = vector.load %arg2[%c0_3, %c0_4, %c0_5, %c0_6] : memref<1x16x16x32xf32, #tpu.memory_space<vmem>>, vector<1x16x16x32xf32>
    %3 = vector.shape_cast %2 : vector<1x16x16x32xf32> to vector<256x32xf32>
    %4 = arith.truncf %3 : vector<256x32xf32> to vector<256x32xbf16>
    %cst = arith.constant dense<0.000000e+00> : vector<256x8xf32>
    %5 = tpu.matmul %4, %0, %cst {dimension_numbers = #tpu.dot_dimension_numbers<[1], [0], [0], [1], [0, 0, 1, 1], [], []>} : vector<256x32xbf16>, vector<32x8xbf16>, vector<256x8xf32> -> vector<256x8xf32>
    %6 = vector.broadcast %1 : vector<1x8xf32> to vector<256x8xf32>
    %7 = arith.addf %5, %6 : vector<256x8xf32>
    %cst_7 = arith.constant 0.000000e+00 : f32
    %8 = vector.broadcast %cst_7 : f32 to vector<256x8xf32>
    %9 = arith.maximumf %7, %8 : vector<256x8xf32>
    %10 = arith.truncf %9 : vector<256x8xf32> to vector<256x8xbf16>
    %11 = vector.shape_cast %10 : vector<256x8xbf16> to vector<1x16x16x8xbf16>
    %c0_8 = arith.constant 0 : index
    %c0_9 = arith.constant 0 : index
    %c0_10 = arith.constant 0 : index
    %c0_11 = arith.constant 0 : index
    %12 = vector.load %arg3[%c0_8, %c0_9, %c0_10, %c0_11] : memref<1x1x16x32xf32, #tpu.memory_space<vmem>>, vector<1x1x16x32xf32>
    %13 = vector.shape_cast %12 : vector<1x1x16x32xf32> to vector<16x32xf32>
    %14 = arith.truncf %13 : vector<16x32xf32> to vector<16x32xbf16>
    %cst_12 = arith.constant dense<0.000000e+00> : vector<16x8xf32>
    %15 = tpu.matmul %14, %0, %cst_12 {dimension_numbers = #tpu.dot_dimension_numbers<[1], [0], [0], [1], [0, 0, 1, 1], [], []>} : vector<16x32xbf16>, vector<32x8xbf16>, vector<16x8xf32> -> vector<16x8xf32>
    %16 = vector.broadcast %1 : vector<1x8xf32> to vector<16x8xf32>
    %17 = arith.addf %15, %16 : vector<16x8xf32>
    %cst_13 = arith.constant 0.000000e+00 : f32
    %18 = vector.broadcast %cst_13 : f32 to vector<16x8xf32>
    %19 = arith.maximumf %17, %18 : vector<16x8xf32>
    %20 = arith.truncf %19 : vector<16x8xf32> to vector<16x8xbf16>
    %21 = vector.shape_cast %20 : vector<16x8xbf16> to vector<1x1x16x8xbf16>
    %c0_14 = arith.constant 0 : index
    %c0_15 = arith.constant 0 : index
    %c0_16 = arith.constant 0 : index
    %c0_17 = arith.constant 0 : index
    %22 = vector.load %arg4[%c0_14, %c0_15, %c0_16, %c0_17] : memref<1x1x16x32xf32, #tpu.memory_space<vmem>>, vector<1x1x16x32xf32>
    %23 = vector.shape_cast %22 : vector<1x1x16x32xf32> to vector<16x32xf32>
    %24 = arith.truncf %23 : vector<16x32xf32> to vector<16x32xbf16>
    %cst_18 = arith.constant dense<0.000000e+00> : vector<16x8xf32>
    %25 = tpu.matmul %24, %0, %cst_18 {dimension_numbers = #tpu.dot_dimension_numbers<[1], [0], [0], [1], [0, 0, 1, 1], [], []>} : vector<16x32xbf16>, vector<32x8xbf16>, vector<16x8xf32> -> vector<16x8xf32>
    %26 = vector.broadcast %1 : vector<1x8xf32> to vector<16x8xf32>
    %27 = arith.addf %25, %26 : vector<16x8xf32>
    %cst_19 = arith.constant 0.000000e+00 : f32
    %28 = vector.broadcast %cst_19 : f32 to vector<16x8xf32>
    %29 = arith.maximumf %27, %28 : vector<16x8xf32>
    %30 = arith.truncf %29 : vector<16x8xf32> to vector<16x8xbf16>
    %31 = vector.shape_cast %30 : vector<16x8xbf16> to vector<1x1x16x8xbf16>
    %32 = tpu.concatenate %21, %11, %31 in 1 : vector<1x1x16x8xbf16>, vector<1x16x16x8xbf16>, vector<1x1x16x8xbf16> -> vector<1x18x16x8xbf16>
    %cst_20 = arith.constant 0.000000e+00 : bf16
    %33 = vector.broadcast %cst_20 : bf16 to vector<1x18x1x8xbf16>
    %34 = tpu.concatenate %33, %32, %33 in 2 : vector<1x18x1x8xbf16>, vector<1x18x16x8xbf16>, vector<1x18x1x8xbf16> -> vector<1x18x18x8xbf16>
    %35 = vector.extract_strided_slice %34 {offsets = [0, 0, 0, 0], sizes = [1, 16, 16, 8], strides = [1, 1, 1, 1]} : vector<1x18x18x8xbf16> to vector<1x16x16x8xbf16>
    %36 = vector.extract_strided_slice %34 {offsets = [0, 0, 1, 0], sizes = [1, 16, 16, 8], strides = [1, 1, 1, 1]} : vector<1x18x18x8xbf16> to vector<1x16x16x8xbf16>
    %37 = vector.extract_strided_slice %34 {offsets = [0, 0, 2, 0], sizes = [1, 16, 16, 8], strides = [1, 1, 1, 1]} : vector<1x18x18x8xbf16> to vector<1x16x16x8xbf16>
    %38 = tpu.concatenate %35, %36, %37 in 3 : vector<1x16x16x8xbf16>, vector<1x16x16x8xbf16>, vector<1x16x16x8xbf16> -> vector<1x16x16x24xbf16>
    %39 = vector.shape_cast %38 : vector<1x16x16x24xbf16> to vector<256x24xbf16>
    %c0_21 = arith.constant 0 : index
    %c0_22 = arith.constant 0 : index
    %c0_23 = arith.constant 0 : index
    %40 = vector.load %arg7[%c0_21, %c0_22, %c0_23] : memref<3x24x8xbf16, #tpu.memory_space<vmem>>, vector<1x24x8xbf16>
    %41 = vector.shape_cast %40 : vector<1x24x8xbf16> to vector<24x8xbf16>
    %cst_24 = arith.constant dense<0.000000e+00> : vector<256x8xf32>
    %42 = tpu.matmul %39, %41, %cst_24 {dimension_numbers = #tpu.dot_dimension_numbers<[1], [0], [0], [1], [0, 0, 1, 1], [], []>} : vector<256x24xbf16>, vector<24x8xbf16>, vector<256x8xf32> -> vector<256x8xf32>
    %43 = vector.extract_strided_slice %34 {offsets = [0, 1, 0, 0], sizes = [1, 16, 16, 8], strides = [1, 1, 1, 1]} : vector<1x18x18x8xbf16> to vector<1x16x16x8xbf16>
    %44 = vector.extract_strided_slice %34 {offsets = [0, 1, 1, 0], sizes = [1, 16, 16, 8], strides = [1, 1, 1, 1]} : vector<1x18x18x8xbf16> to vector<1x16x16x8xbf16>
    %45 = vector.extract_strided_slice %34 {offsets = [0, 1, 2, 0], sizes = [1, 16, 16, 8], strides = [1, 1, 1, 1]} : vector<1x18x18x8xbf16> to vector<1x16x16x8xbf16>
    %46 = tpu.concatenate %43, %44, %45 in 3 : vector<1x16x16x8xbf16>, vector<1x16x16x8xbf16>, vector<1x16x16x8xbf16> -> vector<1x16x16x24xbf16>
    %47 = vector.shape_cast %46 : vector<1x16x16x24xbf16> to vector<256x24xbf16>
    %c1 = arith.constant 1 : index
    %c0_25 = arith.constant 0 : index
    %c0_26 = arith.constant 0 : index
    %48 = vector.load %arg7[%c1, %c0_25, %c0_26] : memref<3x24x8xbf16, #tpu.memory_space<vmem>>, vector<1x24x8xbf16>
    %49 = vector.shape_cast %48 : vector<1x24x8xbf16> to vector<24x8xbf16>
    %cst_27 = arith.constant dense<0.000000e+00> : vector<256x8xf32>
    %50 = tpu.matmul %47, %49, %cst_27 {dimension_numbers = #tpu.dot_dimension_numbers<[1], [0], [0], [1], [0, 0, 1, 1], [], []>} : vector<256x24xbf16>, vector<24x8xbf16>, vector<256x8xf32> -> vector<256x8xf32>
    %51 = arith.addf %42, %50 : vector<256x8xf32>
    %52 = vector.extract_strided_slice %34 {offsets = [0, 2, 0, 0], sizes = [1, 16, 16, 8], strides = [1, 1, 1, 1]} : vector<1x18x18x8xbf16> to vector<1x16x16x8xbf16>
    %53 = vector.extract_strided_slice %34 {offsets = [0, 2, 1, 0], sizes = [1, 16, 16, 8], strides = [1, 1, 1, 1]} : vector<1x18x18x8xbf16> to vector<1x16x16x8xbf16>
    %54 = vector.extract_strided_slice %34 {offsets = [0, 2, 2, 0], sizes = [1, 16, 16, 8], strides = [1, 1, 1, 1]} : vector<1x18x18x8xbf16> to vector<1x16x16x8xbf16>
    %55 = tpu.concatenate %52, %53, %54 in 3 : vector<1x16x16x8xbf16>, vector<1x16x16x8xbf16>, vector<1x16x16x8xbf16> -> vector<1x16x16x24xbf16>
    %56 = vector.shape_cast %55 : vector<1x16x16x24xbf16> to vector<256x24xbf16>
    %c2 = arith.constant 2 : index
    %c0_28 = arith.constant 0 : index
    %c0_29 = arith.constant 0 : index
    %57 = vector.load %arg7[%c2, %c0_28, %c0_29] : memref<3x24x8xbf16, #tpu.memory_space<vmem>>, vector<1x24x8xbf16>
    %58 = vector.shape_cast %57 : vector<1x24x8xbf16> to vector<24x8xbf16>
    %cst_30 = arith.constant dense<0.000000e+00> : vector<256x8xf32>
    %59 = tpu.matmul %56, %58, %cst_30 {dimension_numbers = #tpu.dot_dimension_numbers<[1], [0], [0], [1], [0, 0, 1, 1], [], []>} : vector<256x24xbf16>, vector<24x8xbf16>, vector<256x8xf32> -> vector<256x8xf32>
    %60 = arith.addf %51, %59 : vector<256x8xf32>
    %c0_31 = arith.constant 0 : index
    %c0_32 = arith.constant 0 : index
    %61 = vector.load %arg8[%c0_31, %c0_32] : memref<1x8xf32, #tpu.memory_space<vmem>>, vector<1x8xf32>
    %62 = vector.broadcast %61 : vector<1x8xf32> to vector<256x8xf32>
    %63 = arith.addf %60, %62 : vector<256x8xf32>
    %cst_33 = arith.constant 0.000000e+00 : f32
    %64 = vector.broadcast %cst_33 : f32 to vector<256x8xf32>
    %65 = arith.maximumf %63, %64 : vector<256x8xf32>
    %66 = arith.truncf %65 : vector<256x8xf32> to vector<256x8xbf16>
    %c0_34 = arith.constant 0 : index
    %c0_35 = arith.constant 0 : index
    %67 = vector.load %arg9[%c0_34, %c0_35] : memref<8x32xbf16, #tpu.memory_space<vmem>>, vector<8x32xbf16>
    %cst_36 = arith.constant dense<0.000000e+00> : vector<256x32xf32>
    %68 = tpu.matmul %66, %67, %cst_36 {dimension_numbers = #tpu.dot_dimension_numbers<[1], [0], [0], [1], [0, 0, 1, 1], [], []>} : vector<256x8xbf16>, vector<8x32xbf16>, vector<256x32xf32> -> vector<256x32xf32>
    %c0_37 = arith.constant 0 : index
    %c0_38 = arith.constant 0 : index
    %69 = vector.load %arg10[%c0_37, %c0_38] : memref<1x32xf32, #tpu.memory_space<vmem>>, vector<1x32xf32>
    %70 = vector.broadcast %69 : vector<1x32xf32> to vector<256x32xf32>
    %71 = arith.addf %68, %70 : vector<256x32xf32>
    %c0_39 = arith.constant 0 : index
    %c0_40 = arith.constant 0 : index
    %c0_41 = arith.constant 0 : index
    %c0_42 = arith.constant 0 : index
    %72 = vector.load %arg2[%c0_39, %c0_40, %c0_41, %c0_42] : memref<1x16x16x32xf32, #tpu.memory_space<vmem>>, vector<1x16x16x32xf32>
    %73 = vector.shape_cast %72 : vector<1x16x16x32xf32> to vector<256x32xf32>
    %74 = arith.addf %71, %73 : vector<256x32xf32>
    %cst_43 = arith.constant 0.000000e+00 : f32
    %75 = vector.broadcast %cst_43 : f32 to vector<256x32xf32>
    %76 = arith.maximumf %74, %75 : vector<256x32xf32>
    %77 = vector.shape_cast %76 : vector<256x32xf32> to vector<1x16x16x32xf32>
    %c0_44 = arith.constant 0 : index
    %c0_45 = arith.constant 0 : index
    %c0_46 = arith.constant 0 : index
    %c0_47 = arith.constant 0 : index
    %78 = vector.load %arg11[%c0_44, %c0_45, %c0_46, %c0_47] : memref<1x16x16x32xf32, #tpu.memory_space<vmem>>, vector<1x16x16x32xf32>
    tpu.vector_store %arg11[%c0_44, %c0_45, %c0_46, %c0_47], %77 {strides = array<i32>} : memref<1x16x16x32xf32, #tpu.memory_space<vmem>>, vector<1x16x16x32xf32>,
    return
  }
  func.func @transform_0(%arg0: i32, %arg1: i32) -> (i32, i32, i32, i32) {
    %c0_i32 = arith.constant 0 : i32
    %c0_i32_0 = arith.constant 0 : i32
    %c0_i32_1 = arith.constant 0 : i32
    return %arg0, %arg1, %c0_i32, %c0_i32_0 : i32, i32, i32, i32
  }
  func.func @transform_1(%arg0: i32, %arg1: i32) -> (i32, i32, i32, i32) {
    %c0_i32 = arith.constant 0 : i32
    %c0_i32_0 = arith.constant 0 : i32
    %c0_i32_1 = arith.constant 0 : i32
    return %arg0, %arg1, %c0_i32, %c0_i32_0 : i32, i32, i32, i32
  }
  func.func @transform_2(%arg0: i32, %arg1: i32) -> (i32, i32, i32, i32) {
    %c0_i32 = arith.constant 0 : i32
    %c0_i32_0 = arith.constant 0 : i32
    %c0_i32_1 = arith.constant 0 : i32
    return %arg0, %arg1, %c0_i32, %c0_i32_0 : i32, i32, i32, i32
  }
  func.func @transform_3(%arg0: i32, %arg1: i32) -> (i32, i32) {
    %c0_i32 = arith.constant 0 : i32
    %c0_i32_0 = arith.constant 0 : i32
    %c0_i32_1 = arith.constant 0 : i32
    return %c0_i32, %c0_i32_0 : i32, i32
  }
  func.func @transform_4(%arg0: i32, %arg1: i32) -> (i32, i32) {
    %c0_i32 = arith.constant 0 : i32
    %c0_i32_0 = arith.constant 0 : i32
    %c0_i32_1 = arith.constant 0 : i32
    return %c0_i32, %c0_i32_0 : i32, i32
  }
  func.func @transform_5(%arg0: i32, %arg1: i32) -> (i32, i32, i32) {
    %c0_i32 = arith.constant 0 : i32
    %c0_i32_0 = arith.constant 0 : i32
    %c0_i32_1 = arith.constant 0 : i32
    %c0_i32_2 = arith.constant 0 : i32
    return %c0_i32, %c0_i32_0, %c0_i32_1 : i32, i32, i32
  }
  func.func @transform_6(%arg0: i32, %arg1: i32) -> (i32, i32) {
    %c0_i32 = arith.constant 0 : i32
    %c0_i32_0 = arith.constant 0 : i32
    %c0_i32_1 = arith.constant 0 : i32
    return %c0_i32, %c0_i32_0 : i32, i32
  }
  func.func @transform_7(%arg0: i32, %arg1: i32) -> (i32, i32) {
    %c0_i32 = arith.constant 0 : i32
    %c0_i32_0 = arith.constant 0 : i32
    %c0_i32_1 = arith.constant 0 : i32
    return %c0_i32, %c0_i32_0 : i32, i32
  }
  func.func @transform_8(%arg0: i32, %arg1: i32) -> (i32, i32) {
    %c0_i32 = arith.constant 0 : i32
    %c0_i32_0 = arith.constant 0 : i32
    %c0_i32_1 = arith.constant 0 : i32
    return %c0_i32, %c0_i32_0 : i32, i32
  }
  func.func @transform_9(%arg0: i32, %arg1: i32) -> (i32, i32, i32, i32) {
    %c0_i32 = arith.constant 0 : i32
    %c0_i32_0 = arith.constant 0 : i32
    %c0_i32_1 = arith.constant 0 : i32
    return %arg0, %arg1, %c0_i32, %c0_i32_0 : i32, i32, i32, i32
  }
}

module attributes {stable_mosaic.version = 11 : i64} {
  func.func @_bottleneck_kernel(%arg0: i32, %arg1: i32, %arg2: memref<1x16x16x32xf32, #tpu.memory_space<vmem>>, %arg3: memref<1x1x16x32xf32, #tpu.memory_space<vmem>>, %arg4: memref<1x1x16x32xf32, #tpu.memory_space<vmem>>, %arg5: memref<32x8xbf16, #tpu.memory_space<vmem>>, %arg6: memref<1x8xf32, #tpu.memory_space<vmem>>, %arg7: memref<3x24x8xbf16, #tpu.memory_space<vmem>>, %arg8: memref<1x8xf32, #tpu.memory_space<vmem>>, %arg9: memref<8x32xbf16, #tpu.memory_space<vmem>>, %arg10: memref<1x32xf32, #tpu.memory_space<vmem>>, %arg11: memref<1x16x16x32xf32, #tpu.memory_space<vmem>>) attributes {dimension_semantics = [#tpu.dimension_semantics<parallel>, #tpu.dimension_semantics<parallel>], iteration_bounds = array<i64: 2, 1>, scalar_prefetch = 0 : i64, scratch_operands = 0 : i64, tpu.core_type = #tpu.core_type<tc>, window_params = [{transform_indices = @transform_0, window_bounds = array<i64: 1, 16, 16, 32>}, {transform_indices = @transform_1, window_bounds = array<i64: 1, 1, 16, 32>}, {transform_indices = @transform_2, window_bounds = array<i64: 1, 1, 16, 32>}, {pipeline_mode = #tpu.pipeline_mode<synchronous>, transform_indices = @transform_3, window_bounds = array<i64: 32, 8>}, {pipeline_mode = #tpu.pipeline_mode<synchronous>, transform_indices = @transform_4, window_bounds = array<i64: 1, 8>}, {pipeline_mode = #tpu.pipeline_mode<synchronous>, transform_indices = @transform_5, window_bounds = array<i64: 3, 24, 8>}, {pipeline_mode = #tpu.pipeline_mode<synchronous>, transform_indices = @transform_6, window_bounds = array<i64: 1, 8>}, {pipeline_mode = #tpu.pipeline_mode<synchronous>, transform_indices = @transform_7, window_bounds = array<i64: 8, 32>}, {pipeline_mode = #tpu.pipeline_mode<synchronous>, transform_indices = @transform_8, window_bounds = array<i64: 1, 32>}, {transform_indices = @transform_9, window_bounds = array<i64: 1, 16, 16, 32>}]} {
    %c0 = arith.constant 0 : index
    %c0_0 = arith.constant 0 : index
    %0 = vector.load %arg5[%c0, %c0_0] : memref<32x8xbf16, #tpu.memory_space<vmem>>, vector<32x8xbf16>
    %c0_1 = arith.constant 0 : index
    %c0_2 = arith.constant 0 : index
    %1 = vector.load %arg6[%c0_1, %c0_2] : memref<1x8xf32, #tpu.memory_space<vmem>>, vector<1x8xf32>
    %c0_3 = arith.constant 0 : index
    %c0_4 = arith.constant 0 : index
    %c0_5 = arith.constant 0 : index
    %c0_6 = arith.constant 0 : index
    %2 = vector.load %arg2[%c0_3, %c0_4, %c0_5, %c0_6] : memref<1x16x16x32xf32, #tpu.memory_space<vmem>>, vector<1x16x16x32xf32>
    %3 = vector.shape_cast %2 : vector<1x16x16x32xf32> to vector<256x32xf32>
    %4 = arith.truncf %3 : vector<256x32xf32> to vector<256x32xbf16>
    %cst = arith.constant dense<0.000000e+00> : vector<256x8xf32>
    %5 = tpu.matmul %4, %0, %cst {dimension_numbers = #tpu.dot_dimension_numbers<[1], [0], [0], [1], [0, 0, 1, 1], [], []>} : vector<256x32xbf16>, vector<32x8xbf16>, vector<256x8xf32> -> vector<256x8xf32>
    %6 = vector.broadcast %1 : vector<1x8xf32> to vector<256x8xf32>
    %7 = arith.addf %5, %6 : vector<256x8xf32>
    %cst_7 = arith.constant 0.000000e+00 : f32
    %8 = vector.broadcast %cst_7 : f32 to vector<256x8xf32>
    %9 = arith.maximumf %7, %8 : vector<256x8xf32>
    %10 = arith.truncf %9 : vector<256x8xf32> to vector<256x8xbf16>
    %11 = vector.shape_cast %10 : vector<256x8xbf16> to vector<1x16x16x8xbf16>
    %c0_8 = arith.constant 0 : index
    %c0_9 = arith.constant 0 : index
    %c0_10 = arith.constant 0 : index
    %c0_11 = arith.constant 0 : index
    %12 = vector.load %arg3[%c0_8, %c0_9, %c0_10, %c0_11] : memref<1x1x16x32xf32, #tpu.memory_space<vmem>>, vector<1x1x16x32xf32>
    %13 = vector.shape_cast %12 : vector<1x1x16x32xf32> to vector<16x32xf32>
    %14 = arith.truncf %13 : vector<16x32xf32> to vector<16x32xbf16>
    %cst_12 = arith.constant dense<0.000000e+00> : vector<16x8xf32>
    %15 = tpu.matmul %14, %0, %cst_12 {dimension_numbers = #tpu.dot_dimension_numbers<[1], [0], [0], [1], [0, 0, 1, 1], [], []>} : vector<16x32xbf16>, vector<32x8xbf16>, vector<16x8xf32> -> vector<16x8xf32>
    %16 = vector.broadcast %1 : vector<1x8xf32> to vector<16x8xf32>
    %17 = arith.addf %15, %16 : vector<16x8xf32>
    %cst_13 = arith.constant 0.000000e+00 : f32
    %18 = vector.broadcast %cst_13 : f32 to vector<16x8xf32>
    %19 = arith.maximumf %17, %18 : vector<16x8xf32>
    %20 = arith.truncf %19 : vector<16x8xf32> to vector<16x8xbf16>
    %21 = vector.shape_cast %20 : vector<16x8xbf16> to vector<1x1x16x8xbf16>
    %c0_14 = arith.constant 0 : index
    %c0_15 = arith.constant 0 : index
    %c0_16 = arith.constant 0 : index
    %c0_17 = arith.constant 0 : index
    %22 = vector.load %arg4[%c0_14, %c0_15, %c0_16, %c0_17] : memref<1x1x16x32xf32, #tpu.memory_space<vmem>>, vector<1x1x16x32xf32>
    %23 = vector.shape_cast %22 : vector<1x1x16x32xf32> to vector<16x32xf32>
    %24 = arith.truncf %23 : vector<16x32xf32> to vector<16x32xbf16>
    %cst_18 = arith.constant dense<0.000000e+00> : vector<16x8xf32>
    %25 = tpu.matmul %24, %0, %cst_18 {dimension_numbers = #tpu.dot_dimension_numbers<[1], [0], [0], [1], [0, 0, 1, 1], [], []>} : vector<16x32xbf16>, vector<32x8xbf16>, vector<16x8xf32> -> vector<16x8xf32>
    %26 = vector.broadcast %1 : vector<1x8xf32> to vector<16x8xf32>
    %27 = arith.addf %25, %26 : vector<16x8xf32>
    %cst_19 = arith.constant 0.000000e+00 : f32
    %28 = vector.broadcast %cst_19 : f32 to vector<16x8xf32>
    %29 = arith.maximumf %27, %28 : vector<16x8xf32>
    %30 = arith.truncf %29 : vector<16x8xf32> to vector<16x8xbf16>
    %31 = vector.shape_cast %30 : vector<16x8xbf16> to vector<1x1x16x8xbf16>
    %32 = tpu.concatenate %21, %11, %31 in 1 : vector<1x1x16x8xbf16>, vector<1x16x16x8xbf16>, vector<1x1x16x8xbf16> -> vector<1x18x16x8xbf16>
    %cst_20 = arith.constant 0.000000e+00 : bf16
    %33 = vector.broadcast %cst_20 : bf16 to vector<1x18x1x8xbf16>
    %34 = tpu.concatenate %33, %32, %33 in 2 : vector<1x18x1x8xbf16>, vector<1x18x16x8xbf16>, vector<1x18x1x8xbf16> -> vector<1x18x18x8xbf16>
    %35 = vector.extract_strided_slice %34 {offsets = [0, 0, 0, 0], sizes = [1, 16, 16, 8], strides = [1, 1, 1, 1]} : vector<1x18x18x8xbf16> to vector<1x16x16x8xbf16>
    %36 = vector.extract_strided_slice %34 {offsets = [0, 0, 1, 0], sizes = [1, 16, 16, 8], strides = [1, 1, 1, 1]} : vector<1x18x18x8xbf16> to vector<1x16x16x8xbf16>
    %37 = vector.extract_strided_slice %34 {offsets = [0, 0, 2, 0], sizes = [1, 16, 16, 8], strides = [1, 1, 1, 1]} : vector<1x18x18x8xbf16> to vector<1x16x16x8xbf16>
    %38 = tpu.concatenate %35, %36, %37 in 3 : vector<1x16x16x8xbf16>, vector<1x16x16x8xbf16>, vector<1x16x16x8xbf16> -> vector<1x16x16x24xbf16>
    %39 = vector.shape_cast %38 : vector<1x16x16x24xbf16> to vector<256x24xbf16>
    %c0_21 = arith.constant 0 : index
    %c0_22 = arith.constant 0 : index
    %c0_23 = arith.constant 0 : index
    %40 = vector.load %arg7[%c0_21, %c0_22, %c0_23] : memref<3x24x8xbf16, #tpu.memory_space<vmem>>, vector<1x24x8xbf16>
    %41 = vector.shape_cast %40 : vector<1x24x8xbf16> to vector<24x8xbf16>
    %cst_24 = arith.constant dense<0.000000e+00> : vector<256x8xf32>
    %42 = tpu.matmul %39, %41, %cst_24 {dimension_numbers = #tpu.dot_dimension_numbers<[1], [0], [0], [1], [0, 0, 1, 1], [], []>} : vector<256x24xbf16>, vector<24x8xbf16>, vector<256x8xf32> -> vector<256x8xf32>
    %43 = vector.extract_strided_slice %34 {offsets = [0, 1, 0, 0], sizes = [1, 16, 16, 8], strides = [1, 1, 1, 1]} : vector<1x18x18x8xbf16> to vector<1x16x16x8xbf16>
    %44 = vector.extract_strided_slice %34 {offsets = [0, 1, 1, 0], sizes = [1, 16, 16, 8], strides = [1, 1, 1, 1]} : vector<1x18x18x8xbf16> to vector<1x16x16x8xbf16>
    %45 = vector.extract_strided_slice %34 {offsets = [0, 1, 2, 0], sizes = [1, 16, 16, 8], strides = [1, 1, 1, 1]} : vector<1x18x18x8xbf16> to vector<1x16x16x8xbf16>
    %46 = tpu.concatenate %43, %44, %45 in 3 : vector<1x16x16x8xbf16>, vector<1x16x16x8xbf16>, vector<1x16x16x8xbf16> -> vector<1x16x16x24xbf16>
    %47 = vector.shape_cast %46 : vector<1x16x16x24xbf16> to vector<256x24xbf16>
    %c1 = arith.constant 1 : index
    %c0_25 = arith.constant 0 : index
    %c0_26 = arith.constant 0 : index
    %48 = vector.load %arg7[%c1, %c0_25, %c0_26] : memref<3x24x8xbf16, #tpu.memory_space<vmem>>, vector<1x24x8xbf16>
    %49 = vector.shape_cast %48 : vector<1x24x8xbf16> to vector<24x8xbf16>
    %cst_27 = arith.constant dense<0.000000e+00> : vector<256x8xf32>
    %50 = tpu.matmul %47, %49, %cst_27 {dimension_numbers = #tpu.dot_dimension_numbers<[1], [0], [0], [1], [0, 0, 1, 1], [], []>} : vector<256x24xbf16>, vector<24x8xbf16>, vector<256x8xf32> -> vector<256x8xf32>
    %51 = arith.addf %42, %50 : vector<256x8xf32>
    %52 = vector.extract_strided_slice %34 {offsets = [0, 2, 0, 0], sizes = [1, 16, 16, 8], strides = [1, 1, 1, 1]} : vector<1x18x18x8xbf16> to vector<1x16x16x8xbf16>
    %53 = vector.extract_strided_slice %34 {offsets = [0, 2, 1, 0], sizes = [1, 16, 16, 8], strides = [1, 1, 1, 1]} : vector<1x18x18x8xbf16> to vector<1x16x16x8xbf16>
    %54 = vector.extract_strided_slice %34 {offsets = [0, 2, 2, 0], sizes = [1, 16, 16, 8], strides = [1, 1, 1, 1]} : vector<1x18x18x8xbf16> to vector<1x16x16x8xbf16>
    %55 = tpu.concatenate %52, %53, %54 in 3 : vector<1x16x16x8xbf16>, vector<1x16x16x8xbf16>, vector<1x16x16x8xbf16> -> vector<1x16x16x24xbf16>
    %56 = vector.shape_cast %55 : vector<1x16x16x24xbf16> to vector<256x24xbf16>
    %c2 = arith.constant 2 : index
    %c0_28 = arith.constant 0 : index
    %c0_29 = arith.constant 0 : index
    %57 = vector.load %arg7[%c2, %c0_28, %c0_29] : memref<3x24x8xbf16, #tpu.memory_space<vmem>>, vector<1x24x8xbf16>
    %58 = vector.shape_cast %57 : vector<1x24x8xbf16> to vector<24x8xbf16>
    %cst_30 = arith.constant dense<0.000000e+00> : vector<256x8xf32>
    %59 = tpu.matmul %56, %58, %cst_30 {dimension_numbers = #tpu.dot_dimension_numbers<[1], [0], [0], [1], [0, 0, 1, 1], [], []>} : vector<256x24xbf16>, vector<24x8xbf16>, vector<256x8xf32> -> vector<256x8xf32>
    %60 = arith.addf %51, %59 : vector<256x8xf32>
    %c0_31 = arith.constant 0 : index
    %c0_32 = arith.constant 0 : index
    %61 = vector.load %arg8[%c0_31, %c0_32] : memref<1x8xf32, #tpu.memory_space<vmem>>, vector<1x8xf32>
    %62 = vector.broadcast %61 : vector<1x8xf32> to vector<256x8xf32>
    %63 = arith.addf %60, %62 : vector<256x8xf32>
    %cst_33 = arith.constant 0.000000e+00 : f32
    %64 = vector.broadcast %cst_33 : f32 to vector<256x8xf32>
    %65 = arith.maximumf %63, %64 : vector<256x8xf32>
    %66 = arith.truncf %65 : vector<256x8xf32> to vector<256x8xbf16>
    %c0_34 = arith.constant 0 : index
    %c0_35 = arith.constant 0 : index
    %67 = vector.load %arg9[%c0_34, %c0_35] : memref<8x32xbf16, #tpu.memory_space<vmem>>, vector<8x32xbf16>
    %cst_36 = arith.constant dense<0.000000e+00> : vector<256x32xf32>
    %68 = tpu.matmul %66, %67, %cst_36 {dimension_numbers = #tpu.dot_dimension_numbers<[1], [0], [0], [1], [0, 0, 1, 1], [], []>} : vector<256x8xbf16>, vector<8x32xbf16>, vector<256x32xf32> -> vector<256x32xf32>
    %c0_37 = arith.constant 0 : index
    %c0_38 = arith.constant 0 : index
    %69 = vector.load %arg10[%c0_37, %c0_38] : memref<1x32xf32, #tpu.memory_space<vmem>>, vector<1x32xf32>
    %70 = vector.broadcast %69 : vector<1x32xf32> to vector<256x32xf32>
    %71 = arith.addf %68, %70 : vector<256x32xf32>
    %c0_39 = arith.constant 0 : index
    %c0_40 = arith.constant 0 : index
    %c0_41 = arith.constant 0 : index
    %c0_42 = arith.constant 0 : index
    %72 = vector.load %arg2[%c0_39, %c0_40, %c0_41, %c0_42] : memref<1x16x16x32xf32, #tpu.memory_space<vmem>>, vector<1x16x16x32xf32>
    %73 = vector.shape_cast %72 : vector<1x16x16x32xf32> to vector<256x32xf32>
    %74 = arith.addf %71, %73 : vector<256x32xf32>
    %cst_43 = arith.constant 0.000000e+00 : f32
    %75 = vector.broadcast %cst_43 : f32 to vector<256x32xf32>
    %76 = arith.maximumf %74, %75 : vector<256x32xf32>
    %77 = vector.shape_cast %76 : vector<256x32xf32> to vector<1x16x16x32xf32>
    %c0_44 = arith.constant 0 : index
    %c0_45 = arith.constant 0 : index
    %c0_46 = arith.constant 0 : index
    %c0_47 = arith.constant 0 : index
    %78 = vector.load %arg11[%c0_44, %c0_45, %c0_46, %c0_47] : memref<1x16x16x32xf32, #tpu.memory_space<vmem>>, vector<1x16x16x32xf32>
    tpu.vector_store %arg11[%c0_44, %c0_45, %c0_46, %c0_47], %77 {strides = array<i32>} : memref<1x16x16x32xf32, #tpu.memory_space<vmem>>, vector<1x16x16x32xf32>,
    return
  }
  func.func @transform_0(%arg0: i32, %arg1: i32) -> (i32, i32, i32, i32) {
    %c0_i32 = arith.constant 0 : i32
    %c0_i32_0 = arith.constant 0 : i32
    %c0_i32_1 = arith.constant 0 : i32
    return %arg0, %arg1, %c0_i32, %c0_i32_0 : i32, i32, i32, i32
  }
  func.func @transform_1(%arg0: i32, %arg1: i32) -> (i32, i32, i32, i32) {
    %c0_i32 = arith.constant 0 : i32
    %c0_i32_0 = arith.constant 0 : i32
    %c0_i32_1 = arith.constant 0 : i32
    return %arg0, %arg1, %c0_i32, %c0_i32_0 : i32, i32, i32, i32
  }
  func.func @transform_2(%arg0: i32, %arg1: i32) -> (i32, i32, i32, i32) {
    %c0_i32 = arith.constant 0 : i32
    %c0_i32_0 = arith.constant 0 : i32
    %c0_i32_1 = arith.constant 0 : i32
    return %arg0, %arg1, %c0_i32, %c0_i32_0 : i32, i32, i32, i32
  }
  func.func @transform_3(%arg0: i32, %arg1: i32) -> (i32, i32) {
    %c0_i32 = arith.constant 0 : i32
    %c0_i32_0 = arith.constant 0 : i32
    %c0_i32_1 = arith.constant 0 : i32
    return %c0_i32, %c0_i32_0 : i32, i32
  }
  func.func @transform_4(%arg0: i32, %arg1: i32) -> (i32, i32) {
    %c0_i32 = arith.constant 0 : i32
    %c0_i32_0 = arith.constant 0 : i32
    %c0_i32_1 = arith.constant 0 : i32
    return %c0_i32, %c0_i32_0 : i32, i32
  }
  func.func @transform_5(%arg0: i32, %arg1: i32) -> (i32, i32, i32) {
    %c0_i32 = arith.constant 0 : i32
    %c0_i32_0 = arith.constant 0 : i32
    %c0_i32_1 = arith.constant 0 : i32
    %c0_i32_2 = arith.constant 0 : i32
    return %c0_i32, %c0_i32_0, %c0_i32_1 : i32, i32, i32
  }
  func.func @transform_6(%arg0: i32, %arg1: i32) -> (i32, i32) {
    %c0_i32 = arith.constant 0 : i32
    %c0_i32_0 = arith.constant 0 : i32
    %c0_i32_1 = arith.constant 0 : i32
    return %c0_i32, %c0_i32_0 : i32, i32
  }
  func.func @transform_7(%arg0: i32, %arg1: i32) -> (i32, i32) {
    %c0_i32 = arith.constant 0 : i32
    %c0_i32_0 = arith.constant 0 : i32
    %c0_i32_1 = arith.constant 0 : i32
    return %c0_i32, %c0_i32_0 : i32, i32
  }
  func.func @transform_8(%arg0: i32, %arg1: i32) -> (i32, i32) {
    %c0_i32 = arith.constant 0 : i32
    %c0_i32_0 = arith.constant 0 : i32
    %c0_i32_1 = arith.constant 0 : i32
    return %c0_i32, %c0_i32_0 : i32, i32
  }
  func.func @transform_9(%arg0: i32, %arg1: i32) -> (i32, i32, i32, i32) {
    %c0_i32 = arith.constant 0 : i32
    %c0_i32_0 = arith.constant 0 : i32
    %c0_i32_1 = arith.constant 0 : i32
    return %arg0, %arg1, %c0_i32, %c0_i32_0 : i32, i32, i32, i32
  }
}

</mosaic_0001>

<llo_original>
// kernel: tpu_custom_call.1
$region0: #{tpu_custom_call.1}
  #allocation0 [shape = 'u32[]', space=smem, size = 0x4, offset = 0x4, fixed_abs, tag = 'smem constant byte address 0x4 - core index']
  #allocation1 [shape = 'u32[144,128]{1,0:T(1,128)}', space=vmem, size = 0x12000, scoped, tag = 'internal scratch']
  %s0 = inlined_call_operand.hbm [shape: f32[2,16,16,32], index: 0, kind: input, shape index: {}]
  %s1 = inlined_call_operand.vmem [shape: f32[2,1,16,32], index: 1, kind: input, shape index: {}]
  %s2 = inlined_call_operand.vmem [shape: f32[2,1,16,32], index: 2, kind: input, shape index: {}]
  %s3 = inlined_call_operand.vmem [shape: bf16[32,8], index: 3, kind: input, shape index: {}]
  %s4 = inlined_call_operand.hbm [shape: f32[1,8], index: 4, kind: input, shape index: {}]
  %s5 = inlined_call_operand.vmem [shape: bf16[3,24,8], index: 5, kind: input, shape index: {}]
  %s6 = inlined_call_operand.hbm [shape: f32[1,8], index: 6, kind: input, shape index: {}]
  %s7 = inlined_call_operand.vmem [shape: bf16[8,32], index: 7, kind: input, shape index: {}]
  %s8 = inlined_call_operand.vmem [shape: f32[1,32], index: 8, kind: input, shape index: {}]
  %s9 = inlined_call_operand.hbm [shape: f32[2,16,16,32], index: 9, kind: output, shape index: {}]
  %s10 = sld [smem:[#allocation0]]
  $region81: #{tpu_custom_call.1} parent=0
    _
  %s12 = ssub.s32 1, %s10
  %s13 = scalar_select 0, %s12, %s10
  $region1: #{tpu_custom_call.1} parent=0
    #allocation2 [shape = 'u8[262144]{0}', space=vmem, size = 0x40000, scoped, tag = 'input window, operand 0']
    #allocation3 [shape = 's32[2]{0}', space=sflag, size = 0x8, scoped, tag = 'scoped memory for tpu_custom_call.1']
    #allocation4 [shape = 's32[2]{0}', space=sflag, size = 0x8, scoped, tag = 'scoped memory for tpu_custom_call.1']
    #allocation5 [shape = 'u8[512]{0}', space=vmem, size = 0x400, scoped, tag = 'input window, operand 4, single buffered']
    #allocation6 [shape = 's32[1]{0}', space=sflag, size = 0x4, scoped, tag = 'scoped memory for tpu_custom_call.1']
    #allocation7 [shape = 'u8[512]{0}', space=vmem, size = 0x400, scoped, tag = 'input window, operand 6, single buffered']
    #allocation8 [shape = 'u8[262144]{0}', space=vmem, size = 0x40000, scoped, tag = 'output window, operand 0']
    %14 = vsyncpa [#allocation3], 0
    %s15 = scalar_lea.sflag [#allocation3], 1
    %16 = vsyncpa %s15, 0
    %17 = vsyncpa [#allocation6], 0
    %18 = vsyncpa [#allocation4], 0
    %s19 = scalar_lea.sflag [#allocation4], 1
    %20 = vsyncpa %s19, 0
    loop: start=0, step=1, limit=4
    $region2: #{tpu_custom_call.1} parent=1 // loop_pre_header
      _
    $region3: #{tpu_custom_call.1} parent=1 // loop_header
      %s22 = sphi 0, %s26
      %p23 = scmp.ge.s32.totalorder %s22, 4
      %s29 = sphi 0, %s41
      %s30 = sphi 0, %s37
      %s31 = sphi 0, %s29
      %s32 = sphi 0, %s30
      %s33 = sphi 0, %s31
      %s34 = sphi 0, %s32
      %s46 = sphi 0, %s48
      %s49 = sphi 0, %s46
      %s50 = sphi 0, %s49
      %s66 = sphi 0, %s50
      %s74 = sphi 0, %s76
      %s77 = sphi 0, %s74
      %s78 = sphi 0, %s77
      %s94 = sphi 0, %s78
      %s102 = sphi 0, %s104
      %s105 = sphi 0, %s102
      %s106 = sphi 0, %s105
      %s122 = sphi 0, %s106
      %s126 = sphi 0, %s126
      %s128 = sphi 0, %s126
      %s129 = sphi 0, %s128
      %s143 = sphi 0, %s129
      %s147 = sphi 0, %s147
      %s149 = sphi 0, %s147
      %s150 = sphi 0, %s149
      %s164 = sphi 0, %s150
      %s168 = sphi 0, %s168
      %s170 = sphi 0, %s168
      %s171 = sphi 0, %s170
      %s185 = sphi 0, %s171
      %s189 = sphi 0, %s189
      %s191 = sphi 0, %s189
      %s192 = sphi 0, %s191
      %s206 = sphi 0, %s192
      %s210 = sphi 0, %s210
      %s212 = sphi 0, %s210
      %s213 = sphi 0, %s212
      %s227 = sphi 0, %s213
      %s231 = sphi 0, %s231
      %s233 = sphi 0, %s231
      %s234 = sphi 0, %s233
      %s248 = sphi 0, %s234
      %s256 = sphi 0, %s258
      %s259 = sphi 0, %s256
      %s260 = sphi 0, %s259
      %s276 = sphi 0, %s260
    $region4: #{tpu_custom_call.1} parent=1 // loop_header_branch
      %25 = sbr.rel (%p23) target = $region8
    $region5: #{tpu_custom_call.1} parent=1 // loop_body
      %s27 = ssub.s32 %s22, 1
      %s28 = ssub.s32 %s22, 2
      %s35 = sadd.s32 1, %s30
      %p36 = scmp.ge.s32.totalorder %s35, 1
      %s37 = scalar_select %p36, 0, %s35
      %s38 = sadd.s32 1, %s29
      %s39 = scalar_select %p36, %s38, %s29
      %p40 = scmp.ge.s32.totalorder %s39, 2
      %s41 = scalar_select %p40, 0, %s39
      %s42 = ssub.s32 %s29, %s41
      %s43 = ssub.s32 %s30, %s37
      %s44 = sor.u32 %s42, %s43
      %p45 = scmp.eq.s32.totalorder %s44, 0
      %s47 = sadd.s32 %s46, 1
      %s48 = scalar_select %p45, %s46, %s47
      %p51 = pneg %p45
      %p52 = scmp.eq.s32.totalorder %s22, 1
      %p53 = por %p51, %p52
      %p54 = scmp.ne.s32.totalorder %s46, %s49
      %p55 = scmp.eq.s32.totalorder %s22, 0
      %p56 = por %p54, %p55
      %p57 = scmp.ne.s32.totalorder %s46, %s49
      %p58 = scmp.eq.s32.totalorder %s27, 1
      %p59 = por %p57, %p58
      %p60 = scmp.ne.s32.totalorder %s49, %s50
      %p61 = scmp.eq.s32.totalorder %s27, 0
      %p62 = por %p60, %p61
      %p63 = scmp.ne.s32.totalorder %s49, %s50
      %p64 = scmp.eq.s32.totalorder %s28, 1
      %p65 = por %p63, %p64
      %p67 = scmp.ne.s32.totalorder %s50, %s66
      %p68 = scmp.eq.s32.totalorder %s28, 0
      %p69 = por %p67, %p68
      %s70 = ssub.s32 %s29, %s41
      %s71 = ssub.s32 %s30, %s37
      %s72 = sor.u32 %s70, %s71
      %p73 = scmp.eq.s32.totalorder %s72, 0
      %s75 = sadd.s32 %s74, 1
      %s76 = scalar_select %p73, %s74, %s75
      %p79 = pneg %p73
      %p80 = scmp.eq.s32.totalorder %s22, 1
      %p81 = por %p79, %p80
      %p82 = scmp.ne.s32.totalorder %s74, %s77
      %p83 = scmp.eq.s32.totalorder %s22, 0
      %p84 = por %p82, %p83
      %p85 = scmp.ne.s32.totalorder %s74, %s77
      %p86 = scmp.eq.s32.totalorder %s27, 1
      %p87 = por %p85, %p86
      %p88 = scmp.ne.s32.totalorder %s77, %s78
      %p89 = scmp.eq.s32.totalorder %s27, 0
      %p90 = por %p88, %p89
      %p91 = scmp.ne.s32.totalorder %s77, %s78
      %p92 = scmp.eq.s32.totalorder %s28, 1
      %p93 = por %p91, %p92
      %p95 = scmp.ne.s32.totalorder %s78, %s94
      %p96 = scmp.eq.s32.totalorder %s28, 0
      %p97 = por %p95, %p96
      %s98 = ssub.s32 %s29, %s41
      %s99 = ssub.s32 %s30, %s37
      %s100 = sor.u32 %s98, %s99
      %p101 = scmp.eq.s32.totalorder %s100, 0
      %s103 = sadd.s32 %s102, 1
      %s104 = scalar_select %p101, %s102, %s103
      %p107 = pneg %p101
      %p108 = scmp.eq.s32.totalorder %s22, 1
      %p109 = por %p107, %p108
      %p110 = scmp.ne.s32.totalorder %s102, %s105
      %p111 = scmp.eq.s32.totalorder %s22, 0
      %p112 = por %p110, %p111
      %p113 = scmp.ne.s32.totalorder %s102, %s105
      %p114 = scmp.eq.s32.totalorder %s27, 1
      %p115 = por %p113, %p114
      %p116 = scmp.ne.s32.totalorder %s105, %s106
      %p117 = scmp.eq.s32.totalorder %s27, 0
      %p118 = por %p116, %p117
      %p119 = scmp.ne.s32.totalorder %s105, %s106
      %p120 = scmp.eq.s32.totalorder %s28, 1
      %p121 = por %p119, %p120
      %p123 = scmp.ne.s32.totalorder %s106, %s122
      %p124 = scmp.eq.s32.totalorder %s28, 0
      %p125 = por %p123, %p124
      %s127 = sadd.s32 %s126, 1
      %p130 = scmp.eq.s32.totalorder %s22, 1
      %p131 = scmp.ne.s32.totalorder %s126, %s128
      %p132 = scmp.eq.s32.totalorder %s22, 0
      %p133 = por %p131, %p132
      %p134 = scmp.ne.s32.totalorder %s126, %s128
      %p135 = scmp.eq.s32.totalorder %s27, 1
      %p136 = por %p134, %p135
      %p137 = scmp.ne.s32.totalorder %s128, %s129
      %p138 = scmp.eq.s32.totalorder %s27, 0
      %p139 = por %p137, %p138
      %p140 = scmp.ne.s32.totalorder %s128, %s129
      %p141 = scmp.eq.s32.totalorder %s28, 1
      %p142 = por %p140, %p141
      %p144 = scmp.ne.s32.totalorder %s129, %s143
      %p145 = scmp.eq.s32.totalorder %s28, 0
      %p146 = por %p144, %p145
      %s148 = sadd.s32 %s147, 1
      %p151 = scmp.eq.s32.totalorder %s22, 1
      %p152 = scmp.ne.s32.totalorder %s147, %s149
      %p153 = scmp.eq.s32.totalorder %s22, 0
      %p154 = por %p152, %p153
      %p155 = scmp.ne.s32.totalorder %s147, %s149
      %p156 = scmp.eq.s32.totalorder %s27, 1
      %p157 = por %p155, %p156
      %p158 = scmp.ne.s32.totalorder %s149, %s150
      %p159 = scmp.eq.s32.totalorder %s27, 0
      %p160 = por %p158, %p159
      %p161 = scmp.ne.s32.totalorder %s149, %s150
      %p162 = scmp.eq.s32.totalorder %s28, 1
      %p163 = por %p161, %p162
      %p165 = scmp.ne.s32.totalorder %s150, %s164
      %p166 = scmp.eq.s32.totalorder %s28, 0
      %p167 = por %p165, %p166
      %s169 = sadd.s32 %s168, 1
      %p172 = scmp.eq.s32.totalorder %s22, 1
      %p173 = scmp.ne.s32.totalorder %s168, %s170
      %p174 = scmp.eq.s32.totalorder %s22, 0
      %p175 = por %p173, %p174
      %p176 = scmp.ne.s32.totalorder %s168, %s170
      %p177 = scmp.eq.s32.totalorder %s27, 1
      %p178 = por %p176, %p177
      %p179 = scmp.ne.s32.totalorder %s170, %s171
      %p180 = scmp.eq.s32.totalorder %s27, 0
      %p181 = por %p179, %p180
      %p182 = scmp.ne.s32.totalorder %s170, %s171
      %p183 = scmp.eq.s32.totalorder %s28, 1
      %p184 = por %p182, %p183
      %p186 = scmp.ne.s32.totalorder %s171, %s185
      %p187 = scmp.eq.s32.totalorder %s28, 0
      %p188 = por %p186, %p187
      %s190 = sadd.s32 %s189, 1
      %p193 = scmp.eq.s32.totalorder %s22, 1
      %p194 = scmp.ne.s32.totalorder %s189, %s191
      %p195 = scmp.eq.s32.totalorder %s22, 0
      %p196 = por %p194, %p195
      %p197 = scmp.ne.s32.totalorder %s189, %s191
      %p198 = scmp.eq.s32.totalorder %s27, 1
      %p199 = por %p197, %p198
      %p200 = scmp.ne.s32.totalorder %s191, %s192
      %p201 = scmp.eq.s32.totalorder %s27, 0
      %p202 = por %p200, %p201
      %p203 = scmp.ne.s32.totalorder %s191, %s192
      %p204 = scmp.eq.s32.totalorder %s28, 1
      %p205 = por %p203, %p204
      %p207 = scmp.ne.s32.totalorder %s192, %s206
      %p208 = scmp.eq.s32.totalorder %s28, 0
      %p209 = por %p207, %p208
      %s211 = sadd.s32 %s210, 1
      %p214 = scmp.eq.s32.totalorder %s22, 1
      %p215 = scmp.ne.s32.totalorder %s210, %s212
      %p216 = scmp.eq.s32.totalorder %s22, 0
      %p217 = por %p215, %p216
      %p218 = scmp.ne.s32.totalorder %s210, %s212
      %p219 = scmp.eq.s32.totalorder %s27, 1
      %p220 = por %p218, %p219
      %p221 = scmp.ne.s32.totalorder %s212, %s213
      %p222 = scmp.eq.s32.totalorder %s27, 0
      %p223 = por %p221, %p222
      %p224 = scmp.ne.s32.totalorder %s212, %s213
      %p225 = scmp.eq.s32.totalorder %s28, 1
      %p226 = por %p224, %p225
      %p228 = scmp.ne.s32.totalorder %s213, %s227
      %p229 = scmp.eq.s32.totalorder %s28, 0
      %p230 = por %p228, %p229
      %s232 = sadd.s32 %s231, 1
      %p235 = scmp.eq.s32.totalorder %s22, 1
      %p236 = scmp.ne.s32.totalorder %s231, %s233
      %p237 = scmp.eq.s32.totalorder %s22, 0
      %p238 = por %p236, %p237
      %p239 = scmp.ne.s32.totalorder %s231, %s233
      %p240 = scmp.eq.s32.totalorder %s27, 1
      %p241 = por %p239, %p240
      %p242 = scmp.ne.s32.totalorder %s233, %s234
      %p243 = scmp.eq.s32.totalorder %s27, 0
      %p244 = por %p242, %p243
      %p245 = scmp.ne.s32.totalorder %s233, %s234
      %p246 = scmp.eq.s32.totalorder %s28, 1
      %p247 = por %p245, %p246
      %p249 = scmp.ne.s32.totalorder %s234, %s248
      %p250 = scmp.eq.s32.totalorder %s28, 0
      %p251 = por %p249, %p250
      %s252 = ssub.s32 %s29, %s41
      %s253 = ssub.s32 %s30, %s37
      %s254 = sor.u32 %s252, %s253
      %p255 = scmp.eq.s32.totalorder %s254, 0
      %s257 = sadd.s32 %s256, 1
      %s258 = scalar_select %p255, %s256, %s257
      %p261 = pneg %p255
      %p262 = scmp.eq.s32.totalorder %s22, 1
      %p263 = por %p261, %p262
      %p264 = scmp.ne.s32.totalorder %s256, %s259
      %p265 = scmp.eq.s32.totalorder %s22, 0
      %p266 = por %p264, %p265
      %p267 = scmp.ne.s32.totalorder %s256, %s259
      %p268 = scmp.eq.s32.totalorder %s27, 1
      %p269 = por %p267, %p268
      %p270 = scmp.ne.s32.totalorder %s259, %s260
      %p271 = scmp.eq.s32.totalorder %s27, 0
      %p272 = por %p270, %p271
      %p273 = scmp.ne.s32.totalorder %s259, %s260
      %p274 = scmp.eq.s32.totalorder %s28, 1
      %p275 = por %p273, %p274
      %p277 = scmp.ne.s32.totalorder %s260, %s276
      %p278 = scmp.eq.s32.totalorder %s28, 0
      %p279 = por %p277, %p278
      %p280 = scmp.le.s32.totalorder 1, %s22
      %p281 = scmp.lt.s32.totalorder %s22, 3
      %p282 = pnand %p280, %p281
      %p283 = pneg %p282
      // Predicated region
      $region9: #{tpu_custom_call.1} parent=5 // pred_check
        _
      $region10: #{tpu_custom_call.1} parent=5 // pred_check_branch
        %285 = sbr.rel (%p282) target = $region12
      $region11: #{tpu_custom_call.1} parent=5 // pred_region
        %s286 = ssub.s32 %s22, 1
        // Predicated region
        $region13: #{tpu_custom_call.1} parent=11 // pred_check
          %p287 = pneg %p139
        $region14: #{tpu_custom_call.1} parent=11 // pred_check_branch
          %289 = sbr.rel (%p287) target = $region16
        $region15: #{tpu_custom_call.1} parent=11 // pred_region
          _
        $region16: #{tpu_custom_call.1} parent=11 // pred_fallthru
          _
        // Predicated region
        $region17: #{tpu_custom_call.1} parent=11 // pred_check
          %p290 = pneg %p160
        $region18: #{tpu_custom_call.1} parent=11 // pred_check_branch
          %292 = sbr.rel (%p290) target = $region20
        $region19: #{tpu_custom_call.1} parent=11 // pred_region
          %s294 = ssub.s32 16, 16
          %295 = vsyncadd [#allocation6], %s294
          %s297 = sshll.u32 [#allocation5], 4
          %s298 = int_to_ptr.vmem [resolvable:$true] %s297
          %300 = dma.hbm_to_vmem [thread:$0]  %s4, 16, %s298, [#allocation6]
        $region20: #{tpu_custom_call.1} parent=11 // pred_fallthru
          _
        // Predicated region
        $region21: #{tpu_custom_call.1} parent=11 // pred_check
          %p301 = pneg %p181
        $region22: #{tpu_custom_call.1} parent=11 // pred_check_branch
          %303 = sbr.rel (%p301) target = $region24
        $region23: #{tpu_custom_call.1} parent=11 // pred_region
          _
        $region24: #{tpu_custom_call.1} parent=11 // pred_fallthru
          _
        // Predicated region
        $region25: #{tpu_custom_call.1} parent=11 // pred_check
          %p304 = pneg %p202
        $region26: #{tpu_custom_call.1} parent=11 // pred_check_branch
          %306 = sbr.rel (%p304) target = $region28
        $region27: #{tpu_custom_call.1} parent=11 // pred_region
          %s308 = ssub.s32 16, 16
          %309 = vsyncadd [#allocation6], %s308
          %s311 = sshll.u32 [#allocation7], 4
          %s312 = int_to_ptr.vmem [resolvable:$true] %s311
          %314 = dma.hbm_to_vmem [thread:$0]  %s6, 16, %s312, [#allocation6]
        $region28: #{tpu_custom_call.1} parent=11 // pred_fallthru
          _
        // Predicated region
        $region29: #{tpu_custom_call.1} parent=11 // pred_check
          %p315 = pneg %p223
        $region30: #{tpu_custom_call.1} parent=11 // pred_check_branch
          %317 = sbr.rel (%p315) target = $region32
        $region31: #{tpu_custom_call.1} parent=11 // pred_region
          _
        $region32: #{tpu_custom_call.1} parent=11 // pred_fallthru
          _
        // Predicated region
        $region33: #{tpu_custom_call.1} parent=11 // pred_check
          %p318 = pneg %p244
        $region34: #{tpu_custom_call.1} parent=11 // pred_check_branch
          %320 = sbr.rel (%p318) target = $region36
        $region35: #{tpu_custom_call.1} parent=11 // pred_region
          _
        $region36: #{tpu_custom_call.1} parent=11 // pred_fallthru
          _
      $region12: #{tpu_custom_call.1} parent=5 // pred_fallthru
        _
      %p321 = scmp.lt.s32.totalorder %s22, 2
      // Predicated region
      $region37: #{tpu_custom_call.1} parent=5 // pred_check
        %p322 = pneg %p321
      $region38: #{tpu_custom_call.1} parent=5 // pred_check_branch
        %324 = sbr.rel (%p322) target = $region40
      $region39: #{tpu_custom_call.1} parent=5 // pred_region
        // Predicated region
        $region41: #{tpu_custom_call.1} parent=39 // pred_check
          %p325 = pneg %p56
        $region42: #{tpu_custom_call.1} parent=39 // pred_check_branch
          %327 = sbr.rel (%p325) target = $region44
        $region43: #{tpu_custom_call.1} parent=39 // pred_region
          %s328 = sand.u32 %s46, 1
          %s329 = scalar_lea.sflag [#allocation3], %s328
          %s330 = sand.u32 %s46, 1
          %s331 = smul.addr %s330, 256
          %s332 = scalar_lea.vmem [#allocation2], %s331
          %s333 = smul.u32 16, %s30
          %s335 = ssub.s32 4096, 4096
          %336 = vsyncadd %s329, %s335
          %s337 = smul.addr %s333, 2
          %s338 = smul.addr %s29, 32
          %s339 = sadd.s32 %s337, %s338
          %s340 = smul.addr %s339, 128
          %s341 = scalar_lea.hbm %s0, %s340
          %s342 = sshll.u32 %s332, 4
          %s343 = int_to_ptr.vmem [resolvable:$true] %s342
          %348 = dma.hbm_to_vmem [thread:$0]  %s341, 4096, %s343, %s329, 128, 128, 8
        $region44: #{tpu_custom_call.1} parent=39 // pred_fallthru
          _
        // Predicated region
        $region45: #{tpu_custom_call.1} parent=39 // pred_check
          %p349 = pneg %p84
        $region46: #{tpu_custom_call.1} parent=39 // pred_check_branch
          %351 = sbr.rel (%p349) target = $region48
        $region47: #{tpu_custom_call.1} parent=39 // pred_region
          %p352 = scmp.lt.s32.totalorder %s29, 1
          %s353 = scalar_select %p352, %s29, 1
          %p354 = scmp.lt.s32.totalorder %s30, 0
          %s355 = scalar_select %p354, %s30, 0
          %s356 = smul.addr %s355, 2
          %s357 = smul.addr %s353, 2
          %s358 = sadd.s32 %s356, %s357
          %s359 = smul.addr %s358, 8
          %s360 = scalar_lea.vmem %s1, %s359
        $region48: #{tpu_custom_call.1} parent=39 // pred_fallthru
          _
        // Predicated region
        $region49: #{tpu_custom_call.1} parent=39 // pred_check
          %p361 = pneg %p112
        $region50: #{tpu_custom_call.1} parent=39 // pred_check_branch
          %363 = sbr.rel (%p361) target = $region52
        $region51: #{tpu_custom_call.1} parent=39 // pred_region
          %p364 = scmp.lt.s32.totalorder %s29, 1
          %s365 = scalar_select %p364, %s29, 1
          %p366 = scmp.lt.s32.totalorder %s30, 0
          %s367 = scalar_select %p366, %s30, 0
          %s368 = smul.addr %s367, 2
          %s369 = smul.addr %s365, 2
          %s370 = sadd.s32 %s368, %s369
          %s371 = smul.addr %s370, 8
          %s372 = scalar_lea.vmem %s2, %s371
        $region52: #{tpu_custom_call.1} parent=39 // pred_fallthru
          _
      $region40: #{tpu_custom_call.1} parent=5 // pred_fallthru
        _
      %p373 = scmp.le.s32.totalorder 1, %s22
      %p374 = scmp.lt.s32.totalorder %s22, 3
      %p375 = pnand %p373, %p374
      %p376 = pneg %p375
      // Predicated region
      $region53: #{tpu_custom_call.1} parent=5 // pred_check
        _
      $region54: #{tpu_custom_call.1} parent=5 // pred_check_branch
        %378 = sbr.rel (%p375) target = $region56
      $region55: #{tpu_custom_call.1} parent=5 // pred_region
        %s379 = ssub.s32 %s22, 1
        %s380 = sand.u32 %s49, 1
        %s381 = scalar_lea.sflag [#allocation3], %s380
        %s382 = sand.u32 %s49, 1
        %s383 = smul.addr %s382, 256
        %s384 = scalar_lea.vmem [#allocation2], %s383
        // Predicated region
        $region57: #{tpu_custom_call.1} parent=55 // pred_check
          %p385 = pneg %p62
        $region58: #{tpu_custom_call.1} parent=55 // pred_check_branch
          %387 = sbr.rel (%p385) target = $region60
        $region59: #{tpu_custom_call.1} parent=55 // pred_region
          %388 = dma.done %s381, 4096
        $region60: #{tpu_custom_call.1} parent=55 // pred_fallthru
          _
        // Predicated region
        $region61: #{tpu_custom_call.1} parent=55 // pred_check
          %p389 = pneg %p160
        $region62: #{tpu_custom_call.1} parent=55 // pred_check_branch
          %391 = sbr.rel (%p389) target = $region64
        $region63: #{tpu_custom_call.1} parent=55 // pred_region
          %392 = dma.done [#allocation6], 16
        $region64: #{tpu_custom_call.1} parent=55 // pred_fallthru
          _
        // Predicated region
        $region65: #{tpu_custom_call.1} parent=55 // pred_check
          %p393 = pneg %p202
        $region66: #{tpu_custom_call.1} parent=55 // pred_check_branch
          %395 = sbr.rel (%p393) target = $region68
        $region67: #{tpu_custom_call.1} parent=55 // pred_region
          %396 = dma.done [#allocation6], 16
        $region68: #{tpu_custom_call.1} parent=55 // pred_fallthru
          _
        %s397 = sand.u32 %s49, 1
        %s398 = scalar_lea.sflag [#allocation3], %s397
        %s399 = sand.u32 %s49, 1
        %s400 = smul.addr %s399, 256
        %s401 = scalar_lea.vmem [#allocation2], %s400
        %p402 = pneg %p62
        %p403 = pneg %p59
        %p404 = scmp.lt.s32.totalorder %s31, 1
        %s405 = scalar_select %p404, %s31, 1
        %p406 = scmp.lt.s32.totalorder %s32, 0
        %s407 = scalar_select %p406, %s32, 0
        %s408 = smul.addr %s407, 2
        %s409 = smul.addr %s405, 2
        %s410 = sadd.s32 %s408, %s409
        %s411 = smul.addr %s410, 8
        %s412 = scalar_lea.vmem %s1, %s411
        %p413 = pneg %p90
        %p414 = pneg %p87
        %p415 = scmp.lt.s32.totalorder %s31, 1
        %s416 = scalar_select %p415, %s31, 1
        %p417 = scmp.lt.s32.totalorder %s32, 0
        %s418 = scalar_select %p417, %s32, 0
        %s419 = smul.addr %s418, 2
        %s420 = smul.addr %s416, 2
        %s421 = sadd.s32 %s419, %s420
        %s422 = smul.addr %s421, 8
        %s423 = scalar_lea.vmem %s2, %s422
        %p424 = pneg %p118
        %p425 = pneg %p115
        %p426 = pneg %p139
        %p427 = pneg %p136
        %p428 = pneg %p160
        %p429 = pneg %p157
        %p430 = pneg %p181
        %p431 = pneg %p178
        %p432 = pneg %p202
        %p433 = pneg %p199
        %p434 = pneg %p223
        %p435 = pneg %p220
        %p436 = pneg %p244
        %p437 = pneg %p241
        %p438 = pneg %p272
        %p439 = pneg %p269
        %s440 = sand.u32 %s259, 1
        %s441 = scalar_lea.sflag [#allocation4], %s440
        %s442 = sand.u32 %s259, 1
        %s443 = smul.addr %s442, 256
        %s444 = scalar_lea.vmem [#allocation8], %s443
        %s445 = smul.u32 16, %s32
        %p446 = scmp.lt.s32.totalorder %s31, 1
        %s447 = scalar_select %p446, %s31, 1
        %p448 = scmp.lt.s32.totalorder %s32, 0
        %s449 = scalar_select %p448, %s32, 0
        %s450 = smul.addr %s449, 2
        %s451 = smul.addr %s447, 2
        %s452 = sadd.s32 %s450, %s451
        %s453 = smul.addr %s452, 8
        %s454 = scalar_lea.vmem %s1, %s453
        %p455 = scmp.lt.s32.totalorder %s31, 1
        %s456 = scalar_select %p455, %s31, 1
        %p457 = scmp.lt.s32.totalorder %s32, 0
        %s458 = scalar_select %p457, %s32, 0
        %s459 = smul.addr %s458, 2
        %s460 = smul.addr %s456, 2
        %s461 = sadd.s32 %s459, %s460
        %s462 = smul.addr %s461, 8
        %s463 = scalar_lea.vmem %s2, %s462
        %s464 = smul.u32 16, %s32
        %v466 = vld [vmem:[%s3] sm:$0xf]
        %v467 = vld [vmem:[%s3 + $0x4] sm:$0xf]
        %v468 = vld [vmem:[%s3 + $0x8] sm:$0xf]
        %v469 = vld [vmem:[%s3 + $0xc] sm:$0xf]
        %v470 = vld [vmem:[#allocation5] sm:$0x1]
        %v471 = vld [vmem:[%s384] sm:$0xff]
        %v472 = vld [vmem:[%s384 + $0x8] sm:$0xff]
        %v473 = vld [vmem:[%s384 + $0x10] sm:$0xff]
        %v474 = vld [vmem:[%s384 + $0x18] sm:$0xff]
        %v475 = vld [vmem:[%s384 + $0x20] sm:$0xff]
        %v476 = vld [vmem:[%s384 + $0x28] sm:$0xff]
        %v477 = vld [vmem:[%s384 + $0x30] sm:$0xff]
        %v478 = vld [vmem:[%s384 + $0x38] sm:$0xff]
        %v479 = vld [vmem:[%s384 + $0x40] sm:$0xff]
        %v480 = vld [vmem:[%s384 + $0x48] sm:$0xff]
        %v481 = vld [vmem:[%s384 + $0x50] sm:$0xff]
        %v482 = vld [vmem:[%s384 + $0x58] sm:$0xff]
        %v483 = vld [vmem:[%s384 + $0x60] sm:$0xff]
        %v484 = vld [vmem:[%s384 + $0x68] sm:$0xff]
        %v485 = vld [vmem:[%s384 + $0x70] sm:$0xff]
        %v486 = vld [vmem:[%s384 + $0x78] sm:$0xff]
        %v487 = vld [vmem:[%s384 + $0x80] sm:$0xff]
        %v488 = vld [vmem:[%s384 + $0x88] sm:$0xff]
        %v489 = vld [vmem:[%s384 + $0x90] sm:$0xff]
        %v490 = vld [vmem:[%s384 + $0x98] sm:$0xff]
        %v491 = vld [vmem:[%s384 + $0xa0] sm:$0xff]
        %v492 = vld [vmem:[%s384 + $0xa8] sm:$0xff]
        %v493 = vld [vmem:[%s384 + $0xb0] sm:$0xff]
        %v494 = vld [vmem:[%s384 + $0xb8] sm:$0xff]
        %v495 = vld [vmem:[%s384 + $0xc0] sm:$0xff]
        %v496 = vld [vmem:[%s384 + $0xc8] sm:$0xff]
        %v497 = vld [vmem:[%s384 + $0xd0] sm:$0xff]
        %v498 = vld [vmem:[%s384 + $0xd8] sm:$0xff]
        %v499 = vld [vmem:[%s384 + $0xe0] sm:$0xff]
        %v500 = vld [vmem:[%s384 + $0xe8] sm:$0xff]
        %v501 = vld [vmem:[%s384 + $0xf0] sm:$0xff]
        %v502 = vld [vmem:[%s384 + $0xf8] sm:$0xff]
        %v503 = vpack.c.bf16 %v472, %v471
        %v504 = vpack.c.bf16 %v474, %v473
        %v505 = vpack.c.bf16 %v476, %v475
        %v506 = vpack.c.bf16 %v478, %v477
        %v507 = vpack.c.bf16 %v480, %v479
        %v508 = vpack.c.bf16 %v482, %v481
        %v509 = vpack.c.bf16 %v484, %v483
        %v510 = vpack.c.bf16 %v486, %v485
        %v511 = vpack.c.bf16 %v488, %v487
        %v512 = vpack.c.bf16 %v490, %v489
        %v513 = vpack.c.bf16 %v492, %v491
        %v514 = vpack.c.bf16 %v494, %v493
        %v515 = vpack.c.bf16 %v496, %v495
        %v516 = vpack.c.bf16 %v498, %v497
        %v517 = vpack.c.bf16 %v500, %v499
        %v518 = vpack.c.bf16 %v502, %v501
        %v520 = vlaneseq
        %v521 = vshrl.u32 %v520, 7
        %v522 = vsub.s32 0, %v521
        %v523 = vrot.slane %v470, %v522
        %v529 = vunpack.c.l.b16 %v466
        %v530 = vunpack.c.l.b16 %v467
        %v531 = vunpack.c.l.b16 %v468
        %v532 = vunpack.c.l.b16 %v469
        %v533 = vpack.c.b16 %v530, %v529
        %v534 = vpack.c.b16 %v532, %v531
        %vm537 = vcmask 261120
        %v539 = vsel %vm537, %v503, 0
        %v542 = vsel %vm537, %v504, 0
        %v545 = vsel %vm537, %v505, 0
        %v548 = vsel %vm537, %v506, 0
        %v551 = vsel %vm537, %v507, 0
        %v554 = vsel %vm537, %v508, 0
        %v557 = vsel %vm537, %v509, 0
        %v560 = vsel %vm537, %v510, 0
        %v563 = vsel %vm537, %v511, 0
        %v566 = vsel %vm537, %v512, 0
        %v569 = vsel %vm537, %v513, 0
        %v572 = vsel %vm537, %v514, 0
        %v575 = vsel %vm537, %v515, 0
        %v578 = vsel %vm537, %v516, 0
        %v581 = vsel %vm537, %v517, 0
        %v584 = vsel %vm537, %v518, 0
        %586 = vmatprep.subr.bf16.mxu0 0
        %587 = vmatpush1.bf16.msra.mxu0 0
        %588 = vmatprep.subr.bf16.mxu0 0
        %589 = vmatpush1.bf16.msra.mxu0 0
        %590 = vmatprep.subr.bf16.mxu0 0
        %591 = vmatpush1.bf16.msra.mxu0 0
        %592 = vmatprep.subr.bf16.mxu0 0
        %593 = vmatpush1.bf16.msra.mxu0 0
        %594 = vmatprep.subr.bf16.mxu0 0
        %595 = vmatpush1.bf16.msra.mxu0 0
        %596 = vmatprep.subr.bf16.mxu0 0
        %597 = vmatpush1.bf16.msra.mxu0 0
        %598 = vmatprep.subr.bf16.mxu0 0
        %599 = vmatpush1.bf16.msra.mxu0 %v534
        %600 = vmatprep.subr.bf16.mxu0 0
        %601 = vmatpush1.bf16.msra.mxu0 %v533
        %602 = vmatprep.subr.bf16.mxu0 0
        %603 = vmatpush2.bf16.msra.mxu0 0
        %604 = vmatprep.subr.bf16.mxu0 0
        %605 = vmatpush2.bf16.msra.mxu0 0
        %606 = vmatprep.subr.bf16.mxu0 0
        %607 = vmatpush2.bf16.msra.mxu0 0
        %608 = vmatprep.subr.bf16.mxu0 0
        %609 = vmatpush2.bf16.msra.mxu0 0
        %610 = vmatprep.subr.bf16.mxu0 0
        %611 = vmatpush2.bf16.msra.mxu0 0
        %612 = vmatprep.subr.bf16.mxu0 0
        %613 = vmatpush2.bf16.msra.mxu0 0
        %614 = vmatprep.subr.bf16.mxu0 0
        %615 = vmatpush2.bf16.msra.mxu0 0
        %616 = vmatprep.subr.bf16.mxu0 0
        %617 = vmatpush2.bf16.msra.mxu0 0
        %618 = vmatprep.mubr.bf16.mxu0 0
        %619 = vmatmul.mubr.bf16.gmra.mxu0 %v539
        %v620 = vpop.f32.mrf.mxu0
        %v621 = vadd.f32 %v523, %v620
        %v622 = vpop.f32.mrf.mxu0
        %v623 = vpop.f32.mrf.mxu0
        %v624 = vadd.f32 %v523, %v623
        %v625 = vpop.f32.mrf.mxu0
        %626 = vmatprep.mubr.bf16.mxu0 0
        %627 = vmatmul.mubr.bf16.gmra.mxu0 %v542
        %v628 = vpop.f32.mrf.mxu0
        %v629 = vadd.f32 %v523, %v628
        %v630 = vpop.f32.mrf.mxu0
        %v631 = vpop.f32.mrf.mxu0
        %v632 = vadd.f32 %v523, %v631
        %v633 = vpop.f32.mrf.mxu0
        %634 = vmatprep.mubr.bf16.mxu0 0
        %635 = vmatmul.mubr.bf16.gmra.mxu0 %v545
        %v636 = vpop.f32.mrf.mxu0
        %v637 = vadd.f32 %v523, %v636
        %v638 = vpop.f32.mrf.mxu0
        %v639 = vpop.f32.mrf.mxu0
        %v640 = vadd.f32 %v523, %v639
        %v641 = vpop.f32.mrf.mxu0
        %642 = vmatprep.mubr.bf16.mxu0 0
        %643 = vmatmul.mubr.bf16.gmra.mxu0 %v548
        %v644 = vpop.f32.mrf.mxu0
        %v645 = vadd.f32 %v523, %v644
        %v646 = vpop.f32.mrf.mxu0
        %v647 = vpop.f32.mrf.mxu0
        %v648 = vadd.f32 %v523, %v647
        %v649 = vpop.f32.mrf.mxu0
        %650 = vmatprep.mubr.bf16.mxu0 0
        %651 = vmatmul.mubr.bf16.gmra.mxu0 %v551
        %v652 = vpop.f32.mrf.mxu0
        %v653 = vadd.f32 %v523, %v652
        %v654 = vpop.f32.mrf.mxu0
        %v655 = vpop.f32.mrf.mxu0
        %v656 = vadd.f32 %v523, %v655
        %v657 = vpop.f32.mrf.mxu0
        %658 = vmatprep.mubr.bf16.mxu0 0
        %659 = vmatmul.mubr.bf16.gmra.mxu0 %v554
        %v660 = vpop.f32.mrf.mxu0
        %v661 = vadd.f32 %v523, %v660
        %v662 = vpop.f32.mrf.mxu0
        %v663 = vpop.f32.mrf.mxu0
        %v664 = vadd.f32 %v523, %v663
        %v665 = vpop.f32.mrf.mxu0
        %666 = vmatprep.mubr.bf16.mxu0 0
        %667 = vmatmul.mubr.bf16.gmra.mxu0 %v557
        %v668 = vpop.f32.mrf.mxu0
        %v669 = vadd.f32 %v523, %v668
        %v670 = vpop.f32.mrf.mxu0
        %v671 = vpop.f32.mrf.mxu0
        %v672 = vadd.f32 %v523, %v671
        %v673 = vpop.f32.mrf.mxu0
        %674 = vmatprep.mubr.bf16.mxu0 0
        %675 = vmatmul.mubr.bf16.gmra.mxu0 %v560
        %v676 = vpop.f32.mrf.mxu0
        %v677 = vadd.f32 %v523, %v676
        %v678 = vpop.f32.mrf.mxu0
        %v679 = vpop.f32.mrf.mxu0
        %v680 = vadd.f32 %v523, %v679
        %v681 = vpop.f32.mrf.mxu0
        %682 = vmatprep.mubr.bf16.mxu0 0
        %683 = vmatmul.mubr.bf16.gmra.mxu0 %v563
        %v684 = vpop.f32.mrf.mxu0
        %v685 = vadd.f32 %v523, %v684
        %v686 = vpop.f32.mrf.mxu0
        %v687 = vpop.f32.mrf.mxu0
        %v688 = vadd.f32 %v523, %v687
        %v689 = vpop.f32.mrf.mxu0
        %690 = vmatprep.mubr.bf16.mxu0 0
        %691 = vmatmul.mubr.bf16.gmra.mxu0 %v566
        %v692 = vpop.f32.mrf.mxu0
        %v693 = vadd.f32 %v523, %v692
        %v694 = vpop.f32.mrf.mxu0
        %v695 = vpop.f32.mrf.mxu0
        %v696 = vadd.f32 %v523, %v695
        %v697 = vpop.f32.mrf.mxu0
        %698 = vmatprep.mubr.bf16.mxu0 0
        %699 = vmatmul.mubr.bf16.gmra.mxu0 %v569
        %v700 = vpop.f32.mrf.mxu0
        %v701 = vadd.f32 %v523, %v700
        %v702 = vpop.f32.mrf.mxu0
        %v703 = vpop.f32.mrf.mxu0
        %v704 = vadd.f32 %v523, %v703
        %v705 = vpop.f32.mrf.mxu0
        %706 = vmatprep.mubr.bf16.mxu0 0
        %707 = vmatmul.mubr.bf16.gmra.mxu0 %v572
        %v708 = vpop.f32.mrf.mxu0
        %v709 = vadd.f32 %v523, %v708
        %v710 = vpop.f32.mrf.mxu0
        %v711 = vpop.f32.mrf.mxu0
        %v712 = vadd.f32 %v523, %v711
        %v713 = vpop.f32.mrf.mxu0
        %714 = vmatprep.mubr.bf16.mxu0 0
        %715 = vmatmul.mubr.bf16.gmra.mxu0 %v575
        %v716 = vpop.f32.mrf.mxu0
        %v717 = vadd.f32 %v523, %v716
        %v718 = vpop.f32.mrf.mxu0
        %v719 = vpop.f32.mrf.mxu0
        %v720 = vadd.f32 %v523, %v719
        %v721 = vpop.f32.mrf.mxu0
        %722 = vmatprep.mubr.bf16.mxu0 0
        %723 = vmatmul.mubr.bf16.gmra.mxu0 %v578
        %v724 = vpop.f32.mrf.mxu0
        %v725 = vadd.f32 %v523, %v724
        %v726 = vpop.f32.mrf.mxu0
        %v727 = vpop.f32.mrf.mxu0
        %v728 = vadd.f32 %v523, %v727
        %v729 = vpop.f32.mrf.mxu0
        %730 = vmatprep.mubr.bf16.mxu0 0
        %731 = vmatmul.mubr.bf16.gmra.mxu0 %v581
        %v732 = vpop.f32.mrf.mxu0
        %v733 = vadd.f32 %v523, %v732
        %v734 = vpop.f32.mrf.mxu0
        %v735 = vpop.f32.mrf.mxu0
        %v736 = vadd.f32 %v523, %v735
        %v737 = vpop.f32.mrf.mxu0
        %738 = vmatprep.mubr.bf16.mxu0 0
        %739 = vmatmul.mubr.bf16.gmra.mxu0 %v584
        %v740 = vpop.f32.mrf.mxu0
        %v741 = vadd.f32 %v523, %v740
        %v742 = vpop.f32.mrf.mxu0
        %v743 = vpop.f32.mrf.mxu0
        %v744 = vadd.f32 %v523, %v743
        %v745 = vpop.f32.mrf.mxu0
        %746 = vdwg.mxu0
        %v747 = vmax.f32 %v621, 0.0
        %v748 = vmax.f32 %v624, 0.0
        %v749 = vmax.f32 %v629, 0.0
        %v750 = vmax.f32 %v632, 0.0
        %v751 = vmax.f32 %v637, 0.0
        %v752 = vmax.f32 %v640, 0.0
        %v753 = vmax.f32 %v645, 0.0
        %v754 = vmax.f32 %v648, 0.0
        %v755 = vmax.f32 %v653, 0.0
        %v756 = vmax.f32 %v656, 0.0
        %v757 = vmax.f32 %v661, 0.0
        %v758 = vmax.f32 %v664, 0.0
        %v759 = vmax.f32 %v669, 0.0
        %v760 = vmax.f32 %v672, 0.0
        %v761 = vmax.f32 %v677, 0.0
        %v762 = vmax.f32 %v680, 0.0
        %v763 = vmax.f32 %v685, 0.0
        %v764 = vmax.f32 %v688, 0.0
        %v765 = vmax.f32 %v693, 0.0
        %v766 = vmax.f32 %v696, 0.0
        %v767 = vmax.f32 %v701, 0.0
        %v768 = vmax.f32 %v704, 0.0
        %v769 = vmax.f32 %v709, 0.0
        %v770 = vmax.f32 %v712, 0.0
        %v771 = vmax.f32 %v717, 0.0
        %v772 = vmax.f32 %v720, 0.0
        %v773 = vmax.f32 %v725, 0.0
        %v774 = vmax.f32 %v728, 0.0
        %v775 = vmax.f32 %v733, 0.0
        %v776 = vmax.f32 %v736, 0.0
        %v777 = vmax.f32 %v741, 0.0
        %v778 = vmax.f32 %v744, 0.0
        %v779 = vpack.c.bf16 %v748, %v747
        %v780 = vpack.c.bf16 %v750, %v749
        %v781 = vpack.c.bf16 %v752, %v751
        %v782 = vpack.c.bf16 %v754, %v753
        %v783 = vpack.c.bf16 %v756, %v755
        %v784 = vpack.c.bf16 %v758, %v757
        %v785 = vpack.c.bf16 %v760, %v759
        %v786 = vpack.c.bf16 %v762, %v761
        %v787 = vpack.c.bf16 %v764, %v763
        %v788 = vpack.c.bf16 %v766, %v765
        %v789 = vpack.c.bf16 %v768, %v767
        %v790 = vpack.c.bf16 %v770, %v769
        %v791 = vpack.c.bf16 %v772, %v771
        %v792 = vpack.c.bf16 %v774, %v773
        %v793 = vpack.c.bf16 %v776, %v775
        %v794 = vpack.c.bf16 %v778, %v777
        %v795 = vld [vmem:[%s454] sm:$0xff]
        %v796 = vld [vmem:[%s454 + $0x8] sm:$0xff]
        %v797 = vpack.c.bf16 %v796, %v795
        %v799 = vsel %vm537, %v797, 0
        %801 = vmatprep.subr.bf16.mxu0 0
        %802 = vmatpush1.bf16.msra.mxu0 0
        %803 = vmatprep.subr.bf16.mxu0 0
        %804 = vmatpush1.bf16.msra.mxu0 0
        %805 = vmatprep.subr.bf16.mxu0 0
        %806 = vmatpush1.bf16.msra.mxu0 0
        %807 = vmatprep.subr.bf16.mxu0 0
        %808 = vmatpush1.bf16.msra.mxu0 0
        %809 = vmatprep.subr.bf16.mxu0 0
        %810 = vmatpush1.bf16.msra.mxu0 0
        %811 = vmatprep.subr.bf16.mxu0 0
        %812 = vmatpush1.bf16.msra.mxu0 0
        %813 = vmatprep.subr.bf16.mxu0 0
        %814 = vmatpush1.bf16.msra.mxu0 %v534
        %815 = vmatprep.subr.bf16.mxu0 0
        %816 = vmatpush1.bf16.msra.mxu0 %v533
        %817 = vmatprep.subr.bf16.mxu0 0
        %818 = vmatpush2.bf16.msra.mxu0 0
        %819 = vmatprep.subr.bf16.mxu0 0
        %820 = vmatpush2.bf16.msra.mxu0 0
        %821 = vmatprep.subr.bf16.mxu0 0
        %822 = vmatpush2.bf16.msra.mxu0 0
        %823 = vmatprep.subr.bf16.mxu0 0
        %824 = vmatpush2.bf16.msra.mxu0 0
        %825 = vmatprep.subr.bf16.mxu0 0
        %826 = vmatpush2.bf16.msra.mxu0 0
        %827 = vmatprep.subr.bf16.mxu0 0
        %828 = vmatpush2.bf16.msra.mxu0 0
        %829 = vmatprep.subr.bf16.mxu0 0
        %830 = vmatpush2.bf16.msra.mxu0 0
        %831 = vmatprep.subr.bf16.mxu0 0
        %832 = vmatpush2.bf16.msra.mxu0 0
        %833 = vmatprep.mubr.bf16.mxu0 0
        %834 = vmatmul.mubr.bf16.gmra.mxu0 %v799
        %v835 = vpop.f32.mrf.mxu0
        %v836 = vadd.f32 %v523, %v835
        %v837 = vpop.f32.mrf.mxu0
        %v838 = vpop.f32.mrf.mxu0
        %v839 = vadd.f32 %v523, %v838
        %v840 = vpop.f32.mrf.mxu0
        %841 = vdwg.mxu0
        %v842 = vmax.f32 %v836, 0.0
        %v843 = vmax.f32 %v839, 0.0
        %v844 = vpack.c.bf16 %v843, %v842
        %v845 = vld [vmem:[%s463] sm:$0xff]
        %v846 = vld [vmem:[%s463 + $0x8] sm:$0xff]
        %v847 = vpack.c.bf16 %v846, %v845
        %v849 = vsel %vm537, %v847, 0
        %851 = vmatprep.subr.bf16.mxu0 0
        %852 = vmatpush1.bf16.msra.mxu0 0
        %853 = vmatprep.subr.bf16.mxu0 0
        %854 = vmatpush1.bf16.msra.mxu0 0
        %855 = vmatprep.subr.bf16.mxu0 0
        %856 = vmatpush1.bf16.msra.mxu0 0
        %857 = vmatprep.subr.bf16.mxu0 0
        %858 = vmatpush1.bf16.msra.mxu0 0
        %859 = vmatprep.subr.bf16.mxu0 0
        %860 = vmatpush1.bf16.msra.mxu0 0
        %861 = vmatprep.subr.bf16.mxu0 0
        %862 = vmatpush1.bf16.msra.mxu0 0
        %863 = vmatprep.subr.bf16.mxu0 0
        %864 = vmatpush1.bf16.msra.mxu0 %v534
        %865 = vmatprep.subr.bf16.mxu0 0
        %866 = vmatpush1.bf16.msra.mxu0 %v533
        %867 = vmatprep.subr.bf16.mxu0 0
        %868 = vmatpush2.bf16.msra.mxu0 0
        %869 = vmatprep.subr.bf16.mxu0 0
        %870 = vmatpush2.bf16.msra.mxu0 0
        %871 = vmatprep.subr.bf16.mxu0 0
        %872 = vmatpush2.bf16.msra.mxu0 0
        %873 = vmatprep.subr.bf16.mxu0 0
        %874 = vmatpush2.bf16.msra.mxu0 0
        %875 = vmatprep.subr.bf16.mxu0 0
        %876 = vmatpush2.bf16.msra.mxu0 0
        %877 = vmatprep.subr.bf16.mxu0 0
        %878 = vmatpush2.bf16.msra.mxu0 0
        %879 = vmatprep.subr.bf16.mxu0 0
        %880 = vmatpush2.bf16.msra.mxu0 0
        %881 = vmatprep.subr.bf16.mxu0 0
        %882 = vmatpush2.bf16.msra.mxu0 0
        %883 = vmatprep.mubr.bf16.mxu0 0
        %884 = vmatmul.mubr.bf16.gmra.mxu0 %v849
        %v885 = vpop.f32.mrf.mxu0
        %v886 = vadd.f32 %v523, %v885
        %v887 = vpop.f32.mrf.mxu0
        %v888 = vpop.f32.mrf.mxu0
        %v889 = vadd.f32 %v523, %v888
        %v890 = vpop.f32.mrf.mxu0
        %891 = vdwg.mxu0
        %v892 = vmax.f32 %v886, 0.0
        %v893 = vmax.f32 %v889, 0.0
        %v894 = vpack.c.bf16 %v893, %v892
        %v896 = vshrl.u32 %v844, 16
        %v898 = vrot.slane %v896, 7
        %v899 = vshll.u32 %v844, 16
        %v901 = vor.u32 %v898, %v899
        %v903 = vshrl.u32 %v779, 16
        %v905 = vrot.slane %v903, 7
        %v906 = vshll.u32 %v779, 16
        %v908 = vor.u32 %v905, %v906
        %v910 = vshrl.u32 %v780, 16
        %v912 = vrot.slane %v910, 7
        %v913 = vshll.u32 %v780, 16
        %v915 = vor.u32 %v912, %v913
        %v917 = vshrl.u32 %v781, 16
        %v919 = vrot.slane %v917, 7
        %v920 = vshll.u32 %v781, 16
        %v922 = vor.u32 %v919, %v920
        %v924 = vshrl.u32 %v782, 16
        %v926 = vrot.slane %v924, 7
        %v927 = vshll.u32 %v782, 16
        %v929 = vor.u32 %v926, %v927
        %v931 = vshrl.u32 %v783, 16
        %v933 = vrot.slane %v931, 7
        %v934 = vshll.u32 %v783, 16
        %v936 = vor.u32 %v933, %v934
        %v938 = vshrl.u32 %v784, 16
        %v940 = vrot.slane %v938, 7
        %v941 = vshll.u32 %v784, 16
        %v943 = vor.u32 %v940, %v941
        %v945 = vshrl.u32 %v785, 16
        %v947 = vrot.slane %v945, 7
        %v948 = vshll.u32 %v785, 16
        %v950 = vor.u32 %v947, %v948
        %v952 = vshrl.u32 %v786, 16
        %v954 = vrot.slane %v952, 7
        %v955 = vshll.u32 %v786, 16
        %v957 = vor.u32 %v954, %v955
        %v959 = vshrl.u32 %v787, 16
        %v961 = vrot.slane %v959, 7
        %v962 = vshll.u32 %v787, 16
        %v964 = vor.u32 %v961, %v962
        %v966 = vshrl.u32 %v788, 16
        %v968 = vrot.slane %v966, 7
        %v969 = vshll.u32 %v788, 16
        %v971 = vor.u32 %v968, %v969
        %v973 = vshrl.u32 %v789, 16
        %v975 = vrot.slane %v973, 7
        %v976 = vshll.u32 %v789, 16
        %v978 = vor.u32 %v975, %v976
        %v980 = vshrl.u32 %v790, 16
        %v982 = vrot.slane %v980, 7
        %v983 = vshll.u32 %v790, 16
        %v985 = vor.u32 %v982, %v983
        %v987 = vshrl.u32 %v791, 16
        %v989 = vrot.slane %v987, 7
        %v990 = vshll.u32 %v791, 16
        %v992 = vor.u32 %v989, %v990
        %v994 = vshrl.u32 %v792, 16
        %v996 = vrot.slane %v994, 7
        %v997 = vshll.u32 %v792, 16
        %v999 = vor.u32 %v996, %v997
        %v1001 = vshrl.u32 %v793, 16
        %v1003 = vrot.slane %v1001, 7
        %v1004 = vshll.u32 %v793, 16
        %v1006 = vor.u32 %v1003, %v1004
        %v1008 = vshrl.u32 %v794, 16
        %v1010 = vrot.slane %v1008, 7
        %v1011 = vshll.u32 %v794, 16
        %v1013 = vor.u32 %v1010, %v1011
        %v1015 = vshrl.u32 %v894, 16
        %v1017 = vrot.slane %v1015, 7
        %v1018 = vshll.u32 %v894, 16
        %v1020 = vor.u32 %v1017, %v1018
        %vm1057 = vcmask 1040384
        %vm1058 = vsmask.f32 256
        %vm1059 = vmand %vm1057, %vm1058
        %v1060 = vsel %vm1059, 0, %v901
        %v1061 = vsel %vm1059, 0, %v908
        %v1062 = vsel %vm1059, 0, %v915
        %v1063 = vsel %vm1059, 0, %v922
        %v1064 = vsel %vm1059, 0, %v929
        %v1065 = vsel %vm1059, 0, %v936
        %v1066 = vsel %vm1059, 0, %v943
        %v1067 = vsel %vm1059, 0, %v950
        %v1068 = vsel %vm1059, 0, %v957
        %v1069 = vsel %vm1059, 0, %v964
        %v1070 = vsel %vm1059, 0, %v971
        %v1071 = vsel %vm1059, 0, %v978
        %v1072 = vsel %vm1059, 0, %v985
        %v1073 = vsel %vm1059, 0, %v992
        %v1074 = vsel %vm1059, 0, %v999
        %v1075 = vsel %vm1059, 0, %v1006
        %v1076 = vsel %vm1059, 0, %v1013
        %v1077 = vsel %vm1059, 0, %v1020
        %v1078 = vsel %vm1059, %v898, 0
        %v1079 = vsel %vm1059, %v905, 0
        %v1080 = vsel %vm1059, %v912, 0
        %v1081 = vsel %vm1059, %v919, 0
        %v1082 = vsel %vm1059, %v926, 0
        %v1083 = vsel %vm1059, %v933, 0
        %v1084 = vsel %vm1059, %v940, 0
        %v1085 = vsel %vm1059, %v947, 0
        %v1086 = vsel %vm1059, %v954, 0
        %v1087 = vsel %vm1059, %v961, 0
        %v1088 = vsel %vm1059, %v968, 0
        %v1089 = vsel %vm1059, %v975, 0
        %v1090 = vsel %vm1059, %v982, 0
        %v1091 = vsel %vm1059, %v989, 0
        %v1092 = vsel %vm1059, %v996, 0
        %v1093 = vsel %vm1059, %v1003, 0
        %v1094 = vsel %vm1059, %v1010, 0
        %v1095 = vsel %vm1059, %v1017, 0
        %vm1096 = vsmask.f32 7424
        %v1098 = vshrl.u32 %v1060, 16
        %v1100 = vshll.u32 %v1060, 16
        %v1102 = vrot.slane %v1100, 1
        %v1103 = vor.u32 %v1098, %v1102
        %v1105 = vshll.u32 %v1078, 16
        %v1107 = vrot.slane %v1105, 1
        %v1108 = vsel %vm1096, %v1103, %v1107
        %v1110 = vshrl.u32 %v1061, 16
        %v1112 = vshll.u32 %v1061, 16
        %v1114 = vrot.slane %v1112, 1
        %v1115 = vor.u32 %v1110, %v1114
        %v1117 = vshll.u32 %v1079, 16
        %v1119 = vrot.slane %v1117, 1
        %v1120 = vsel %vm1096, %v1115, %v1119
        %v1122 = vshrl.u32 %v1062, 16
        %v1124 = vshll.u32 %v1062, 16
        %v1126 = vrot.slane %v1124, 1
        %v1127 = vor.u32 %v1122, %v1126
        %v1129 = vshll.u32 %v1080, 16
        %v1131 = vrot.slane %v1129, 1
        %v1132 = vsel %vm1096, %v1127, %v1131
        %v1134 = vshrl.u32 %v1063, 16
        %v1136 = vshll.u32 %v1063, 16
        %v1138 = vrot.slane %v1136, 1
        %v1139 = vor.u32 %v1134, %v1138
        %v1141 = vshll.u32 %v1081, 16
        %v1143 = vrot.slane %v1141, 1
        %v1144 = vsel %vm1096, %v1139, %v1143
        %v1146 = vshrl.u32 %v1064, 16
        %v1148 = vshll.u32 %v1064, 16
        %v1150 = vrot.slane %v1148, 1
        %v1151 = vor.u32 %v1146, %v1150
        %v1153 = vshll.u32 %v1082, 16
        %v1155 = vrot.slane %v1153, 1
        %v1156 = vsel %vm1096, %v1151, %v1155
        %v1158 = vshrl.u32 %v1065, 16
        %v1160 = vshll.u32 %v1065, 16
        %v1162 = vrot.slane %v1160, 1
        %v1163 = vor.u32 %v1158, %v1162
        %v1165 = vshll.u32 %v1083, 16
        %v1167 = vrot.slane %v1165, 1
        %v1168 = vsel %vm1096, %v1163, %v1167
        %v1170 = vshrl.u32 %v1066, 16
        %v1172 = vshll.u32 %v1066, 16
        %v1174 = vrot.slane %v1172, 1
        %v1175 = vor.u32 %v1170, %v1174
        %v1177 = vshll.u32 %v1084, 16
        %v1179 = vrot.slane %v1177, 1
        %v1180 = vsel %vm1096, %v1175, %v1179
        %v1182 = vshrl.u32 %v1067, 16
        %v1184 = vshll.u32 %v1067, 16
        %v1186 = vrot.slane %v1184, 1
        %v1187 = vor.u32 %v1182, %v1186
        %v1189 = vshll.u32 %v1085, 16
        %v1191 = vrot.slane %v1189, 1
        %v1192 = vsel %vm1096, %v1187, %v1191
        %v1194 = vshrl.u32 %v1068, 16
        %v1196 = vshll.u32 %v1068, 16
        %v1198 = vrot.slane %v1196, 1
        %v1199 = vor.u32 %v1194, %v1198
        %v1201 = vshll.u32 %v1086, 16
        %v1203 = vrot.slane %v1201, 1
        %v1204 = vsel %vm1096, %v1199, %v1203
        %v1206 = vshrl.u32 %v1069, 16
        %v1208 = vshll.u32 %v1069, 16
        %v1210 = vrot.slane %v1208, 1
        %v1211 = vor.u32 %v1206, %v1210
        %v1213 = vshll.u32 %v1087, 16
        %v1215 = vrot.slane %v1213, 1
        %v1216 = vsel %vm1096, %v1211, %v1215
        %v1218 = vshrl.u32 %v1070, 16
        %v1220 = vshll.u32 %v1070, 16
        %v1222 = vrot.slane %v1220, 1
        %v1223 = vor.u32 %v1218, %v1222
        %v1225 = vshll.u32 %v1088, 16
        %v1227 = vrot.slane %v1225, 1
        %v1228 = vsel %vm1096, %v1223, %v1227
        %v1230 = vshrl.u32 %v1071, 16
        %v1232 = vshll.u32 %v1071, 16
        %v1234 = vrot.slane %v1232, 1
        %v1235 = vor.u32 %v1230, %v1234
        %v1237 = vshll.u32 %v1089, 16
        %v1239 = vrot.slane %v1237, 1
        %v1240 = vsel %vm1096, %v1235, %v1239
        %v1242 = vshrl.u32 %v1072, 16
        %v1244 = vshll.u32 %v1072, 16
        %v1246 = vrot.slane %v1244, 1
        %v1247 = vor.u32 %v1242, %v1246
        %v1249 = vshll.u32 %v1090, 16
        %v1251 = vrot.slane %v1249, 1
        %v1252 = vsel %vm1096, %v1247, %v1251
        %v1254 = vshrl.u32 %v1073, 16
        %v1256 = vshll.u32 %v1073, 16
        %v1258 = vrot.slane %v1256, 1
        %v1259 = vor.u32 %v1254, %v1258
        %v1261 = vshll.u32 %v1091, 16
        %v1263 = vrot.slane %v1261, 1
        %v1264 = vsel %vm1096, %v1259, %v1263
        %v1266 = vshrl.u32 %v1074, 16
        %v1268 = vshll.u32 %v1074, 16
        %v1270 = vrot.slane %v1268, 1
        %v1271 = vor.u32 %v1266, %v1270
        %v1273 = vshll.u32 %v1092, 16
        %v1275 = vrot.slane %v1273, 1
        %v1276 = vsel %vm1096, %v1271, %v1275
        %v1278 = vshrl.u32 %v1075, 16
        %v1280 = vshll.u32 %v1075, 16
        %v1282 = vrot.slane %v1280, 1
        %v1283 = vor.u32 %v1278, %v1282
        %v1285 = vshll.u32 %v1093, 16
        %v1287 = vrot.slane %v1285, 1
        %v1288 = vsel %vm1096, %v1283, %v1287
        %1289 = vrot.lane.b32.xlu0 %v1108, 8
        %v1290 = vpop.permute.xlu0 %1289
        %1291 = vrot.lane.b32.xlu0 %v1120, 8
        %v1292 = vpop.permute.xlu0 %1291
        %1293 = vrot.lane.b32.xlu0 %v1132, 8
        %v1294 = vpop.permute.xlu0 %1293
        %1295 = vrot.lane.b32.xlu0 %v1144, 8
        %v1296 = vpop.permute.xlu0 %1295
        %1297 = vrot.lane.b32.xlu0 %v1156, 8
        %v1298 = vpop.permute.xlu0 %1297
        %1299 = vrot.lane.b32.xlu0 %v1168, 8
        %v1300 = vpop.permute.xlu0 %1299
        %1301 = vrot.lane.b32.xlu0 %v1180, 8
        %v1302 = vpop.permute.xlu0 %1301
        %1303 = vrot.lane.b32.xlu0 %v1192, 8
        %v1304 = vpop.permute.xlu0 %1303
        %1305 = vrot.lane.b32.xlu0 %v1204, 8
        %v1306 = vpop.permute.xlu0 %1305
        %1307 = vrot.lane.b32.xlu0 %v1216, 8
        %v1308 = vpop.permute.xlu0 %1307
        %1309 = vrot.lane.b32.xlu0 %v1228, 8
        %v1310 = vpop.permute.xlu0 %1309
        %1311 = vrot.lane.b32.xlu0 %v1240, 8
        %v1312 = vpop.permute.xlu0 %1311
        %1313 = vrot.lane.b32.xlu0 %v1252, 8
        %v1314 = vpop.permute.xlu0 %1313
        %1315 = vrot.lane.b32.xlu0 %v1264, 8
        %v1316 = vpop.permute.xlu0 %1315
        %1317 = vrot.lane.b32.xlu0 %v1276, 8
        %v1318 = vpop.permute.xlu0 %1317
        %1319 = vrot.lane.b32.xlu0 %v1288, 8
        %v1320 = vpop.permute.xlu0 %1319
        %vm1353 = vcmask 1046528
        %v1354 = vrot.slane %v1060, 1
        %v1355 = vrot.slane %v1078, 1
        %v1356 = vsel %vm1353, %v1354, %v1355
        %v1357 = vrot.slane %v1061, 1
        %v1358 = vrot.slane %v1079, 1
        %v1359 = vsel %vm1353, %v1357, %v1358
        %v1360 = vrot.slane %v1062, 1
        %v1361 = vrot.slane %v1080, 1
        %v1362 = vsel %vm1353, %v1360, %v1361
        %v1363 = vrot.slane %v1063, 1
        %v1364 = vrot.slane %v1081, 1
        %v1365 = vsel %vm1353, %v1363, %v1364
        %v1366 = vrot.slane %v1064, 1
        %v1367 = vrot.slane %v1082, 1
        %v1368 = vsel %vm1353, %v1366, %v1367
        %v1369 = vrot.slane %v1065, 1
        %v1370 = vrot.slane %v1083, 1
        %v1371 = vsel %vm1353, %v1369, %v1370
        %v1372 = vrot.slane %v1066, 1
        %v1373 = vrot.slane %v1084, 1
        %v1374 = vsel %vm1353, %v1372, %v1373
        %v1375 = vrot.slane %v1067, 1
        %v1376 = vrot.slane %v1085, 1
        %v1377 = vsel %vm1353, %v1375, %v1376
        %v1378 = vrot.slane %v1068, 1
        %v1379 = vrot.slane %v1086, 1
        %v1380 = vsel %vm1353, %v1378, %v1379
        %v1381 = vrot.slane %v1069, 1
        %v1382 = vrot.slane %v1087, 1
        %v1383 = vsel %vm1353, %v1381, %v1382
        %v1384 = vrot.slane %v1070, 1
        %v1385 = vrot.slane %v1088, 1
        %v1386 = vsel %vm1353, %v1384, %v1385
        %v1387 = vrot.slane %v1071, 1
        %v1388 = vrot.slane %v1089, 1
        %v1389 = vsel %vm1353, %v1387, %v1388
        %v1390 = vrot.slane %v1072, 1
        %v1391 = vrot.slane %v1090, 1
        %v1392 = vsel %vm1353, %v1390, %v1391
        %v1393 = vrot.slane %v1073, 1
        %v1394 = vrot.slane %v1091, 1
        %v1395 = vsel %vm1353, %v1393, %v1394
        %v1396 = vrot.slane %v1074, 1
        %v1397 = vrot.slane %v1092, 1
        %v1398 = vsel %vm1353, %v1396, %v1397
        %v1399 = vrot.slane %v1075, 1
        %v1400 = vrot.slane %v1093, 1
        %v1401 = vsel %vm1353, %v1399, %v1400
        %1402 = vrot.lane.b32.xlu0 %v1356, 16
        %v1403 = vpop.permute.xlu0 %1402
        %1404 = vrot.lane.b32.xlu0 %v1359, 16
        %v1405 = vpop.permute.xlu0 %1404
        %1406 = vrot.lane.b32.xlu0 %v1362, 16
        %v1407 = vpop.permute.xlu0 %1406
        %1408 = vrot.lane.b32.xlu0 %v1365, 16
        %v1409 = vpop.permute.xlu0 %1408
        %1410 = vrot.lane.b32.xlu0 %v1368, 16
        %v1411 = vpop.permute.xlu0 %1410
        %1412 = vrot.lane.b32.xlu0 %v1371, 16
        %v1413 = vpop.permute.xlu0 %1412
        %1414 = vrot.lane.b32.xlu0 %v1374, 16
        %v1415 = vpop.permute.xlu0 %1414
        %1416 = vrot.lane.b32.xlu0 %v1377, 16
        %v1417 = vpop.permute.xlu0 %1416
        %1418 = vrot.lane.b32.xlu0 %v1380, 16
        %v1419 = vpop.permute.xlu0 %1418
        %1420 = vrot.lane.b32.xlu0 %v1383, 16
        %v1421 = vpop.permute.xlu0 %1420
        %1422 = vrot.lane.b32.xlu0 %v1386, 16
        %v1423 = vpop.permute.xlu0 %1422
        %1424 = vrot.lane.b32.xlu0 %v1389, 16
        %v1425 = vpop.permute.xlu0 %1424
        %1426 = vrot.lane.b32.xlu0 %v1392, 16
        %v1427 = vpop.permute.xlu0 %1426
        %1428 = vrot.lane.b32.xlu0 %v1395, 16
        %v1429 = vpop.permute.xlu0 %1428
        %1430 = vrot.lane.b32.xlu0 %v1398, 16
        %v1431 = vpop.permute.xlu0 %1430
        %1432 = vrot.lane.b32.xlu0 %v1401, 16
        %v1433 = vpop.permute.xlu0 %1432
        %vm1434 = vcmask 64512
        %v1436 = vsel %vm1434, %v1060, %v1290
        %v1438 = vsel %vm1434, %v1061, %v1292
        %v1440 = vsel %vm1434, %v1062, %v1294
        %v1442 = vsel %vm1434, %v1063, %v1296
        %v1444 = vsel %vm1434, %v1064, %v1298
        %v1446 = vsel %vm1434, %v1065, %v1300
        %v1448 = vsel %vm1434, %v1066, %v1302
        %v1450 = vsel %vm1434, %v1067, %v1304
        %v1452 = vsel %vm1434, %v1068, %v1306
        %v1454 = vsel %vm1434, %v1069, %v1308
        %v1456 = vsel %vm1434, %v1070, %v1310
        %v1458 = vsel %vm1434, %v1071, %v1312
        %v1460 = vsel %vm1434, %v1072, %v1314
        %v1462 = vsel %vm1434, %v1073, %v1316
        %v1464 = vsel %vm1434, %v1074, %v1318
        %v1466 = vsel %vm1434, %v1075, %v1320
        %vm1467 = vcmask 130048
        %v1469 = vsel %vm1467, %v1436, %v1403
        %v1471 = vsel %vm1467, %v1438, %v1405
        %v1473 = vsel %vm1467, %v1440, %v1407
        %v1475 = vsel %vm1467, %v1442, %v1409
        %v1477 = vsel %vm1467, %v1444, %v1411
        %v1479 = vsel %vm1467, %v1446, %v1413
        %v1481 = vsel %vm1467, %v1448, %v1415
        %v1483 = vsel %vm1467, %v1450, %v1417
        %v1485 = vsel %vm1467, %v1452, %v1419
        %v1487 = vsel %vm1467, %v1454, %v1421
        %v1489 = vsel %vm1467, %v1456, %v1423
        %v1491 = vsel %vm1467, %v1458, %v1425
        %v1493 = vsel %vm1467, %v1460, %v1427
        %v1495 = vsel %vm1467, %v1462, %v1429
        %v1497 = vsel %vm1467, %v1464, %v1431
        %v1499 = vsel %vm1467, %v1466, %v1433
        %v1500 = vld [vmem:[%s5] sm:$0xf]
        %v1501 = vld [vmem:[%s5 + $0x4] sm:$0xf]
        %v1502 = vld [vmem:[%s5 + $0x8] sm:$0xf]
        %v1504 = vshrl.u32 %v1076, 16
        %v1506 = vshll.u32 %v1076, 16
        %v1508 = vrot.slane %v1506, 1
        %v1509 = vor.u32 %v1504, %v1508
        %v1511 = vshll.u32 %v1094, 16
        %v1513 = vrot.slane %v1511, 1
        %v1514 = vsel %vm1096, %v1509, %v1513
        %1515 = vrot.lane.b32.xlu0 %v1514, 8
        %v1516 = vpop.permute.xlu0 %1515
        %v1519 = vrot.slane %v1076, 1
        %v1520 = vrot.slane %v1094, 1
        %v1521 = vsel %vm1353, %v1519, %v1520
        %1522 = vrot.lane.b32.xlu0 %v1521, 16
        %v1523 = vpop.permute.xlu0 %1522
        %v1525 = vsel %vm1434, %v1076, %v1516
        %v1527 = vsel %vm1467, %v1525, %v1523
        %s1528 = scalar_lea.vmem %s5, 12
        %v1529 = vld [vmem:[%s1528] sm:$0xf]
        %v1530 = vld [vmem:[%s1528 + $0x4] sm:$0xf]
        %v1531 = vld [vmem:[%s1528 + $0x8] sm:$0xf]
        %v1535 = vunpack.c.l.b16 %v1529
        %v1536 = vunpack.c.l.b16 %v1530
        %v1537 = vunpack.c.l.b16 %v1531
        %v1538 = vpack.c.b16 %v1536, %v1535
        %v1539 = vpack.c.b16 %v1537, %v1537
        %vm1541 = vcmask 195584
        %v1542 = vsel %vm1541, %v1471, 0
        %v1544 = vsel %vm1541, %v1473, 0
        %v1546 = vsel %vm1541, %v1475, 0
        %v1548 = vsel %vm1541, %v1477, 0
        %v1550 = vsel %vm1541, %v1479, 0
        %v1552 = vsel %vm1541, %v1481, 0
        %v1554 = vsel %vm1541, %v1483, 0
        %v1556 = vsel %vm1541, %v1485, 0
        %v1558 = vsel %vm1541, %v1487, 0
        %v1560 = vsel %vm1541, %v1489, 0
        %v1562 = vsel %vm1541, %v1491, 0
        %v1564 = vsel %vm1541, %v1493, 0
        %v1566 = vsel %vm1541, %v1495, 0
        %v1568 = vsel %vm1541, %v1497, 0
        %v1570 = vsel %vm1541, %v1499, 0
        %v1572 = vsel %vm1541, %v1527, 0
        %vm1574 = vcmask 1043456
        %v1576 = vsel %vm1574, %v1539, 0
        %1578 = vmatprep.subr.bf16.mxu0 0
        %1579 = vmatpush1.bf16.msra.mxu0 0
        %1580 = vmatprep.subr.bf16.mxu0 0
        %1581 = vmatpush1.bf16.msra.mxu0 0
        %1582 = vmatprep.subr.bf16.mxu0 0
        %1583 = vmatpush1.bf16.msra.mxu0 0
        %1584 = vmatprep.subr.bf16.mxu0 0
        %1585 = vmatpush1.bf16.msra.mxu0 0
        %1586 = vmatprep.subr.bf16.mxu0 0
        %1587 = vmatpush1.bf16.msra.mxu0 0
        %1588 = vmatprep.subr.bf16.mxu0 0
        %1589 = vmatpush1.bf16.msra.mxu0 0
        %1590 = vmatprep.subr.bf16.mxu0 0
        %1591 = vmatpush1.bf16.msra.mxu0 %v1576
        %1592 = vmatprep.subr.bf16.mxu0 0
        %1593 = vmatpush1.bf16.msra.mxu0 %v1538
        %1594 = vmatprep.subr.bf16.mxu0 0
        %1595 = vmatpush2.bf16.msra.mxu0 0
        %1596 = vmatprep.subr.bf16.mxu0 0
        %1597 = vmatpush2.bf16.msra.mxu0 0
        %1598 = vmatprep.subr.bf16.mxu0 0
        %1599 = vmatpush2.bf16.msra.mxu0 0
        %1600 = vmatprep.subr.bf16.mxu0 0
        %1601 = vmatpush2.bf16.msra.mxu0 0
        %1602 = vmatprep.subr.bf16.mxu0 0
        %1603 = vmatpush2.bf16.msra.mxu0 0
        %1604 = vmatprep.subr.bf16.mxu0 0
        %1605 = vmatpush2.bf16.msra.mxu0 0
        %1606 = vmatprep.subr.bf16.mxu0 0
        %1607 = vmatpush2.bf16.msra.mxu0 0
        %1608 = vmatprep.subr.bf16.mxu0 0
        %1609 = vmatpush2.bf16.msra.mxu0 0
        %1610 = vmatprep.mubr.bf16.mxu0 0
        %1611 = vmatmul.mubr.bf16.gmra.mxu0 %v1542
        %v1612 = vpop.f32.mrf.mxu0
        %v1613 = vadd.f32 0.0, %v1612
        %v1614 = vpop.f32.mrf.mxu0
        %v1615 = vpop.f32.mrf.mxu0
        %v1616 = vadd.f32 0.0, %v1615
        %v1617 = vpop.f32.mrf.mxu0
        %1618 = vmatprep.mubr.bf16.mxu0 0
        %1619 = vmatmul.mubr.bf16.gmra.mxu0 %v1544
        %v1620 = vpop.f32.mrf.mxu0
        %v1621 = vadd.f32 0.0, %v1620
        %v1622 = vpop.f32.mrf.mxu0
        %v1623 = vpop.f32.mrf.mxu0
        %v1624 = vadd.f32 0.0, %v1623
        %v1625 = vpop.f32.mrf.mxu0
        %1626 = vmatprep.mubr.bf16.mxu0 0
        %1627 = vmatmul.mubr.bf16.gmra.mxu0 %v1546
        %v1628 = vpop.f32.mrf.mxu0
        %v1629 = vadd.f32 0.0, %v1628
        %v1630 = vpop.f32.mrf.mxu0
        %v1631 = vpop.f32.mrf.mxu0
        %v1632 = vadd.f32 0.0, %v1631
        %v1633 = vpop.f32.mrf.mxu0
        %1634 = vmatprep.mubr.bf16.mxu0 0
        %1635 = vmatmul.mubr.bf16.gmra.mxu0 %v1548
        %v1636 = vpop.f32.mrf.mxu0
        %v1637 = vadd.f32 0.0, %v1636
        %v1638 = vpop.f32.mrf.mxu0
        %v1639 = vpop.f32.mrf.mxu0
        %v1640 = vadd.f32 0.0, %v1639
        %v1641 = vpop.f32.mrf.mxu0
        %1642 = vmatprep.mubr.bf16.mxu0 0
        %1643 = vmatmul.mubr.bf16.gmra.mxu0 %v1550
        %v1644 = vpop.f32.mrf.mxu0
        %v1645 = vadd.f32 0.0, %v1644
        %v1646 = vpop.f32.mrf.mxu0
        %v1647 = vpop.f32.mrf.mxu0
        %v1648 = vadd.f32 0.0, %v1647
        %v1649 = vpop.f32.mrf.mxu0
        %1650 = vmatprep.mubr.bf16.mxu0 0
        %1651 = vmatmul.mubr.bf16.gmra.mxu0 %v1552
        %v1652 = vpop.f32.mrf.mxu0
        %v1653 = vadd.f32 0.0, %v1652
        %v1654 = vpop.f32.mrf.mxu0
        %v1655 = vpop.f32.mrf.mxu0
        %v1656 = vadd.f32 0.0, %v1655
        %v1657 = vpop.f32.mrf.mxu0
        %1658 = vmatprep.mubr.bf16.mxu0 0
        %1659 = vmatmul.mubr.bf16.gmra.mxu0 %v1554
        %v1660 = vpop.f32.mrf.mxu0
        %v1661 = vadd.f32 0.0, %v1660
        %v1662 = vpop.f32.mrf.mxu0
        %v1663 = vpop.f32.mrf.mxu0
        %v1664 = vadd.f32 0.0, %v1663
        %v1665 = vpop.f32.mrf.mxu0
        %1666 = vmatprep.mubr.bf16.mxu0 0
        %1667 = vmatmul.mubr.bf16.gmra.mxu0 %v1556
        %v1668 = vpop.f32.mrf.mxu0
        %v1669 = vadd.f32 0.0, %v1668
        %v1670 = vpop.f32.mrf.mxu0
        %v1671 = vpop.f32.mrf.mxu0
        %v1672 = vadd.f32 0.0, %v1671
        %v1673 = vpop.f32.mrf.mxu0
        %1674 = vmatprep.mubr.bf16.mxu0 0
        %1675 = vmatmul.mubr.bf16.gmra.mxu0 %v1558
        %v1676 = vpop.f32.mrf.mxu0
        %v1677 = vadd.f32 0.0, %v1676
        %v1678 = vpop.f32.mrf.mxu0
        %v1679 = vpop.f32.mrf.mxu0
        %v1680 = vadd.f32 0.0, %v1679
        %v1681 = vpop.f32.mrf.mxu0
        %1682 = vmatprep.mubr.bf16.mxu0 0
        %1683 = vmatmul.mubr.bf16.gmra.mxu0 %v1560
        %v1684 = vpop.f32.mrf.mxu0
        %v1685 = vadd.f32 0.0, %v1684
        %v1686 = vpop.f32.mrf.mxu0
        %v1687 = vpop.f32.mrf.mxu0
        %v1688 = vadd.f32 0.0, %v1687
        %v1689 = vpop.f32.mrf.mxu0
        %1690 = vmatprep.mubr.bf16.mxu0 0
        %1691 = vmatmul.mubr.bf16.gmra.mxu0 %v1562
        %v1692 = vpop.f32.mrf.mxu0
        %v1693 = vadd.f32 0.0, %v1692
        %v1694 = vpop.f32.mrf.mxu0
        %v1695 = vpop.f32.mrf.mxu0
        %v1696 = vadd.f32 0.0, %v1695
        %v1697 = vpop.f32.mrf.mxu0
        %1698 = vmatprep.mubr.bf16.mxu0 0
        %1699 = vmatmul.mubr.bf16.gmra.mxu0 %v1564
        %v1700 = vpop.f32.mrf.mxu0
        %v1701 = vadd.f32 0.0, %v1700
        %v1702 = vpop.f32.mrf.mxu0
        %v1703 = vpop.f32.mrf.mxu0
        %v1704 = vadd.f32 0.0, %v1703
        %v1705 = vpop.f32.mrf.mxu0
        %1706 = vmatprep.mubr.bf16.mxu0 0
        %1707 = vmatmul.mubr.bf16.gmra.mxu0 %v1566
        %v1708 = vpop.f32.mrf.mxu0
        %v1709 = vadd.f32 0.0, %v1708
        %v1710 = vpop.f32.mrf.mxu0
        %v1711 = vpop.f32.mrf.mxu0
        %v1712 = vadd.f32 0.0, %v1711
        %v1713 = vpop.f32.mrf.mxu0
        %1714 = vmatprep.mubr.bf16.mxu0 0
        %1715 = vmatmul.mubr.bf16.gmra.mxu0 %v1568
        %v1716 = vpop.f32.mrf.mxu0
        %v1717 = vadd.f32 0.0, %v1716
        %v1718 = vpop.f32.mrf.mxu0
        %v1719 = vpop.f32.mrf.mxu0
        %v1720 = vadd.f32 0.0, %v1719
        %v1721 = vpop.f32.mrf.mxu0
        %1722 = vmatprep.mubr.bf16.mxu0 0
        %1723 = vmatmul.mubr.bf16.gmra.mxu0 %v1570
        %v1724 = vpop.f32.mrf.mxu0
        %v1725 = vadd.f32 0.0, %v1724
        %v1726 = vpop.f32.mrf.mxu0
        %v1727 = vpop.f32.mrf.mxu0
        %v1728 = vadd.f32 0.0, %v1727
        %v1729 = vpop.f32.mrf.mxu0
        %1730 = vmatprep.mubr.bf16.mxu0 0
        %1731 = vmatmul.mubr.bf16.gmra.mxu0 %v1572
        %v1732 = vpop.f32.mrf.mxu0
        %v1733 = vadd.f32 0.0, %v1732
        %v1734 = vpop.f32.mrf.mxu0
        %v1735 = vpop.f32.mrf.mxu0
        %v1736 = vadd.f32 0.0, %v1735
        %v1737 = vpop.f32.mrf.mxu0
        %1738 = vdwg.mxu0
        %v1742 = vunpack.c.l.b16 %v1500
        %v1743 = vunpack.c.l.b16 %v1501
        %v1744 = vunpack.c.l.b16 %v1502
        %v1745 = vpack.c.b16 %v1743, %v1742
        %v1746 = vpack.c.b16 %v1744, %v1744
        %v1748 = vsel %vm1541, %v1469, 0
        %v1751 = vsel %vm1574, %v1746, 0
        %1753 = vmatprep.subr.bf16.mxu0 0
        %1754 = vmatpush1.bf16.msra.mxu0 0
        %1755 = vmatprep.subr.bf16.mxu0 0
        %1756 = vmatpush1.bf16.msra.mxu0 0
        %1757 = vmatprep.subr.bf16.mxu0 0
        %1758 = vmatpush1.bf16.msra.mxu0 0
        %1759 = vmatprep.subr.bf16.mxu0 0
        %1760 = vmatpush1.bf16.msra.mxu0 0
        %1761 = vmatprep.subr.bf16.mxu0 0
        %1762 = vmatpush1.bf16.msra.mxu0 0
        %1763 = vmatprep.subr.bf16.mxu0 0
        %1764 = vmatpush1.bf16.msra.mxu0 0
        %1765 = vmatprep.subr.bf16.mxu0 0
        %1766 = vmatpush1.bf16.msra.mxu0 %v1751
        %1767 = vmatprep.subr.bf16.mxu0 0
        %1768 = vmatpush1.bf16.msra.mxu0 %v1745
        %1769 = vmatprep.subr.bf16.mxu0 0
        %1770 = vmatpush2.bf16.msra.mxu0 0
        %1771 = vmatprep.subr.bf16.mxu0 0
        %1772 = vmatpush2.bf16.msra.mxu0 0
        %1773 = vmatprep.subr.bf16.mxu0 0
        %1774 = vmatpush2.bf16.msra.mxu0 0
        %1775 = vmatprep.subr.bf16.mxu0 0
        %1776 = vmatpush2.bf16.msra.mxu0 0
        %1777 = vmatprep.subr.bf16.mxu0 0
        %1778 = vmatpush2.bf16.msra.mxu0 0
        %1779 = vmatprep.subr.bf16.mxu0 0
        %1780 = vmatpush2.bf16.msra.mxu0 0
        %1781 = vmatprep.subr.bf16.mxu0 0
        %1782 = vmatpush2.bf16.msra.mxu0 0
        %1783 = vmatprep.subr.bf16.mxu0 0
        %1784 = vmatpush2.bf16.msra.mxu0 0
        %1785 = vmatprep.mubr.bf16.mxu0 0
        %1786 = vmatmul.mubr.bf16.gmra.mxu0 %v1748
        %v1787 = vpop.f32.mrf.mxu0
        %v1788 = vadd.f32 %v1613, %v1787
        %v1789 = vpop.f32.mrf.mxu0
        %v1790 = vpop.f32.mrf.mxu0
        %v1791 = vadd.f32 %v1616, %v1790
        %v1792 = vpop.f32.mrf.mxu0
        %1793 = vmatprep.mubr.bf16.mxu0 0
        %1794 = vmatmul.mubr.bf16.gmra.mxu0 %v1542
        %v1795 = vpop.f32.mrf.mxu0
        %v1796 = vadd.f32 %v1621, %v1795
        %v1797 = vpop.f32.mrf.mxu0
        %v1798 = vpop.f32.mrf.mxu0
        %v1799 = vadd.f32 %v1624, %v1798
        %v1800 = vpop.f32.mrf.mxu0
        %1801 = vmatprep.mubr.bf16.mxu0 0
        %1802 = vmatmul.mubr.bf16.gmra.mxu0 %v1544
        %v1803 = vpop.f32.mrf.mxu0
        %v1804 = vadd.f32 %v1629, %v1803
        %v1805 = vpop.f32.mrf.mxu0
        %v1806 = vpop.f32.mrf.mxu0
        %v1807 = vadd.f32 %v1632, %v1806
        %v1808 = vpop.f32.mrf.mxu0
        %1809 = vmatprep.mubr.bf16.mxu0 0
        %1810 = vmatmul.mubr.bf16.gmra.mxu0 %v1546
        %v1811 = vpop.f32.mrf.mxu0
        %v1812 = vadd.f32 %v1637, %v1811
        %v1813 = vpop.f32.mrf.mxu0
        %v1814 = vpop.f32.mrf.mxu0
        %v1815 = vadd.f32 %v1640, %v1814
        %v1816 = vpop.f32.mrf.mxu0
        %1817 = vmatprep.mubr.bf16.mxu0 0
        %1818 = vmatmul.mubr.bf16.gmra.mxu0 %v1548
        %v1819 = vpop.f32.mrf.mxu0
        %v1820 = vadd.f32 %v1645, %v1819
        %v1821 = vpop.f32.mrf.mxu0
        %v1822 = vpop.f32.mrf.mxu0
        %v1823 = vadd.f32 %v1648, %v1822
        %v1824 = vpop.f32.mrf.mxu0
        %1825 = vmatprep.mubr.bf16.mxu0 0
        %1826 = vmatmul.mubr.bf16.gmra.mxu0 %v1550
        %v1827 = vpop.f32.mrf.mxu0
        %v1828 = vadd.f32 %v1653, %v1827
        %v1829 = vpop.f32.mrf.mxu0
        %v1830 = vpop.f32.mrf.mxu0
        %v1831 = vadd.f32 %v1656, %v1830
        %v1832 = vpop.f32.mrf.mxu0
        %1833 = vmatprep.mubr.bf16.mxu0 0
        %1834 = vmatmul.mubr.bf16.gmra.mxu0 %v1552
        %v1835 = vpop.f32.mrf.mxu0
        %v1836 = vadd.f32 %v1661, %v1835
        %v1837 = vpop.f32.mrf.mxu0
        %v1838 = vpop.f32.mrf.mxu0
        %v1839 = vadd.f32 %v1664, %v1838
        %v1840 = vpop.f32.mrf.mxu0
        %1841 = vmatprep.mubr.bf16.mxu0 0
        %1842 = vmatmul.mubr.bf16.gmra.mxu0 %v1554
        %v1843 = vpop.f32.mrf.mxu0
        %v1844 = vadd.f32 %v1669, %v1843
        %v1845 = vpop.f32.mrf.mxu0
        %v1846 = vpop.f32.mrf.mxu0
        %v1847 = vadd.f32 %v1672, %v1846
        %v1848 = vpop.f32.mrf.mxu0
        %1849 = vmatprep.mubr.bf16.mxu0 0
        %1850 = vmatmul.mubr.bf16.gmra.mxu0 %v1556
        %v1851 = vpop.f32.mrf.mxu0
        %v1852 = vadd.f32 %v1677, %v1851
        %v1853 = vpop.f32.mrf.mxu0
        %v1854 = vpop.f32.mrf.mxu0
        %v1855 = vadd.f32 %v1680, %v1854
        %v1856 = vpop.f32.mrf.mxu0
        %1857 = vmatprep.mubr.bf16.mxu0 0
        %1858 = vmatmul.mubr.bf16.gmra.mxu0 %v1558
        %v1859 = vpop.f32.mrf.mxu0
        %v1860 = vadd.f32 %v1685, %v1859
        %v1861 = vpop.f32.mrf.mxu0
        %v1862 = vpop.f32.mrf.mxu0
        %v1863 = vadd.f32 %v1688, %v1862
        %v1864 = vpop.f32.mrf.mxu0
        %1865 = vmatprep.mubr.bf16.mxu0 0
        %1866 = vmatmul.mubr.bf16.gmra.mxu0 %v1560
        %v1867 = vpop.f32.mrf.mxu0
        %v1868 = vadd.f32 %v1693, %v1867
        %v1869 = vpop.f32.mrf.mxu0
        %v1870 = vpop.f32.mrf.mxu0
        %v1871 = vadd.f32 %v1696, %v1870
        %v1872 = vpop.f32.mrf.mxu0
        %1873 = vmatprep.mubr.bf16.mxu0 0
        %1874 = vmatmul.mubr.bf16.gmra.mxu0 %v1562
        %v1875 = vpop.f32.mrf.mxu0
        %v1876 = vadd.f32 %v1701, %v1875
        %v1877 = vpop.f32.mrf.mxu0
        %v1878 = vpop.f32.mrf.mxu0
        %v1879 = vadd.f32 %v1704, %v1878
        %v1880 = vpop.f32.mrf.mxu0
        %1881 = vmatprep.mubr.bf16.mxu0 0
        %1882 = vmatmul.mubr.bf16.gmra.mxu0 %v1564
        %v1883 = vpop.f32.mrf.mxu0
        %v1884 = vadd.f32 %v1709, %v1883
        %v1885 = vpop.f32.mrf.mxu0
        %v1886 = vpop.f32.mrf.mxu0
        %v1887 = vadd.f32 %v1712, %v1886
        %v1888 = vpop.f32.mrf.mxu0
        %1889 = vmatprep.mubr.bf16.mxu0 0
        %1890 = vmatmul.mubr.bf16.gmra.mxu0 %v1566
        %v1891 = vpop.f32.mrf.mxu0
        %v1892 = vadd.f32 %v1717, %v1891
        %v1893 = vpop.f32.mrf.mxu0
        %v1894 = vpop.f32.mrf.mxu0
        %v1895 = vadd.f32 %v1720, %v1894
        %v1896 = vpop.f32.mrf.mxu0
        %1897 = vmatprep.mubr.bf16.mxu0 0
        %1898 = vmatmul.mubr.bf16.gmra.mxu0 %v1568
        %v1899 = vpop.f32.mrf.mxu0
        %v1900 = vadd.f32 %v1725, %v1899
        %v1901 = vpop.f32.mrf.mxu0
        %v1902 = vpop.f32.mrf.mxu0
        %v1903 = vadd.f32 %v1728, %v1902
        %v1904 = vpop.f32.mrf.mxu0
        %1905 = vmatprep.mubr.bf16.mxu0 0
        %1906 = vmatmul.mubr.bf16.gmra.mxu0 %v1570
        %v1907 = vpop.f32.mrf.mxu0
        %v1908 = vadd.f32 %v1733, %v1907
        %v1909 = vpop.f32.mrf.mxu0
        %v1910 = vpop.f32.mrf.mxu0
        %v1911 = vadd.f32 %v1736, %v1910
        %v1912 = vpop.f32.mrf.mxu0
        %1913 = vdwg.mxu0
        %v1915 = vshrl.u32 %v1077, 16
        %v1917 = vshll.u32 %v1077, 16
        %v1919 = vrot.slane %v1917, 1
        %v1920 = vor.u32 %v1915, %v1919
        %v1922 = vshll.u32 %v1095, 16
        %v1924 = vrot.slane %v1922, 1
        %v1925 = vsel %vm1096, %v1920, %v1924
        %1926 = vrot.lane.b32.xlu0 %v1925, 8
        %v1927 = vpop.permute.xlu0 %1926
        %v1930 = vrot.slane %v1077, 1
        %v1931 = vrot.slane %v1095, 1
        %v1932 = vsel %vm1353, %v1930, %v1931
        %1933 = vrot.lane.b32.xlu0 %v1932, 16
        %v1934 = vpop.permute.xlu0 %1933
        %v1936 = vsel %vm1434, %v1077, %v1927
        %v1938 = vsel %vm1467, %v1936, %v1934
        %s1939 = scalar_lea.vmem %s5, 24
        %v1940 = vld [vmem:[%s1939] sm:$0xf]
        %v1941 = vld [vmem:[%s1939 + $0x4] sm:$0xf]
        %v1942 = vld [vmem:[%s1939 + $0x8] sm:$0xf]
        %v1946 = vunpack.c.l.b16 %v1940
        %v1947 = vunpack.c.l.b16 %v1941
        %v1948 = vunpack.c.l.b16 %v1942
        %v1949 = vpack.c.b16 %v1947, %v1946
        %v1950 = vpack.c.b16 %v1948, %v1948
        %v1952 = vsel %vm1541, %v1938, 0
        %v1955 = vsel %vm1574, %v1950, 0
        %1957 = vmatprep.subr.bf16.mxu0 0
        %1958 = vmatpush1.bf16.msra.mxu0 0
        %1959 = vmatprep.subr.bf16.mxu0 0
        %1960 = vmatpush1.bf16.msra.mxu0 0
        %1961 = vmatprep.subr.bf16.mxu0 0
        %1962 = vmatpush1.bf16.msra.mxu0 0
        %1963 = vmatprep.subr.bf16.mxu0 0
        %1964 = vmatpush1.bf16.msra.mxu0 0
        %1965 = vmatprep.subr.bf16.mxu0 0
        %1966 = vmatpush1.bf16.msra.mxu0 0
        %1967 = vmatprep.subr.bf16.mxu0 0
        %1968 = vmatpush1.bf16.msra.mxu0 0
        %1969 = vmatprep.subr.bf16.mxu0 0
        %1970 = vmatpush1.bf16.msra.mxu0 %v1955
        %1971 = vmatprep.subr.bf16.mxu0 0
        %1972 = vmatpush1.bf16.msra.mxu0 %v1949
        %1973 = vmatprep.subr.bf16.mxu0 0
        %1974 = vmatpush2.bf16.msra.mxu0 0
        %1975 = vmatprep.subr.bf16.mxu0 0
        %1976 = vmatpush2.bf16.msra.mxu0 0
        %1977 = vmatprep.subr.bf16.mxu0 0
        %1978 = vmatpush2.bf16.msra.mxu0 0
        %1979 = vmatprep.subr.bf16.mxu0 0
        %1980 = vmatpush2.bf16.msra.mxu0 0
        %1981 = vmatprep.subr.bf16.mxu0 0
        %1982 = vmatpush2.bf16.msra.mxu0 0
        %1983 = vmatprep.subr.bf16.mxu0 0
        %1984 = vmatpush2.bf16.msra.mxu0 0
        %1985 = vmatprep.subr.bf16.mxu0 0
        %1986 = vmatpush2.bf16.msra.mxu0 0
        %1987 = vmatprep.subr.bf16.mxu0 0
        %1988 = vmatpush2.bf16.msra.mxu0 0
        %1989 = vmatprep.mubr.bf16.mxu0 0
        %1990 = vmatmul.mubr.bf16.gmra.mxu0 %v1544
        %v1991 = vpop.f32.mrf.mxu0
        %v1992 = vadd.f32 0.0, %v1991
        %v1993 = vpop.f32.mrf.mxu0
        %v1994 = vpop.f32.mrf.mxu0
        %v1995 = vadd.f32 0.0, %v1994
        %v1996 = vpop.f32.mrf.mxu0
        %1997 = vmatprep.mubr.bf16.mxu0 0
        %1998 = vmatmul.mubr.bf16.gmra.mxu0 %v1546
        %v1999 = vpop.f32.mrf.mxu0
        %v2000 = vadd.f32 0.0, %v1999
        %v2001 = vpop.f32.mrf.mxu0
        %v2002 = vpop.f32.mrf.mxu0
        %v2003 = vadd.f32 0.0, %v2002
        %v2004 = vpop.f32.mrf.mxu0
        %2005 = vmatprep.mubr.bf16.mxu0 0
        %2006 = vmatmul.mubr.bf16.gmra.mxu0 %v1548
        %v2007 = vpop.f32.mrf.mxu0
        %v2008 = vadd.f32 0.0, %v2007
        %v2009 = vpop.f32.mrf.mxu0
        %v2010 = vpop.f32.mrf.mxu0
        %v2011 = vadd.f32 0.0, %v2010
        %v2012 = vpop.f32.mrf.mxu0
        %2013 = vmatprep.mubr.bf16.mxu0 0
        %2014 = vmatmul.mubr.bf16.gmra.mxu0 %v1550
        %v2015 = vpop.f32.mrf.mxu0
        %v2016 = vadd.f32 0.0, %v2015
        %v2017 = vpop.f32.mrf.mxu0
        %v2018 = vpop.f32.mrf.mxu0
        %v2019 = vadd.f32 0.0, %v2018
        %v2020 = vpop.f32.mrf.mxu0
        %2021 = vmatprep.mubr.bf16.mxu0 0
        %2022 = vmatmul.mubr.bf16.gmra.mxu0 %v1552
        %v2023 = vpop.f32.mrf.mxu0
        %v2024 = vadd.f32 0.0, %v2023
        %v2025 = vpop.f32.mrf.mxu0
        %v2026 = vpop.f32.mrf.mxu0
        %v2027 = vadd.f32 0.0, %v2026
        %v2028 = vpop.f32.mrf.mxu0
        %2029 = vmatprep.mubr.bf16.mxu0 0
        %2030 = vmatmul.mubr.bf16.gmra.mxu0 %v1554
        %v2031 = vpop.f32.mrf.mxu0
        %v2032 = vadd.f32 0.0, %v2031
        %v2033 = vpop.f32.mrf.mxu0
        %v2034 = vpop.f32.mrf.mxu0
        %v2035 = vadd.f32 0.0, %v2034
        %v2036 = vpop.f32.mrf.mxu0
        %2037 = vmatprep.mubr.bf16.mxu0 0
        %2038 = vmatmul.mubr.bf16.gmra.mxu0 %v1556
        %v2039 = vpop.f32.mrf.mxu0
        %v2040 = vadd.f32 0.0, %v2039
        %v2041 = vpop.f32.mrf.mxu0
        %v2042 = vpop.f32.mrf.mxu0
        %v2043 = vadd.f32 0.0, %v2042
        %v2044 = vpop.f32.mrf.mxu0
        %2045 = vmatprep.mubr.bf16.mxu0 0
        %2046 = vmatmul.mubr.bf16.gmra.mxu0 %v1558
        %v2047 = vpop.f32.mrf.mxu0
        %v2048 = vadd.f32 0.0, %v2047
        %v2049 = vpop.f32.mrf.mxu0
        %v2050 = vpop.f32.mrf.mxu0
        %v2051 = vadd.f32 0.0, %v2050
        %v2052 = vpop.f32.mrf.mxu0
        %2053 = vmatprep.mubr.bf16.mxu0 0
        %2054 = vmatmul.mubr.bf16.gmra.mxu0 %v1560
        %v2055 = vpop.f32.mrf.mxu0
        %v2056 = vadd.f32 0.0, %v2055
        %v2057 = vpop.f32.mrf.mxu0
        %v2058 = vpop.f32.mrf.mxu0
        %v2059 = vadd.f32 0.0, %v2058
        %v2060 = vpop.f32.mrf.mxu0
        %2061 = vmatprep.mubr.bf16.mxu0 0
        %2062 = vmatmul.mubr.bf16.gmra.mxu0 %v1562
        %v2063 = vpop.f32.mrf.mxu0
        %v2064 = vadd.f32 0.0, %v2063
        %v2065 = vpop.f32.mrf.mxu0
        %v2066 = vpop.f32.mrf.mxu0
        %v2067 = vadd.f32 0.0, %v2066
        %v2068 = vpop.f32.mrf.mxu0
        %2069 = vmatprep.mubr.bf16.mxu0 0
        %2070 = vmatmul.mubr.bf16.gmra.mxu0 %v1564
        %v2071 = vpop.f32.mrf.mxu0
        %v2072 = vadd.f32 0.0, %v2071
        %v2073 = vpop.f32.mrf.mxu0
        %v2074 = vpop.f32.mrf.mxu0
        %v2075 = vadd.f32 0.0, %v2074
        %v2076 = vpop.f32.mrf.mxu0
        %2077 = vmatprep.mubr.bf16.mxu0 0
        %2078 = vmatmul.mubr.bf16.gmra.mxu0 %v1566
        %v2079 = vpop.f32.mrf.mxu0
        %v2080 = vadd.f32 0.0, %v2079
        %v2081 = vpop.f32.mrf.mxu0
        %v2082 = vpop.f32.mrf.mxu0
        %v2083 = vadd.f32 0.0, %v2082
        %v2084 = vpop.f32.mrf.mxu0
        %2085 = vmatprep.mubr.bf16.mxu0 0
        %2086 = vmatmul.mubr.bf16.gmra.mxu0 %v1568
        %v2087 = vpop.f32.mrf.mxu0
        %v2088 = vadd.f32 0.0, %v2087
        %v2089 = vpop.f32.mrf.mxu0
        %v2090 = vpop.f32.mrf.mxu0
        %v2091 = vadd.f32 0.0, %v2090
        %v2092 = vpop.f32.mrf.mxu0
        %2093 = vmatprep.mubr.bf16.mxu0 0
        %2094 = vmatmul.mubr.bf16.gmra.mxu0 %v1570
        %v2095 = vpop.f32.mrf.mxu0
        %v2096 = vadd.f32 0.0, %v2095
        %v2097 = vpop.f32.mrf.mxu0
        %v2098 = vpop.f32.mrf.mxu0
        %v2099 = vadd.f32 0.0, %v2098
        %v2100 = vpop.f32.mrf.mxu0
        %2101 = vmatprep.mubr.bf16.mxu0 0
        %2102 = vmatmul.mubr.bf16.gmra.mxu0 %v1572
        %v2103 = vpop.f32.mrf.mxu0
        %v2104 = vadd.f32 0.0, %v2103
        %v2105 = vpop.f32.mrf.mxu0
        %v2106 = vpop.f32.mrf.mxu0
        %v2107 = vadd.f32 0.0, %v2106
        %v2108 = vpop.f32.mrf.mxu0
        %2109 = vmatprep.mubr.bf16.mxu0 0
        %2110 = vmatmul.mubr.bf16.gmra.mxu0 %v1952
        %v2111 = vpop.f32.mrf.mxu0
        %v2112 = vadd.f32 0.0, %v2111
        %v2113 = vpop.f32.mrf.mxu0
        %v2114 = vpop.f32.mrf.mxu0
        %v2115 = vadd.f32 0.0, %v2114
        %v2116 = vpop.f32.mrf.mxu0
        %2117 = vdwg.mxu0
        %v2118 = vadd.f32 %v1788, %v1992
        %v2119 = vadd.f32 %v1791, %v1995
        %v2120 = vadd.f32 %v1796, %v2000
        %v2121 = vadd.f32 %v1799, %v2003
        %v2122 = vadd.f32 %v1804, %v2008
        %v2123 = vadd.f32 %v1807, %v2011
        %v2124 = vadd.f32 %v1812, %v2016
        %v2125 = vadd.f32 %v1815, %v2019
        %v2126 = vadd.f32 %v1820, %v2024
        %v2127 = vadd.f32 %v1823, %v2027
        %v2128 = vadd.f32 %v1828, %v2032
        %v2129 = vadd.f32 %v1831, %v2035
        %v2130 = vadd.f32 %v1836, %v2040
        %v2131 = vadd.f32 %v1839, %v2043
        %v2132 = vadd.f32 %v1844, %v2048
        %v2133 = vadd.f32 %v1847, %v2051
        %v2134 = vadd.f32 %v1852, %v2056
        %v2135 = vadd.f32 %v1855, %v2059
        %v2136 = vadd.f32 %v1860, %v2064
        %v2137 = vadd.f32 %v1863, %v2067
        %v2138 = vadd.f32 %v1868, %v2072
        %v2139 = vadd.f32 %v1871, %v2075
        %v2140 = vadd.f32 %v1876, %v2080
        %v2141 = vadd.f32 %v1879, %v2083
        %v2142 = vadd.f32 %v1884, %v2088
        %v2143 = vadd.f32 %v1887, %v2091
        %v2144 = vadd.f32 %v1892, %v2096
        %v2145 = vadd.f32 %v1895, %v2099
        %v2146 = vadd.f32 %v1900, %v2104
        %v2147 = vadd.f32 %v1903, %v2107
        %v2148 = vadd.f32 %v1908, %v2112
        %v2149 = vadd.f32 %v1911, %v2115
        %v2150 = vld [vmem:[#allocation7] sm:$0x1]
        %v2152 = vlaneseq
        %v2153 = vshrl.u32 %v2152, 7
        %v2154 = vsub.s32 0, %v2153
        %v2155 = vrot.slane %v2150, %v2154
        %v2157 = vadd.f32 %v2118, %v2155
        %v2158 = vadd.f32 %v2119, %v2155
        %v2159 = vadd.f32 %v2120, %v2155
        %v2160 = vadd.f32 %v2121, %v2155
        %v2161 = vadd.f32 %v2122, %v2155
        %v2162 = vadd.f32 %v2123, %v2155
        %v2163 = vadd.f32 %v2124, %v2155
        %v2164 = vadd.f32 %v2125, %v2155
        %v2165 = vadd.f32 %v2126, %v2155
        %v2166 = vadd.f32 %v2127, %v2155
        %v2167 = vadd.f32 %v2128, %v2155
        %v2168 = vadd.f32 %v2129, %v2155
        %v2169 = vadd.f32 %v2130, %v2155
        %v2170 = vadd.f32 %v2131, %v2155
        %v2171 = vadd.f32 %v2132, %v2155
        %v2172 = vadd.f32 %v2133, %v2155
        %v2173 = vadd.f32 %v2134, %v2155
        %v2174 = vadd.f32 %v2135, %v2155
        %v2175 = vadd.f32 %v2136, %v2155
        %v2176 = vadd.f32 %v2137, %v2155
        %v2177 = vadd.f32 %v2138, %v2155
        %v2178 = vadd.f32 %v2139, %v2155
        %v2179 = vadd.f32 %v2140, %v2155
        %v2180 = vadd.f32 %v2141, %v2155
        %v2181 = vadd.f32 %v2142, %v2155
        %v2182 = vadd.f32 %v2143, %v2155
        %v2183 = vadd.f32 %v2144, %v2155
        %v2184 = vadd.f32 %v2145, %v2155
        %v2185 = vadd.f32 %v2146, %v2155
        %v2186 = vadd.f32 %v2147, %v2155
        %v2187 = vadd.f32 %v2148, %v2155
        %v2188 = vadd.f32 %v2149, %v2155
        %v2189 = vmax.f32 %v2157, 0.0
        %v2190 = vmax.f32 %v2158, 0.0
        %v2191 = vmax.f32 %v2159, 0.0
        %v2192 = vmax.f32 %v2160, 0.0
        %v2193 = vmax.f32 %v2161, 0.0
        %v2194 = vmax.f32 %v2162, 0.0
        %v2195 = vmax.f32 %v2163, 0.0
        %v2196 = vmax.f32 %v2164, 0.0
        %v2197 = vmax.f32 %v2165, 0.0
        %v2198 = vmax.f32 %v2166, 0.0
        %v2199 = vmax.f32 %v2167, 0.0
        %v2200 = vmax.f32 %v2168, 0.0
        %v2201 = vmax.f32 %v2169, 0.0
        %v2202 = vmax.f32 %v2170, 0.0
        %v2203 = vmax.f32 %v2171, 0.0
        %v2204 = vmax.f32 %v2172, 0.0
        %v2205 = vmax.f32 %v2173, 0.0
        %v2206 = vmax.f32 %v2174, 0.0
        %v2207 = vmax.f32 %v2175, 0.0
        %v2208 = vmax.f32 %v2176, 0.0
        %v2209 = vmax.f32 %v2177, 0.0
        %v2210 = vmax.f32 %v2178, 0.0
        %v2211 = vmax.f32 %v2179, 0.0
        %v2212 = vmax.f32 %v2180, 0.0
        %v2213 = vmax.f32 %v2181, 0.0
        %v2214 = vmax.f32 %v2182, 0.0
        %v2215 = vmax.f32 %v2183, 0.0
        %v2216 = vmax.f32 %v2184, 0.0
        %v2217 = vmax.f32 %v2185, 0.0
        %v2218 = vmax.f32 %v2186, 0.0
        %v2219 = vmax.f32 %v2187, 0.0
        %v2220 = vmax.f32 %v2188, 0.0
        %v2221 = vpack.c.bf16 %v2190, %v2189
        %v2222 = vpack.c.bf16 %v2192, %v2191
        %v2223 = vpack.c.bf16 %v2194, %v2193
        %v2224 = vpack.c.bf16 %v2196, %v2195
        %v2225 = vpack.c.bf16 %v2198, %v2197
        %v2226 = vpack.c.bf16 %v2200, %v2199
        %v2227 = vpack.c.bf16 %v2202, %v2201
        %v2228 = vpack.c.bf16 %v2204, %v2203
        %v2229 = vpack.c.bf16 %v2206, %v2205
        %v2230 = vpack.c.bf16 %v2208, %v2207
        %v2231 = vpack.c.bf16 %v2210, %v2209
        %v2232 = vpack.c.bf16 %v2212, %v2211
        %v2233 = vpack.c.bf16 %v2214, %v2213
        %v2234 = vpack.c.bf16 %v2216, %v2215
        %v2235 = vpack.c.bf16 %v2218, %v2217
        %v2236 = vpack.c.bf16 %v2220, %v2219
        %v2237 = vld [vmem:[%s7] sm:$0xf]
        %v2238 = vld [vmem:[%s8] sm:$0x1]
        %v2240 = vlaneseq
        %v2241 = vshrl.u32 %v2240, 7
        %v2242 = vsub.s32 0, %v2241
        %v2243 = vrot.slane %v2238, %v2242
        %v2246 = vsel %vm1434, %v2221, 0
        %v2249 = vsel %vm1434, %v2222, 0
        %v2252 = vsel %vm1434, %v2223, 0
        %v2255 = vsel %vm1434, %v2224, 0
        %v2258 = vsel %vm1434, %v2225, 0
        %v2261 = vsel %vm1434, %v2226, 0
        %v2264 = vsel %vm1434, %v2227, 0
        %v2267 = vsel %vm1434, %v2228, 0
        %v2270 = vsel %vm1434, %v2229, 0
        %v2273 = vsel %vm1434, %v2230, 0
        %v2276 = vsel %vm1434, %v2231, 0
        %v2279 = vsel %vm1434, %v2232, 0
        %v2282 = vsel %vm1434, %v2233, 0
        %v2285 = vsel %vm1434, %v2234, 0
        %v2288 = vsel %vm1434, %v2235, 0
        %v2291 = vsel %vm1434, %v2236, 0
        %v2294 = vsel %vm1574, %v2237, 0
        %2296 = vmatprep.subr.bf16.mxu0 0
        %2297 = vmatpush1.bf16.msra.mxu0 0
        %2298 = vmatprep.subr.bf16.mxu0 0
        %2299 = vmatpush1.bf16.msra.mxu0 0
        %2300 = vmatprep.subr.bf16.mxu0 0
        %2301 = vmatpush1.bf16.msra.mxu0 0
        %2302 = vmatprep.subr.bf16.mxu0 0
        %2303 = vmatpush1.bf16.msra.mxu0 0
        %2304 = vmatprep.subr.bf16.mxu0 0
        %2305 = vmatpush1.bf16.msra.mxu0 0
        %2306 = vmatprep.subr.bf16.mxu0 0
        %2307 = vmatpush1.bf16.msra.mxu0 0
        %2308 = vmatprep.subr.bf16.mxu0 0
        %2309 = vmatpush1.bf16.msra.mxu0 0
        %2310 = vmatprep.subr.bf16.mxu0 0
        %2311 = vmatpush1.bf16.msra.mxu0 %v2294
        %2312 = vmatprep.subr.bf16.mxu0 0
        %2313 = vmatpush2.bf16.msra.mxu0 0
        %2314 = vmatprep.subr.bf16.mxu0 0
        %2315 = vmatpush2.bf16.msra.mxu0 0
        %2316 = vmatprep.subr.bf16.mxu0 0
        %2317 = vmatpush2.bf16.msra.mxu0 0
        %2318 = vmatprep.subr.bf16.mxu0 0
        %2319 = vmatpush2.bf16.msra.mxu0 0
        %2320 = vmatprep.subr.bf16.mxu0 0
        %2321 = vmatpush2.bf16.msra.mxu0 0
        %2322 = vmatprep.subr.bf16.mxu0 0
        %2323 = vmatpush2.bf16.msra.mxu0 0
        %2324 = vmatprep.subr.bf16.mxu0 0
        %2325 = vmatpush2.bf16.msra.mxu0 0
        %2326 = vmatprep.subr.bf16.mxu0 0
        %2327 = vmatpush2.bf16.msra.mxu0 0
        %2328 = vmatprep.mubr.bf16.mxu0 0
        %2329 = vmatmul.mubr.bf16.gmra.mxu0 %v2246
        %v2330 = vpop.f32.mrf.mxu0
        %v2331 = vadd.f32 %v2243, %v2330
        %v2332 = vpop.f32.mrf.mxu0
        %v2333 = vpop.f32.mrf.mxu0
        %v2334 = vadd.f32 %v2243, %v2333
        %v2335 = vpop.f32.mrf.mxu0
        %2336 = vmatprep.mubr.bf16.mxu0 0
        %2337 = vmatmul.mubr.bf16.gmra.mxu0 %v2249
        %v2338 = vpop.f32.mrf.mxu0
        %v2339 = vadd.f32 %v2243, %v2338
        %v2340 = vpop.f32.mrf.mxu0
        %v2341 = vpop.f32.mrf.mxu0
        %v2342 = vadd.f32 %v2243, %v2341
        %v2343 = vpop.f32.mrf.mxu0
        %2344 = vmatprep.mubr.bf16.mxu0 0
        %2345 = vmatmul.mubr.bf16.gmra.mxu0 %v2252
        %v2346 = vpop.f32.mrf.mxu0
        %v2347 = vadd.f32 %v2243, %v2346
        %v2348 = vpop.f32.mrf.mxu0
        %v2349 = vpop.f32.mrf.mxu0
        %v2350 = vadd.f32 %v2243, %v2349
        %v2351 = vpop.f32.mrf.mxu0
        %2352 = vmatprep.mubr.bf16.mxu0 0
        %2353 = vmatmul.mubr.bf16.gmra.mxu0 %v2255
        %v2354 = vpop.f32.mrf.mxu0
        %v2355 = vadd.f32 %v2243, %v2354
        %v2356 = vpop.f32.mrf.mxu0
        %v2357 = vpop.f32.mrf.mxu0
        %v2358 = vadd.f32 %v2243, %v2357
        %v2359 = vpop.f32.mrf.mxu0
        %2360 = vmatprep.mubr.bf16.mxu0 0
        %2361 = vmatmul.mubr.bf16.gmra.mxu0 %v2258
        %v2362 = vpop.f32.mrf.mxu0
        %v2363 = vadd.f32 %v2243, %v2362
        %v2364 = vpop.f32.mrf.mxu0
        %v2365 = vpop.f32.mrf.mxu0
        %v2366 = vadd.f32 %v2243, %v2365
        %v2367 = vpop.f32.mrf.mxu0
        %2368 = vmatprep.mubr.bf16.mxu0 0
        %2369 = vmatmul.mubr.bf16.gmra.mxu0 %v2261
        %v2370 = vpop.f32.mrf.mxu0
        %v2371 = vadd.f32 %v2243, %v2370
        %v2372 = vpop.f32.mrf.mxu0
        %v2373 = vpop.f32.mrf.mxu0
        %v2374 = vadd.f32 %v2243, %v2373
        %v2375 = vpop.f32.mrf.mxu0
        %2376 = vmatprep.mubr.bf16.mxu0 0
        %2377 = vmatmul.mubr.bf16.gmra.mxu0 %v2264
        %v2378 = vpop.f32.mrf.mxu0
        %v2379 = vadd.f32 %v2243, %v2378
        %v2380 = vpop.f32.mrf.mxu0
        %v2381 = vpop.f32.mrf.mxu0
        %v2382 = vadd.f32 %v2243, %v2381
        %v2383 = vpop.f32.mrf.mxu0
        %2384 = vmatprep.mubr.bf16.mxu0 0
        %2385 = vmatmul.mubr.bf16.gmra.mxu0 %v2267
        %v2386 = vpop.f32.mrf.mxu0
        %v2387 = vadd.f32 %v2243, %v2386
        %v2388 = vpop.f32.mrf.mxu0
        %v2389 = vpop.f32.mrf.mxu0
        %v2390 = vadd.f32 %v2243, %v2389
        %v2391 = vpop.f32.mrf.mxu0
        %2392 = vmatprep.mubr.bf16.mxu0 0
        %2393 = vmatmul.mubr.bf16.gmra.mxu0 %v2270
        %v2394 = vpop.f32.mrf.mxu0
        %v2395 = vadd.f32 %v2243, %v2394
        %v2396 = vpop.f32.mrf.mxu0
        %v2397 = vpop.f32.mrf.mxu0
        %v2398 = vadd.f32 %v2243, %v2397
        %v2399 = vpop.f32.mrf.mxu0
        %2400 = vmatprep.mubr.bf16.mxu0 0
        %2401 = vmatmul.mubr.bf16.gmra.mxu0 %v2273
        %v2402 = vpop.f32.mrf.mxu0
        %v2403 = vadd.f32 %v2243, %v2402
        %v2404 = vpop.f32.mrf.mxu0
        %v2405 = vpop.f32.mrf.mxu0
        %v2406 = vadd.f32 %v2243, %v2405
        %v2407 = vpop.f32.mrf.mxu0
        %2408 = vmatprep.mubr.bf16.mxu0 0
        %2409 = vmatmul.mubr.bf16.gmra.mxu0 %v2276
        %v2410 = vpop.f32.mrf.mxu0
        %v2411 = vadd.f32 %v2243, %v2410
        %v2412 = vpop.f32.mrf.mxu0
        %v2413 = vpop.f32.mrf.mxu0
        %v2414 = vadd.f32 %v2243, %v2413
        %v2415 = vpop.f32.mrf.mxu0
        %2416 = vmatprep.mubr.bf16.mxu0 0
        %2417 = vmatmul.mubr.bf16.gmra.mxu0 %v2279
        %v2418 = vpop.f32.mrf.mxu0
        %v2419 = vadd.f32 %v2243, %v2418
        %v2420 = vpop.f32.mrf.mxu0
        %v2421 = vpop.f32.mrf.mxu0
        %v2422 = vadd.f32 %v2243, %v2421
        %v2423 = vpop.f32.mrf.mxu0
        %2424 = vmatprep.mubr.bf16.mxu0 0
        %2425 = vmatmul.mubr.bf16.gmra.mxu0 %v2282
        %v2426 = vpop.f32.mrf.mxu0
        %v2427 = vadd.f32 %v2243, %v2426
        %v2428 = vpop.f32.mrf.mxu0
        %v2429 = vpop.f32.mrf.mxu0
        %v2430 = vadd.f32 %v2243, %v2429
        %v2431 = vpop.f32.mrf.mxu0
        %2432 = vmatprep.mubr.bf16.mxu0 0
        %2433 = vmatmul.mubr.bf16.gmra.mxu0 %v2285
        %v2434 = vpop.f32.mrf.mxu0
        %v2435 = vadd.f32 %v2243, %v2434
        %v2436 = vpop.f32.mrf.mxu0
        %v2437 = vpop.f32.mrf.mxu0
        %v2438 = vadd.f32 %v2243, %v2437
        %v2439 = vpop.f32.mrf.mxu0
        %2440 = vmatprep.mubr.bf16.mxu0 0
        %2441 = vmatmul.mubr.bf16.gmra.mxu0 %v2288
        %v2442 = vpop.f32.mrf.mxu0
        %v2443 = vadd.f32 %v2243, %v2442
        %v2444 = vpop.f32.mrf.mxu0
        %v2445 = vpop.f32.mrf.mxu0
        %v2446 = vadd.f32 %v2243, %v2445
        %v2447 = vpop.f32.mrf.mxu0
        %2448 = vmatprep.mubr.bf16.mxu0 0
        %2449 = vmatmul.mubr.bf16.gmra.mxu0 %v2291
        %v2450 = vpop.f32.mrf.mxu0
        %v2451 = vadd.f32 %v2243, %v2450
        %v2452 = vpop.f32.mrf.mxu0
        %v2453 = vpop.f32.mrf.mxu0
        %v2454 = vadd.f32 %v2243, %v2453
        %v2455 = vpop.f32.mrf.mxu0
        %2456 = vdwg.mxu0
        %v2457 = vadd.f32 %v2331, %v471
        %v2458 = vadd.f32 %v2334, %v472
        %v2459 = vadd.f32 %v2339, %v473
        %v2460 = vadd.f32 %v2342, %v474
        %v2461 = vadd.f32 %v2347, %v475
        %v2462 = vadd.f32 %v2350, %v476
        %v2463 = vadd.f32 %v2355, %v477
        %v2464 = vadd.f32 %v2358, %v478
        %v2465 = vadd.f32 %v2363, %v479
        %v2466 = vadd.f32 %v2366, %v480
        %v2467 = vadd.f32 %v2371, %v481
        %v2468 = vadd.f32 %v2374, %v482
        %v2469 = vadd.f32 %v2379, %v483
        %v2470 = vadd.f32 %v2382, %v484
        %v2471 = vadd.f32 %v2387, %v485
        %v2472 = vadd.f32 %v2390, %v486
        %v2473 = vadd.f32 %v2395, %v487
        %v2474 = vadd.f32 %v2398, %v488
        %v2475 = vadd.f32 %v2403, %v489
        %v2476 = vadd.f32 %v2406, %v490
        %v2477 = vadd.f32 %v2411, %v491
        %v2478 = vadd.f32 %v2414, %v492
        %v2479 = vadd.f32 %v2419, %v493
        %v2480 = vadd.f32 %v2422, %v494
        %v2481 = vadd.f32 %v2427, %v495
        %v2482 = vadd.f32 %v2430, %v496
        %v2483 = vadd.f32 %v2435, %v497
        %v2484 = vadd.f32 %v2438, %v498
        %v2485 = vadd.f32 %v2443, %v499
        %v2486 = vadd.f32 %v2446, %v500
        %v2487 = vadd.f32 %v2451, %v501
        %v2488 = vadd.f32 %v2454, %v502
        %v2489 = vmax.f32 %v2457, 0.0
        %v2490 = vmax.f32 %v2458, 0.0
        %v2491 = vmax.f32 %v2459, 0.0
        %v2492 = vmax.f32 %v2460, 0.0
        %v2493 = vmax.f32 %v2461, 0.0
        %v2494 = vmax.f32 %v2462, 0.0
        %v2495 = vmax.f32 %v2463, 0.0
        %v2496 = vmax.f32 %v2464, 0.0
        %v2497 = vmax.f32 %v2465, 0.0
        %v2498 = vmax.f32 %v2466, 0.0
        %v2499 = vmax.f32 %v2467, 0.0
        %v2500 = vmax.f32 %v2468, 0.0
        %v2501 = vmax.f32 %v2469, 0.0
        %v2502 = vmax.f32 %v2470, 0.0
        %v2503 = vmax.f32 %v2471, 0.0
        %v2504 = vmax.f32 %v2472, 0.0
        %v2505 = vmax.f32 %v2473, 0.0
        %v2506 = vmax.f32 %v2474, 0.0
        %v2507 = vmax.f32 %v2475, 0.0
        %v2508 = vmax.f32 %v2476, 0.0
        %v2509 = vmax.f32 %v2477, 0.0
        %v2510 = vmax.f32 %v2478, 0.0
        %v2511 = vmax.f32 %v2479, 0.0
        %v2512 = vmax.f32 %v2480, 0.0
        %v2513 = vmax.f32 %v2481, 0.0
        %v2514 = vmax.f32 %v2482, 0.0
        %v2515 = vmax.f32 %v2483, 0.0
        %v2516 = vmax.f32 %v2484, 0.0
        %v2517 = vmax.f32 %v2485, 0.0
        %v2518 = vmax.f32 %v2486, 0.0
        %v2519 = vmax.f32 %v2487, 0.0
        %v2520 = vmax.f32 %v2488, 0.0
        %2521 = vst.msk [vmem:[%s444] sm:$0xff] %vm537, %v2489
        %2522 = vst.msk [vmem:[%s444 + $0x8] sm:$0xff] %vm537, %v2490
        %2523 = vst.msk [vmem:[%s444 + $0x10] sm:$0xff] %vm537, %v2491
        %2524 = vst.msk [vmem:[%s444 + $0x18] sm:$0xff] %vm537, %v2492
        %2525 = vst.msk [vmem:[%s444 + $0x20] sm:$0xff] %vm537, %v2493
        %2526 = vst.msk [vmem:[%s444 + $0x28] sm:$0xff] %vm537, %v2494
        %2527 = vst.msk [vmem:[%s444 + $0x30] sm:$0xff] %vm537, %v2495
        %2528 = vst.msk [vmem:[%s444 + $0x38] sm:$0xff] %vm537, %v2496
        %2529 = vst.msk [vmem:[%s444 + $0x40] sm:$0xff] %vm537, %v2497
        %2530 = vst.msk [vmem:[%s444 + $0x48] sm:$0xff] %vm537, %v2498
        %2531 = vst.msk [vmem:[%s444 + $0x50] sm:$0xff] %vm537, %v2499
        %2532 = vst.msk [vmem:[%s444 + $0x58] sm:$0xff] %vm537, %v2500
        %2533 = vst.msk [vmem:[%s444 + $0x60] sm:$0xff] %vm537, %v2501
        %2534 = vst.msk [vmem:[%s444 + $0x68] sm:$0xff] %vm537, %v2502
        %2535 = vst.msk [vmem:[%s444 + $0x70] sm:$0xff] %vm537, %v2503
        %2536 = vst.msk [vmem:[%s444 + $0x78] sm:$0xff] %vm537, %v2504
        %2537 = vst.msk [vmem:[%s444 + $0x80] sm:$0xff] %vm537, %v2505
        %2538 = vst.msk [vmem:[%s444 + $0x88] sm:$0xff] %vm537, %v2506
        %2539 = vst.msk [vmem:[%s444 + $0x90] sm:$0xff] %vm537, %v2507
        %2540 = vst.msk [vmem:[%s444 + $0x98] sm:$0xff] %vm537, %v2508
        %2541 = vst.msk [vmem:[%s444 + $0xa0] sm:$0xff] %vm537, %v2509
        %2542 = vst.msk [vmem:[%s444 + $0xa8] sm:$0xff] %vm537, %v2510
        %2543 = vst.msk [vmem:[%s444 + $0xb0] sm:$0xff] %vm537, %v2511
        %2544 = vst.msk [vmem:[%s444 + $0xb8] sm:$0xff] %vm537, %v2512
        %2545 = vst.msk [vmem:[%s444 + $0xc0] sm:$0xff] %vm537, %v2513
        %2546 = vst.msk [vmem:[%s444 + $0xc8] sm:$0xff] %vm537, %v2514
        %2547 = vst.msk [vmem:[%s444 + $0xd0] sm:$0xff] %vm537, %v2515
        %2548 = vst.msk [vmem:[%s444 + $0xd8] sm:$0xff] %vm537, %v2516
        %2549 = vst.msk [vmem:[%s444 + $0xe0] sm:$0xff] %vm537, %v2517
        %2550 = vst.msk [vmem:[%s444 + $0xe8] sm:$0xff] %vm537, %v2518
        %2551 = vst.msk [vmem:[%s444 + $0xf0] sm:$0xff] %vm537, %v2519
        %2552 = vst.msk [vmem:[%s444 + $0xf8] sm:$0xff] %vm537, %v2520
        %s2553 = sand.u32 %s259, 1
        %s2554 = scalar_lea.sflag [#allocation4], %s2553
        %s2555 = sand.u32 %s259, 1
        %s2556 = smul.addr %s2555, 256
        %s2557 = scalar_lea.vmem [#allocation8], %s2556
        // Predicated region
        $region69: #{tpu_custom_call.1} parent=55 // pred_check
          %p2558 = pneg %p269
        $region70: #{tpu_custom_call.1} parent=55 // pred_check_branch
          %2560 = sbr.rel (%p2558) target = $region72
        $region71: #{tpu_custom_call.1} parent=55 // pred_region
          %s2561 = smul.u32 16, %s32
          %s2563 = ssub.s32 4096, 4096
          %2564 = vsyncadd %s2554, %s2563
          %s2565 = smul.addr %s2561, 2
          %s2566 = smul.addr %s31, 32
          %s2567 = sadd.s32 %s2565, %s2566
          %s2568 = smul.addr %s2567, 128
          %s2569 = scalar_lea.hbm %s9, %s2568
          %s2570 = sshll.u32 %s2557, 4
          %s2571 = int_to_ptr.vmem [resolvable:$true] %s2570
          %2576 = dma.vmem_to_hbm [thread:$0]  %s2571, 4096, %s2569, %s2554, 128, 128, 8
        $region72: #{tpu_custom_call.1} parent=55 // pred_fallthru
          _
      $region56: #{tpu_custom_call.1} parent=5 // pred_fallthru
        _
      %p2577 = scmp.le.s32.totalorder 2, %s22
      // Predicated region
      $region73: #{tpu_custom_call.1} parent=5 // pred_check
        %p2578 = pneg %p2577
      $region74: #{tpu_custom_call.1} parent=5 // pred_check_branch
        %2580 = sbr.rel (%p2578) target = $region76
      $region75: #{tpu_custom_call.1} parent=5 // pred_region
        %s2581 = ssub.s32 %s22, 2
        // Predicated region
        $region77: #{tpu_custom_call.1} parent=75 // pred_check
          %p2582 = pneg %p275
        $region78: #{tpu_custom_call.1} parent=75 // pred_check_branch
          %2584 = sbr.rel (%p2582) target = $region80
        $region79: #{tpu_custom_call.1} parent=75 // pred_region
          %s2585 = sand.u32 %s260, 1
          %s2586 = scalar_lea.sflag [#allocation4], %s2585
          %s2587 = sand.u32 %s260, 1
          %s2588 = smul.addr %s2587, 256
          %s2589 = scalar_lea.vmem [#allocation8], %s2588
          %2590 = dma.done %s2586, 4096
        $region80: #{tpu_custom_call.1} parent=75 // pred_fallthru
          _
      $region76: #{tpu_custom_call.1} parent=5 // pred_fallthru
        _
    $region6: #{tpu_custom_call.1} parent=1 // loop_footer
      %s26 = sadd.s32 1, %s22
    $region7: #{tpu_custom_call.1} parent=1 // loop_footer_branch
      %21 = sbr.rel target = $region3
    $region8: #{tpu_custom_call.1} parent=1 // loop_exit
      _
    %2591 = vsyncpa [#allocation3], 1
    %s2592 = scalar_lea.sflag [#allocation3], 1
    %2593 = vsyncpa %s2592, 1
    %2594 = vsyncpa [#allocation6], 1
    %2595 = vsyncpa [#allocation4], 1
    %s2596 = scalar_lea.sflag [#allocation4], 1
    %2597 = vsyncpa %s2596, 1

// kernel: tpu_custom_call.1
$region0: #{tpu_custom_call.1}
  #allocation0 [shape = 'u32[]', space=smem, size = 0x4, offset = 0x4, fixed_abs, tag = 'smem constant byte address 0x4 - core index']
  #allocation1 [shape = 'u32[144,128]{1,0:T(1,128)}', space=vmem, size = 0x12000, scoped, tag = 'internal scratch']
  %s0 = inlined_call_operand.hbm [shape: f32[2,16,16,32], index: 0, kind: input, shape index: {}]
  %s1 = inlined_call_operand.vmem [shape: f32[2,1,16,32], index: 1, kind: input, shape index: {}]
  %s2 = inlined_call_operand.vmem [shape: f32[2,1,16,32], index: 2, kind: input, shape index: {}]
  %s3 = inlined_call_operand.vmem [shape: bf16[32,8], index: 3, kind: input, shape index: {}]
  %s4 = inlined_call_operand.hbm [shape: f32[1,8], index: 4, kind: input, shape index: {}]
  %s5 = inlined_call_operand.vmem [shape: bf16[3,24,8], index: 5, kind: input, shape index: {}]
  %s6 = inlined_call_operand.hbm [shape: f32[1,8], index: 6, kind: input, shape index: {}]
  %s7 = inlined_call_operand.vmem [shape: bf16[8,32], index: 7, kind: input, shape index: {}]
  %s8 = inlined_call_operand.vmem [shape: f32[1,32], index: 8, kind: input, shape index: {}]
  %s9 = inlined_call_operand.hbm [shape: f32[2,16,16,32], index: 9, kind: output, shape index: {}]
  %s10 = sld [smem:[#allocation0]]
  $region81: #{tpu_custom_call.1} parent=0
    _
  %s12 = ssub.s32 1, %s10
  %s13 = scalar_select 0, %s12, %s10
  $region1: #{tpu_custom_call.1} parent=0
    #allocation2 [shape = 'u8[262144]{0}', space=vmem, size = 0x40000, scoped, tag = 'input window, operand 0']
    #allocation3 [shape = 's32[2]{0}', space=sflag, size = 0x8, scoped, tag = 'scoped memory for tpu_custom_call.1']
    #allocation4 [shape = 's32[2]{0}', space=sflag, size = 0x8, scoped, tag = 'scoped memory for tpu_custom_call.1']
    #allocation5 [shape = 'u8[512]{0}', space=vmem, size = 0x400, scoped, tag = 'input window, operand 4, single buffered']
    #allocation6 [shape = 's32[1]{0}', space=sflag, size = 0x4, scoped, tag = 'scoped memory for tpu_custom_call.1']
    #allocation7 [shape = 'u8[512]{0}', space=vmem, size = 0x400, scoped, tag = 'input window, operand 6, single buffered']
    #allocation8 [shape = 'u8[262144]{0}', space=vmem, size = 0x40000, scoped, tag = 'output window, operand 0']
    %14 = vsyncpa [#allocation3], 0
    %s15 = scalar_lea.sflag [#allocation3], 1
    %16 = vsyncpa %s15, 0
    %17 = vsyncpa [#allocation6], 0
    %18 = vsyncpa [#allocation4], 0
    %s19 = scalar_lea.sflag [#allocation4], 1
    %20 = vsyncpa %s19, 0
    loop: start=0, step=1, limit=4
    $region2: #{tpu_custom_call.1} parent=1 // loop_pre_header
      _
    $region3: #{tpu_custom_call.1} parent=1 // loop_header
      %s22 = sphi 0, %s26
      %p23 = scmp.ge.s32.totalorder %s22, 4
      %s29 = sphi 0, %s41
      %s30 = sphi 0, %s37
      %s31 = sphi 0, %s29
      %s32 = sphi 0, %s30
      %s33 = sphi 0, %s31
      %s34 = sphi 0, %s32
      %s46 = sphi 0, %s48
      %s49 = sphi 0, %s46
      %s50 = sphi 0, %s49
      %s66 = sphi 0, %s50
      %s74 = sphi 0, %s76
      %s77 = sphi 0, %s74
      %s78 = sphi 0, %s77
      %s94 = sphi 0, %s78
      %s102 = sphi 0, %s104
      %s105 = sphi 0, %s102
      %s106 = sphi 0, %s105
      %s122 = sphi 0, %s106
      %s126 = sphi 0, %s126
      %s128 = sphi 0, %s126
      %s129 = sphi 0, %s128
      %s143 = sphi 0, %s129
      %s147 = sphi 0, %s147
      %s149 = sphi 0, %s147
      %s150 = sphi 0, %s149
      %s164 = sphi 0, %s150
      %s168 = sphi 0, %s168
      %s170 = sphi 0, %s168
      %s171 = sphi 0, %s170
      %s185 = sphi 0, %s171
      %s189 = sphi 0, %s189
      %s191 = sphi 0, %s189
      %s192 = sphi 0, %s191
      %s206 = sphi 0, %s192
      %s210 = sphi 0, %s210
      %s212 = sphi 0, %s210
      %s213 = sphi 0, %s212
      %s227 = sphi 0, %s213
      %s231 = sphi 0, %s231
      %s233 = sphi 0, %s231
      %s234 = sphi 0, %s233
      %s248 = sphi 0, %s234
      %s256 = sphi 0, %s258
      %s259 = sphi 0, %s256
      %s260 = sphi 0, %s259
      %s276 = sphi 0, %s260
    $region4: #{tpu_custom_call.1} parent=1 // loop_header_branch
      %25 = sbr.rel (%p23) target = $region8
    $region5: #{tpu_custom_call.1} parent=1 // loop_body
      %s27 = ssub.s32 %s22, 1
      %s28 = ssub.s32 %s22, 2
      %s35 = sadd.s32 1, %s30
      %p36 = scmp.ge.s32.totalorder %s35, 1
      %s37 = scalar_select %p36, 0, %s35
      %s38 = sadd.s32 1, %s29
      %s39 = scalar_select %p36, %s38, %s29
      %p40 = scmp.ge.s32.totalorder %s39, 2
      %s41 = scalar_select %p40, 0, %s39
      %s42 = ssub.s32 %s29, %s41
      %s43 = ssub.s32 %s30, %s37
      %s44 = sor.u32 %s42, %s43
      %p45 = scmp.eq.s32.totalorder %s44, 0
      %s47 = sadd.s32 %s46, 1
      %s48 = scalar_select %p45, %s46, %s47
      %p51 = pneg %p45
      %p52 = scmp.eq.s32.totalorder %s22, 1
      %p53 = por %p51, %p52
      %p54 = scmp.ne.s32.totalorder %s46, %s49
      %p55 = scmp.eq.s32.totalorder %s22, 0
      %p56 = por %p54, %p55
      %p57 = scmp.ne.s32.totalorder %s46, %s49
      %p58 = scmp.eq.s32.totalorder %s27, 1
      %p59 = por %p57, %p58
      %p60 = scmp.ne.s32.totalorder %s49, %s50
      %p61 = scmp.eq.s32.totalorder %s27, 0
      %p62 = por %p60, %p61
      %p63 = scmp.ne.s32.totalorder %s49, %s50
      %p64 = scmp.eq.s32.totalorder %s28, 1
      %p65 = por %p63, %p64
      %p67 = scmp.ne.s32.totalorder %s50, %s66
      %p68 = scmp.eq.s32.totalorder %s28, 0
      %p69 = por %p67, %p68
      %s70 = ssub.s32 %s29, %s41
      %s71 = ssub.s32 %s30, %s37
      %s72 = sor.u32 %s70, %s71
      %p73 = scmp.eq.s32.totalorder %s72, 0
      %s75 = sadd.s32 %s74, 1
      %s76 = scalar_select %p73, %s74, %s75
      %p79 = pneg %p73
      %p80 = scmp.eq.s32.totalorder %s22, 1
      %p81 = por %p79, %p80
      %p82 = scmp.ne.s32.totalorder %s74, %s77
      %p83 = scmp.eq.s32.totalorder %s22, 0
      %p84 = por %p82, %p83
      %p85 = scmp.ne.s32.totalorder %s74, %s77
      %p86 = scmp.eq.s32.totalorder %s27, 1
      %p87 = por %p85, %p86
      %p88 = scmp.ne.s32.totalorder %s77, %s78
      %p89 = scmp.eq.s32.totalorder %s27, 0
      %p90 = por %p88, %p89
      %p91 = scmp.ne.s32.totalorder %s77, %s78
      %p92 = scmp.eq.s32.totalorder %s28, 1
      %p93 = por %p91, %p92
      %p95 = scmp.ne.s32.totalorder %s78, %s94
      %p96 = scmp.eq.s32.totalorder %s28, 0
      %p97 = por %p95, %p96
      %s98 = ssub.s32 %s29, %s41
      %s99 = ssub.s32 %s30, %s37
      %s100 = sor.u32 %s98, %s99
      %p101 = scmp.eq.s32.totalorder %s100, 0
      %s103 = sadd.s32 %s102, 1
      %s104 = scalar_select %p101, %s102, %s103
      %p107 = pneg %p101
      %p108 = scmp.eq.s32.totalorder %s22, 1
      %p109 = por %p107, %p108
      %p110 = scmp.ne.s32.totalorder %s102, %s105
      %p111 = scmp.eq.s32.totalorder %s22, 0
      %p112 = por %p110, %p111
      %p113 = scmp.ne.s32.totalorder %s102, %s105
      %p114 = scmp.eq.s32.totalorder %s27, 1
      %p115 = por %p113, %p114
      %p116 = scmp.ne.s32.totalorder %s105, %s106
      %p117 = scmp.eq.s32.totalorder %s27, 0
      %p118 = por %p116, %p117
      %p119 = scmp.ne.s32.totalorder %s105, %s106
      %p120 = scmp.eq.s32.totalorder %s28, 1
      %p121 = por %p119, %p120
      %p123 = scmp.ne.s32.totalorder %s106, %s122
      %p124 = scmp.eq.s32.totalorder %s28, 0
      %p125 = por %p123, %p124
      %s127 = sadd.s32 %s126, 1
      %p130 = scmp.eq.s32.totalorder %s22, 1
      %p131 = scmp.ne.s32.totalorder %s126, %s128
      %p132 = scmp.eq.s32.totalorder %s22, 0
      %p133 = por %p131, %p132
      %p134 = scmp.ne.s32.totalorder %s126, %s128
      %p135 = scmp.eq.s32.totalorder %s27, 1
      %p136 = por %p134, %p135
      %p137 = scmp.ne.s32.totalorder %s128, %s129
      %p138 = scmp.eq.s32.totalorder %s27, 0
      %p139 = por %p137, %p138
      %p140 = scmp.ne.s32.totalorder %s128, %s129
      %p141 = scmp.eq.s32.totalorder %s28, 1
      %p142 = por %p140, %p141
      %p144 = scmp.ne.s32.totalorder %s129, %s143
      %p145 = scmp.eq.s32.totalorder %s28, 0
      %p146 = por %p144, %p145
      %s148 = sadd.s32 %s147, 1
      %p151 = scmp.eq.s32.totalorder %s22, 1
      %p152 = scmp.ne.s32.totalorder %s147, %s149
      %p153 = scmp.eq.s32.totalorder %s22, 0
      %p154 = por %p152, %p153
      %p155 = scmp.ne.s32.totalorder %s147, %s149
      %p156 = scmp.eq.s32.totalorder %s27, 1
      %p157 = por %p155, %p156
      %p158 = scmp.ne.s32.totalorder %s149, %s150
      %p159 = scmp.eq.s32.totalorder %s27, 0
      %p160 = por %p158, %p159
      %p161 = scmp.ne.s32.totalorder %s149, %s150
      %p162 = scmp.eq.s32.totalorder %s28, 1
      %p163 = por %p161, %p162
      %p165 = scmp.ne.s32.totalorder %s150, %s164
      %p166 = scmp.eq.s32.totalorder %s28, 0
      %p167 = por %p165, %p166
      %s169 = sadd.s32 %s168, 1
      %p172 = scmp.eq.s32.totalorder %s22, 1
      %p173 = scmp.ne.s32.totalorder %s168, %s170
      %p174 = scmp.eq.s32.totalorder %s22, 0
      %p175 = por %p173, %p174
      %p176 = scmp.ne.s32.totalorder %s168, %s170
      %p177 = scmp.eq.s32.totalorder %s27, 1
      %p178 = por %p176, %p177
      %p179 = scmp.ne.s32.totalorder %s170, %s171
      %p180 = scmp.eq.s32.totalorder %s27, 0
      %p181 = por %p179, %p180
      %p182 = scmp.ne.s32.totalorder %s170, %s171
      %p183 = scmp.eq.s32.totalorder %s28, 1
      %p184 = por %p182, %p183
      %p186 = scmp.ne.s32.totalorder %s171, %s185
      %p187 = scmp.eq.s32.totalorder %s28, 0
      %p188 = por %p186, %p187
      %s190 = sadd.s32 %s189, 1
      %p193 = scmp.eq.s32.totalorder %s22, 1
      %p194 = scmp.ne.s32.totalorder %s189, %s191
      %p195 = scmp.eq.s32.totalorder %s22, 0
      %p196 = por %p194, %p195
      %p197 = scmp.ne.s32.totalorder %s189, %s191
      %p198 = scmp.eq.s32.totalorder %s27, 1
      %p199 = por %p197, %p198
      %p200 = scmp.ne.s32.totalorder %s191, %s192
      %p201 = scmp.eq.s32.totalorder %s27, 0
      %p202 = por %p200, %p201
      %p203 = scmp.ne.s32.totalorder %s191, %s192
      %p204 = scmp.eq.s32.totalorder %s28, 1
      %p205 = por %p203, %p204
      %p207 = scmp.ne.s32.totalorder %s192, %s206
      %p208 = scmp.eq.s32.totalorder %s28, 0
      %p209 = por %p207, %p208
      %s211 = sadd.s32 %s210, 1
      %p214 = scmp.eq.s32.totalorder %s22, 1
      %p215 = scmp.ne.s32.totalorder %s210, %s212
      %p216 = scmp.eq.s32.totalorder %s22, 0
      %p217 = por %p215, %p216
      %p218 = scmp.ne.s32.totalorder %s210, %s212
      %p219 = scmp.eq.s32.totalorder %s27, 1
      %p220 = por %p218, %p219
      %p221 = scmp.ne.s32.totalorder %s212, %s213
      %p222 = scmp.eq.s32.totalorder %s27, 0
      %p223 = por %p221, %p222
      %p224 = scmp.ne.s32.totalorder %s212, %s213
      %p225 = scmp.eq.s32.totalorder %s28, 1
      %p226 = por %p224, %p225
      %p228 = scmp.ne.s32.totalorder %s213, %s227
      %p229 = scmp.eq.s32.totalorder %s28, 0
      %p230 = por %p228, %p229
      %s232 = sadd.s32 %s231, 1
      %p235 = scmp.eq.s32.totalorder %s22, 1
      %p236 = scmp.ne.s32.totalorder %s231, %s233
      %p237 = scmp.eq.s32.totalorder %s22, 0
      %p238 = por %p236, %p237
      %p239 = scmp.ne.s32.totalorder %s231, %s233
      %p240 = scmp.eq.s32.totalorder %s27, 1
      %p241 = por %p239, %p240
      %p242 = scmp.ne.s32.totalorder %s233, %s234
      %p243 = scmp.eq.s32.totalorder %s27, 0
      %p244 = por %p242, %p243
      %p245 = scmp.ne.s32.totalorder %s233, %s234
      %p246 = scmp.eq.s32.totalorder %s28, 1
      %p247 = por %p245, %p246
      %p249 = scmp.ne.s32.totalorder %s234, %s248
      %p250 = scmp.eq.s32.totalorder %s28, 0
      %p251 = por %p249, %p250
      %s252 = ssub.s32 %s29, %s41
      %s253 = ssub.s32 %s30, %s37
      %s254 = sor.u32 %s252, %s253
      %p255 = scmp.eq.s32.totalorder %s254, 0
      %s257 = sadd.s32 %s256, 1
      %s258 = scalar_select %p255, %s256, %s257
      %p261 = pneg %p255
      %p262 = scmp.eq.s32.totalorder %s22, 1
      %p263 = por %p261, %p262
      %p264 = scmp.ne.s32.totalorder %s256, %s259
      %p265 = scmp.eq.s32.totalorder %s22, 0
      %p266 = por %p264, %p265
      %p267 = scmp.ne.s32.totalorder %s256, %s259
      %p268 = scmp.eq.s32.totalorder %s27, 1
      %p269 = por %p267, %p268
      %p270 = scmp.ne.s32.totalorder %s259, %s260
      %p271 = scmp.eq.s32.totalorder %s27, 0
      %p272 = por %p270, %p271
      %p273 = scmp.ne.s32.totalorder %s259, %s260
      %p274 = scmp.eq.s32.totalorder %s28, 1
      %p275 = por %p273, %p274
      %p277 = scmp.ne.s32.totalorder %s260, %s276
      %p278 = scmp.eq.s32.totalorder %s28, 0
      %p279 = por %p277, %p278
      %p280 = scmp.le.s32.totalorder 1, %s22
      %p281 = scmp.lt.s32.totalorder %s22, 3
      %p282 = pnand %p280, %p281
      %p283 = pneg %p282
      // Predicated region
      $region9: #{tpu_custom_call.1} parent=5 // pred_check
        _
      $region10: #{tpu_custom_call.1} parent=5 // pred_check_branch
        %285 = sbr.rel (%p282) target = $region12
      $region11: #{tpu_custom_call.1} parent=5 // pred_region
        %s286 = ssub.s32 %s22, 1
        // Predicated region
        $region13: #{tpu_custom_call.1} parent=11 // pred_check
          %p287 = pneg %p139
        $region14: #{tpu_custom_call.1} parent=11 // pred_check_branch
          %289 = sbr.rel (%p287) target = $region16
        $region15: #{tpu_custom_call.1} parent=11 // pred_region
          _
        $region16: #{tpu_custom_call.1} parent=11 // pred_fallthru
          _
        // Predicated region
        $region17: #{tpu_custom_call.1} parent=11 // pred_check
          %p290 = pneg %p160
        $region18: #{tpu_custom_call.1} parent=11 // pred_check_branch
          %292 = sbr.rel (%p290) target = $region20
        $region19: #{tpu_custom_call.1} parent=11 // pred_region
          %s294 = ssub.s32 16, 16
          %295 = vsyncadd [#allocation6], %s294
          %s297 = sshll.u32 [#allocation5], 4
          %s298 = int_to_ptr.vmem [resolvable:$true] %s297
          %300 = dma.hbm_to_vmem [thread:$0]  %s4, 16, %s298, [#allocation6]
        $region20: #{tpu_custom_call.1} parent=11 // pred_fallthru
          _
        // Predicated region
        $region21: #{tpu_custom_call.1} parent=11 // pred_check
          %p301 = pneg %p181
        $region22: #{tpu_custom_call.1} parent=11 // pred_check_branch
          %303 = sbr.rel (%p301) target = $region24
        $region23: #{tpu_custom_call.1} parent=11 // pred_region
          _
        $region24: #{tpu_custom_call.1} parent=11 // pred_fallthru
          _
        // Predicated region
        $region25: #{tpu_custom_call.1} parent=11 // pred_check
          %p304 = pneg %p202
        $region26: #{tpu_custom_call.1} parent=11 // pred_check_branch
          %306 = sbr.rel (%p304) target = $region28
        $region27: #{tpu_custom_call.1} parent=11 // pred_region
          %s308 = ssub.s32 16, 16
          %309 = vsyncadd [#allocation6], %s308
          %s311 = sshll.u32 [#allocation7], 4
          %s312 = int_to_ptr.vmem [resolvable:$true] %s311
          %314 = dma.hbm_to_vmem [thread:$0]  %s6, 16, %s312, [#allocation6]
        $region28: #{tpu_custom_call.1} parent=11 // pred_fallthru
          _
        // Predicated region
        $region29: #{tpu_custom_call.1} parent=11 // pred_check
          %p315 = pneg %p223
        $region30: #{tpu_custom_call.1} parent=11 // pred_check_branch
          %317 = sbr.rel (%p315) target = $region32
        $region31: #{tpu_custom_call.1} parent=11 // pred_region
          _
        $region32: #{tpu_custom_call.1} parent=11 // pred_fallthru
          _
        // Predicated region
        $region33: #{tpu_custom_call.1} parent=11 // pred_check
          %p318 = pneg %p244
        $region34: #{tpu_custom_call.1} parent=11 // pred_check_branch
          %320 = sbr.rel (%p318) target = $region36
        $region35: #{tpu_custom_call.1} parent=11 // pred_region
          _
        $region36: #{tpu_custom_call.1} parent=11 // pred_fallthru
          _
      $region12: #{tpu_custom_call.1} parent=5 // pred_fallthru
        _
      %p321 = scmp.lt.s32.totalorder %s22, 2
      // Predicated region
      $region37: #{tpu_custom_call.1} parent=5 // pred_check
        %p322 = pneg %p321
      $region38: #{tpu_custom_call.1} parent=5 // pred_check_branch
        %324 = sbr.rel (%p322) target = $region40
      $region39: #{tpu_custom_call.1} parent=5 // pred_region
        // Predicated region
        $region41: #{tpu_custom_call.1} parent=39 // pred_check
          %p325 = pneg %p56
        $region42: #{tpu_custom_call.1} parent=39 // pred_check_branch
          %327 = sbr.rel (%p325) target = $region44
        $region43: #{tpu_custom_call.1} parent=39 // pred_region
          %s328 = sand.u32 %s46, 1
          %s329 = scalar_lea.sflag [#allocation3], %s328
          %s330 = sand.u32 %s46, 1
          %s331 = smul.addr %s330, 256
          %s332 = scalar_lea.vmem [#allocation2], %s331
          %s333 = smul.u32 16, %s30
          %s335 = ssub.s32 4096, 4096
          %336 = vsyncadd %s329, %s335
          %s337 = smul.addr %s333, 2
          %s338 = smul.addr %s29, 32
          %s339 = sadd.s32 %s337, %s338
          %s340 = smul.addr %s339, 128
          %s341 = scalar_lea.hbm %s0, %s340
          %s342 = sshll.u32 %s332, 4
          %s343 = int_to_ptr.vmem [resolvable:$true] %s342
          %348 = dma.hbm_to_vmem [thread:$0]  %s341, 4096, %s343, %s329, 128, 128, 8
        $region44: #{tpu_custom_call.1} parent=39 // pred_fallthru
          _
        // Predicated region
        $region45: #{tpu_custom_call.1} parent=39 // pred_check
          %p349 = pneg %p84
        $region46: #{tpu_custom_call.1} parent=39 // pred_check_branch
          %351 = sbr.rel (%p349) target = $region48
        $region47: #{tpu_custom_call.1} parent=39 // pred_region
          %p352 = scmp.lt.s32.totalorder %s29, 1
          %s353 = scalar_select %p352, %s29, 1
          %p354 = scmp.lt.s32.totalorder %s30, 0
          %s355 = scalar_select %p354, %s30, 0
          %s356 = smul.addr %s355, 2
          %s357 = smul.addr %s353, 2
          %s358 = sadd.s32 %s356, %s357
          %s359 = smul.addr %s358, 8
          %s360 = scalar_lea.vmem %s1, %s359
        $region48: #{tpu_custom_call.1} parent=39 // pred_fallthru
          _
        // Predicated region
        $region49: #{tpu_custom_call.1} parent=39 // pred_check
          %p361 = pneg %p112
        $region50: #{tpu_custom_call.1} parent=39 // pred_check_branch
          %363 = sbr.rel (%p361) target = $region52
        $region51: #{tpu_custom_call.1} parent=39 // pred_region
          %p364 = scmp.lt.s32.totalorder %s29, 1
          %s365 = scalar_select %p364, %s29, 1
          %p366 = scmp.lt.s32.totalorder %s30, 0
          %s367 = scalar_select %p366, %s30, 0
          %s368 = smul.addr %s367, 2
          %s369 = smul.addr %s365, 2
          %s370 = sadd.s32 %s368, %s369
          %s371 = smul.addr %s370, 8
          %s372 = scalar_lea.vmem %s2, %s371
        $region52: #{tpu_custom_call.1} parent=39 // pred_fallthru
          _
      $region40: #{tpu_custom_call.1} parent=5 // pred_fallthru
        _
      %p373 = scmp.le.s32.totalorder 1, %s22
      %p374 = scmp.lt.s32.totalorder %s22, 3
      %p375 = pnand %p373, %p374
      %p376 = pneg %p375
      // Predicated region
      $region53: #{tpu_custom_call.1} parent=5 // pred_check
        _
      $region54: #{tpu_custom_call.1} parent=5 // pred_check_branch
        %378 = sbr.rel (%p375) target = $region56
      $region55: #{tpu_custom_call.1} parent=5 // pred_region
        %s379 = ssub.s32 %s22, 1
        %s380 = sand.u32 %s49, 1
        %s381 = scalar_lea.sflag [#allocation3], %s380
        %s382 = sand.u32 %s49, 1
        %s383 = smul.addr %s382, 256
        %s384 = scalar_lea.vmem [#allocation2], %s383
        // Predicated region
        $region57: #{tpu_custom_call.1} parent=55 // pred_check
          %p385 = pneg %p62
        $region58: #{tpu_custom_call.1} parent=55 // pred_check_branch
          %387 = sbr.rel (%p385) target = $region60
        $region59: #{tpu_custom_call.1} parent=55 // pred_region
          %388 = dma.done %s381, 4096
        $region60: #{tpu_custom_call.1} parent=55 // pred_fallthru
          _
        // Predicated region
        $region61: #{tpu_custom_call.1} parent=55 // pred_check
          %p389 = pneg %p160
        $region62: #{tpu_custom_call.1} parent=55 // pred_check_branch
          %391 = sbr.rel (%p389) target = $region64
        $region63: #{tpu_custom_call.1} parent=55 // pred_region
          %392 = dma.done [#allocation6], 16
        $region64: #{tpu_custom_call.1} parent=55 // pred_fallthru
          _
        // Predicated region
        $region65: #{tpu_custom_call.1} parent=55 // pred_check
          %p393 = pneg %p202
        $region66: #{tpu_custom_call.1} parent=55 // pred_check_branch
          %395 = sbr.rel (%p393) target = $region68
        $region67: #{tpu_custom_call.1} parent=55 // pred_region
          %396 = dma.done [#allocation6], 16
        $region68: #{tpu_custom_call.1} parent=55 // pred_fallthru
          _
        %s397 = sand.u32 %s49, 1
        %s398 = scalar_lea.sflag [#allocation3], %s397
        %s399 = sand.u32 %s49, 1
        %s400 = smul.addr %s399, 256
        %s401 = scalar_lea.vmem [#allocation2], %s400
        %p402 = pneg %p62
        %p403 = pneg %p59
        %p404 = scmp.lt.s32.totalorder %s31, 1
        %s405 = scalar_select %p404, %s31, 1
        %p406 = scmp.lt.s32.totalorder %s32, 0
        %s407 = scalar_select %p406, %s32, 0
        %s408 = smul.addr %s407, 2
        %s409 = smul.addr %s405, 2
        %s410 = sadd.s32 %s408, %s409
        %s411 = smul.addr %s410, 8
        %s412 = scalar_lea.vmem %s1, %s411
        %p413 = pneg %p90
        %p414 = pneg %p87
        %p415 = scmp.lt.s32.totalorder %s31, 1
        %s416 = scalar_select %p415, %s31, 1
        %p417 = scmp.lt.s32.totalorder %s32, 0
        %s418 = scalar_select %p417, %s32, 0
        %s419 = smul.addr %s418, 2
        %s420 = smul.addr %s416, 2
        %s421 = sadd.s32 %s419, %s420
        %s422 = smul.addr %s421, 8
        %s423 = scalar_lea.vmem %s2, %s422
        %p424 = pneg %p118
        %p425 = pneg %p115
        %p426 = pneg %p139
        %p427 = pneg %p136
        %p428 = pneg %p160
        %p429 = pneg %p157
        %p430 = pneg %p181
        %p431 = pneg %p178
        %p432 = pneg %p202
        %p433 = pneg %p199
        %p434 = pneg %p223
        %p435 = pneg %p220
        %p436 = pneg %p244
        %p437 = pneg %p241
        %p438 = pneg %p272
        %p439 = pneg %p269
        %s440 = sand.u32 %s259, 1
        %s441 = scalar_lea.sflag [#allocation4], %s440
        %s442 = sand.u32 %s259, 1
        %s443 = smul.addr %s442, 256
        %s444 = scalar_lea.vmem [#allocation8], %s443
        %s445 = smul.u32 16, %s32
        %p446 = scmp.lt.s32.totalorder %s31, 1
        %s447 = scalar_select %p446, %s31, 1
        %p448 = scmp.lt.s32.totalorder %s32, 0
        %s449 = scalar_select %p448, %s32, 0
        %s450 = smul.addr %s449, 2
        %s451 = smul.addr %s447, 2
        %s452 = sadd.s32 %s450, %s451
        %s453 = smul.addr %s452, 8
        %s454 = scalar_lea.vmem %s1, %s453
        %p455 = scmp.lt.s32.totalorder %s31, 1
        %s456 = scalar_select %p455, %s31, 1
        %p457 = scmp.lt.s32.totalorder %s32, 0
        %s458 = scalar_select %p457, %s32, 0
        %s459 = smul.addr %s458, 2
        %s460 = smul.addr %s456, 2
        %s461 = sadd.s32 %s459, %s460
        %s462 = smul.addr %s461, 8
        %s463 = scalar_lea.vmem %s2, %s462
        %s464 = smul.u32 16, %s32
        %v466 = vld [vmem:[%s3] sm:$0xf]
        %v467 = vld [vmem:[%s3 + $0x4] sm:$0xf]
        %v468 = vld [vmem:[%s3 + $0x8] sm:$0xf]
        %v469 = vld [vmem:[%s3 + $0xc] sm:$0xf]
        %v470 = vld [vmem:[#allocation5] sm:$0x1]
        %v471 = vld [vmem:[%s384] sm:$0xff]
        %v472 = vld [vmem:[%s384 + $0x8] sm:$0xff]
        %v473 = vld [vmem:[%s384 + $0x10] sm:$0xff]
        %v474 = vld [vmem:[%s384 + $0x18] sm:$0xff]
        %v475 = vld [vmem:[%s384 + $0x20] sm:$0xff]
        %v476 = vld [vmem:[%s384 + $0x28] sm:$0xff]
        %v477 = vld [vmem:[%s384 + $0x30] sm:$0xff]
        %v478 = vld [vmem:[%s384 + $0x38] sm:$0xff]
        %v479 = vld [vmem:[%s384 + $0x40] sm:$0xff]
        %v480 = vld [vmem:[%s384 + $0x48] sm:$0xff]
        %v481 = vld [vmem:[%s384 + $0x50] sm:$0xff]
        %v482 = vld [vmem:[%s384 + $0x58] sm:$0xff]
        %v483 = vld [vmem:[%s384 + $0x60] sm:$0xff]
        %v484 = vld [vmem:[%s384 + $0x68] sm:$0xff]
        %v485 = vld [vmem:[%s384 + $0x70] sm:$0xff]
        %v486 = vld [vmem:[%s384 + $0x78] sm:$0xff]
        %v487 = vld [vmem:[%s384 + $0x80] sm:$0xff]
        %v488 = vld [vmem:[%s384 + $0x88] sm:$0xff]
        %v489 = vld [vmem:[%s384 + $0x90] sm:$0xff]
        %v490 = vld [vmem:[%s384 + $0x98] sm:$0xff]
        %v491 = vld [vmem:[%s384 + $0xa0] sm:$0xff]
        %v492 = vld [vmem:[%s384 + $0xa8] sm:$0xff]
        %v493 = vld [vmem:[%s384 + $0xb0] sm:$0xff]
        %v494 = vld [vmem:[%s384 + $0xb8] sm:$0xff]
        %v495 = vld [vmem:[%s384 + $0xc0] sm:$0xff]
        %v496 = vld [vmem:[%s384 + $0xc8] sm:$0xff]
        %v497 = vld [vmem:[%s384 + $0xd0] sm:$0xff]
        %v498 = vld [vmem:[%s384 + $0xd8] sm:$0xff]
        %v499 = vld [vmem:[%s384 + $0xe0] sm:$0xff]
        %v500 = vld [vmem:[%s384 + $0xe8] sm:$0xff]
        %v501 = vld [vmem:[%s384 + $0xf0] sm:$0xff]
        %v502 = vld [vmem:[%s384 + $0xf8] sm:$0xff]
        %v503 = vpack.c.bf16 %v472, %v471
        %v504 = vpack.c.bf16 %v474, %v473
        %v505 = vpack.c.bf16 %v476, %v475
        %v506 = vpack.c.bf16 %v478, %v477
        %v507 = vpack.c.bf16 %v480, %v479
        %v508 = vpack.c.bf16 %v482, %v481
        %v509 = vpack.c.bf16 %v484, %v483
        %v510 = vpack.c.bf16 %v486, %v485
        %v511 = vpack.c.bf16 %v488, %v487
        %v512 = vpack.c.bf16 %v490, %v489
        %v513 = vpack.c.bf16 %v492, %v491
        %v514 = vpack.c.bf16 %v494, %v493
        %v515 = vpack.c.bf16 %v496, %v495
        %v516 = vpack.c.bf16 %v498, %v497
        %v517 = vpack.c.bf16 %v500, %v499
        %v518 = vpack.c.bf16 %v502, %v501
        %v520 = vlaneseq
        %v521 = vshrl.u32 %v520, 7
        %v522 = vsub.s32 0, %v521
        %v523 = vrot.slane %v470, %v522
        %v529 = vunpack.c.l.b16 %v466
        %v530 = vunpack.c.l.b16 %v467
        %v531 = vunpack.c.l.b16 %v468
        %v532 = vunpack.c.l.b16 %v469
        %v533 = vpack.c.b16 %v530, %v529
        %v534 = vpack.c.b16 %v532, %v531
        %vm537 = vcmask 261120
        %v539 = vsel %vm537, %v503, 0
        %v542 = vsel %vm537, %v504, 0
        %v545 = vsel %vm537, %v505, 0
        %v548 = vsel %vm537, %v506, 0
        %v551 = vsel %vm537, %v507, 0
        %v554 = vsel %vm537, %v508, 0
        %v557 = vsel %vm537, %v509, 0
        %v560 = vsel %vm537, %v510, 0
        %v563 = vsel %vm537, %v511, 0
        %v566 = vsel %vm537, %v512, 0
        %v569 = vsel %vm537, %v513, 0
        %v572 = vsel %vm537, %v514, 0
        %v575 = vsel %vm537, %v515, 0
        %v578 = vsel %vm537, %v516, 0
        %v581 = vsel %vm537, %v517, 0
        %v584 = vsel %vm537, %v518, 0
        %586 = vmatprep.subr.bf16.mxu0 0
        %587 = vmatpush1.bf16.msra.mxu0 0
        %588 = vmatprep.subr.bf16.mxu0 0
        %589 = vmatpush1.bf16.msra.mxu0 0
        %590 = vmatprep.subr.bf16.mxu0 0
        %591 = vmatpush1.bf16.msra.mxu0 0
        %592 = vmatprep.subr.bf16.mxu0 0
        %593 = vmatpush1.bf16.msra.mxu0 0
        %594 = vmatprep.subr.bf16.mxu0 0
        %595 = vmatpush1.bf16.msra.mxu0 0
        %596 = vmatprep.subr.bf16.mxu0 0
        %597 = vmatpush1.bf16.msra.mxu0 0
        %598 = vmatprep.subr.bf16.mxu0 0
        %599 = vmatpush1.bf16.msra.mxu0 %v534
        %600 = vmatprep.subr.bf16.mxu0 0
        %601 = vmatpush1.bf16.msra.mxu0 %v533
        %602 = vmatprep.subr.bf16.mxu0 0
        %603 = vmatpush2.bf16.msra.mxu0 0
        %604 = vmatprep.subr.bf16.mxu0 0
        %605 = vmatpush2.bf16.msra.mxu0 0
        %606 = vmatprep.subr.bf16.mxu0 0
        %607 = vmatpush2.bf16.msra.mxu0 0
        %608 = vmatprep.subr.bf16.mxu0 0
        %609 = vmatpush2.bf16.msra.mxu0 0
        %610 = vmatprep.subr.bf16.mxu0 0
        %611 = vmatpush2.bf16.msra.mxu0 0
        %612 = vmatprep.subr.bf16.mxu0 0
        %613 = vmatpush2.bf16.msra.mxu0 0
        %614 = vmatprep.subr.bf16.mxu0 0
        %615 = vmatpush2.bf16.msra.mxu0 0
        %616 = vmatprep.subr.bf16.mxu0 0
        %617 = vmatpush2.bf16.msra.mxu0 0
        %618 = vmatprep.mubr.bf16.mxu0 0
        %619 = vmatmul.mubr.bf16.gmra.mxu0 %v539
        %v620 = vpop.f32.mrf.mxu0
        %v621 = vadd.f32 %v523, %v620
        %v622 = vpop.f32.mrf.mxu0
        %v623 = vpop.f32.mrf.mxu0
        %v624 = vadd.f32 %v523, %v623
        %v625 = vpop.f32.mrf.mxu0
        %626 = vmatprep.mubr.bf16.mxu0 0
        %627 = vmatmul.mubr.bf16.gmra.mxu0 %v542
        %v628 = vpop.f32.mrf.mxu0
        %v629 = vadd.f32 %v523, %v628
        %v630 = vpop.f32.mrf.mxu0
        %v631 = vpop.f32.mrf.mxu0
        %v632 = vadd.f32 %v523, %v631
        %v633 = vpop.f32.mrf.mxu0
        %634 = vmatprep.mubr.bf16.mxu0 0
        %635 = vmatmul.mubr.bf16.gmra.mxu0 %v545
        %v636 = vpop.f32.mrf.mxu0
        %v637 = vadd.f32 %v523, %v636
        %v638 = vpop.f32.mrf.mxu0
        %v639 = vpop.f32.mrf.mxu0
        %v640 = vadd.f32 %v523, %v639
        %v641 = vpop.f32.mrf.mxu0
        %642 = vmatprep.mubr.bf16.mxu0 0
        %643 = vmatmul.mubr.bf16.gmra.mxu0 %v548
        %v644 = vpop.f32.mrf.mxu0
        %v645 = vadd.f32 %v523, %v644
        %v646 = vpop.f32.mrf.mxu0
        %v647 = vpop.f32.mrf.mxu0
        %v648 = vadd.f32 %v523, %v647
        %v649 = vpop.f32.mrf.mxu0
        %650 = vmatprep.mubr.bf16.mxu0 0
        %651 = vmatmul.mubr.bf16.gmra.mxu0 %v551
        %v652 = vpop.f32.mrf.mxu0
        %v653 = vadd.f32 %v523, %v652
        %v654 = vpop.f32.mrf.mxu0
        %v655 = vpop.f32.mrf.mxu0
        %v656 = vadd.f32 %v523, %v655
        %v657 = vpop.f32.mrf.mxu0
        %658 = vmatprep.mubr.bf16.mxu0 0
        %659 = vmatmul.mubr.bf16.gmra.mxu0 %v554
        %v660 = vpop.f32.mrf.mxu0
        %v661 = vadd.f32 %v523, %v660
        %v662 = vpop.f32.mrf.mxu0
        %v663 = vpop.f32.mrf.mxu0
        %v664 = vadd.f32 %v523, %v663
        %v665 = vpop.f32.mrf.mxu0
        %666 = vmatprep.mubr.bf16.mxu0 0
        %667 = vmatmul.mubr.bf16.gmra.mxu0 %v557
        %v668 = vpop.f32.mrf.mxu0
        %v669 = vadd.f32 %v523, %v668
        %v670 = vpop.f32.mrf.mxu0
        %v671 = vpop.f32.mrf.mxu0
        %v672 = vadd.f32 %v523, %v671
        %v673 = vpop.f32.mrf.mxu0
        %674 = vmatprep.mubr.bf16.mxu0 0
        %675 = vmatmul.mubr.bf16.gmra.mxu0 %v560
        %v676 = vpop.f32.mrf.mxu0
        %v677 = vadd.f32 %v523, %v676
        %v678 = vpop.f32.mrf.mxu0
        %v679 = vpop.f32.mrf.mxu0
        %v680 = vadd.f32 %v523, %v679
        %v681 = vpop.f32.mrf.mxu0
        %682 = vmatprep.mubr.bf16.mxu0 0
        %683 = vmatmul.mubr.bf16.gmra.mxu0 %v563
        %v684 = vpop.f32.mrf.mxu0
        %v685 = vadd.f32 %v523, %v684
        %v686 = vpop.f32.mrf.mxu0
        %v687 = vpop.f32.mrf.mxu0
        %v688 = vadd.f32 %v523, %v687
        %v689 = vpop.f32.mrf.mxu0
        %690 = vmatprep.mubr.bf16.mxu0 0
        %691 = vmatmul.mubr.bf16.gmra.mxu0 %v566
        %v692 = vpop.f32.mrf.mxu0
        %v693 = vadd.f32 %v523, %v692
        %v694 = vpop.f32.mrf.mxu0
        %v695 = vpop.f32.mrf.mxu0
        %v696 = vadd.f32 %v523, %v695
        %v697 = vpop.f32.mrf.mxu0
        %698 = vmatprep.mubr.bf16.mxu0 0
        %699 = vmatmul.mubr.bf16.gmra.mxu0 %v569
        %v700 = vpop.f32.mrf.mxu0
        %v701 = vadd.f32 %v523, %v700
        %v702 = vpop.f32.mrf.mxu0
        %v703 = vpop.f32.mrf.mxu0
        %v704 = vadd.f32 %v523, %v703
        %v705 = vpop.f32.mrf.mxu0
        %706 = vmatprep.mubr.bf16.mxu0 0
        %707 = vmatmul.mubr.bf16.gmra.mxu0 %v572
        %v708 = vpop.f32.mrf.mxu0
        %v709 = vadd.f32 %v523, %v708
        %v710 = vpop.f32.mrf.mxu0
        %v711 = vpop.f32.mrf.mxu0
        %v712 = vadd.f32 %v523, %v711
        %v713 = vpop.f32.mrf.mxu0
        %714 = vmatprep.mubr.bf16.mxu0 0
        %715 = vmatmul.mubr.bf16.gmra.mxu0 %v575
        %v716 = vpop.f32.mrf.mxu0
        %v717 = vadd.f32 %v523, %v716
        %v718 = vpop.f32.mrf.mxu0
        %v719 = vpop.f32.mrf.mxu0
        %v720 = vadd.f32 %v523, %v719
        %v721 = vpop.f32.mrf.mxu0
        %722 = vmatprep.mubr.bf16.mxu0 0
        %723 = vmatmul.mubr.bf16.gmra.mxu0 %v578
        %v724 = vpop.f32.mrf.mxu0
        %v725 = vadd.f32 %v523, %v724
        %v726 = vpop.f32.mrf.mxu0
        %v727 = vpop.f32.mrf.mxu0
        %v728 = vadd.f32 %v523, %v727
        %v729 = vpop.f32.mrf.mxu0
        %730 = vmatprep.mubr.bf16.mxu0 0
        %731 = vmatmul.mubr.bf16.gmra.mxu0 %v581
        %v732 = vpop.f32.mrf.mxu0
        %v733 = vadd.f32 %v523, %v732
        %v734 = vpop.f32.mrf.mxu0
        %v735 = vpop.f32.mrf.mxu0
        %v736 = vadd.f32 %v523, %v735
        %v737 = vpop.f32.mrf.mxu0
        %738 = vmatprep.mubr.bf16.mxu0 0
        %739 = vmatmul.mubr.bf16.gmra.mxu0 %v584
        %v740 = vpop.f32.mrf.mxu0
        %v741 = vadd.f32 %v523, %v740
        %v742 = vpop.f32.mrf.mxu0
        %v743 = vpop.f32.mrf.mxu0
        %v744 = vadd.f32 %v523, %v743
        %v745 = vpop.f32.mrf.mxu0
        %746 = vdwg.mxu0
        %v747 = vmax.f32 %v621, 0.0
        %v748 = vmax.f32 %v624, 0.0
        %v749 = vmax.f32 %v629, 0.0
        %v750 = vmax.f32 %v632, 0.0
        %v751 = vmax.f32 %v637, 0.0
        %v752 = vmax.f32 %v640, 0.0
        %v753 = vmax.f32 %v645, 0.0
        %v754 = vmax.f32 %v648, 0.0
        %v755 = vmax.f32 %v653, 0.0
        %v756 = vmax.f32 %v656, 0.0
        %v757 = vmax.f32 %v661, 0.0
        %v758 = vmax.f32 %v664, 0.0
        %v759 = vmax.f32 %v669, 0.0
        %v760 = vmax.f32 %v672, 0.0
        %v761 = vmax.f32 %v677, 0.0
        %v762 = vmax.f32 %v680, 0.0
        %v763 = vmax.f32 %v685, 0.0
        %v764 = vmax.f32 %v688, 0.0
        %v765 = vmax.f32 %v693, 0.0
        %v766 = vmax.f32 %v696, 0.0
        %v767 = vmax.f32 %v701, 0.0
        %v768 = vmax.f32 %v704, 0.0
        %v769 = vmax.f32 %v709, 0.0
        %v770 = vmax.f32 %v712, 0.0
        %v771 = vmax.f32 %v717, 0.0
        %v772 = vmax.f32 %v720, 0.0
        %v773 = vmax.f32 %v725, 0.0
        %v774 = vmax.f32 %v728, 0.0
        %v775 = vmax.f32 %v733, 0.0
        %v776 = vmax.f32 %v736, 0.0
        %v777 = vmax.f32 %v741, 0.0
        %v778 = vmax.f32 %v744, 0.0
        %v779 = vpack.c.bf16 %v748, %v747
        %v780 = vpack.c.bf16 %v750, %v749
        %v781 = vpack.c.bf16 %v752, %v751
        %v782 = vpack.c.bf16 %v754, %v753
        %v783 = vpack.c.bf16 %v756, %v755
        %v784 = vpack.c.bf16 %v758, %v757
        %v785 = vpack.c.bf16 %v760, %v759
        %v786 = vpack.c.bf16 %v762, %v761
        %v787 = vpack.c.bf16 %v764, %v763
        %v788 = vpack.c.bf16 %v766, %v765
        %v789 = vpack.c.bf16 %v768, %v767
        %v790 = vpack.c.bf16 %v770, %v769
        %v791 = vpack.c.bf16 %v772, %v771
        %v792 = vpack.c.bf16 %v774, %v773
        %v793 = vpack.c.bf16 %v776, %v775
        %v794 = vpack.c.bf16 %v778, %v777
        %v795 = vld [vmem:[%s454] sm:$0xff]
        %v796 = vld [vmem:[%s454 + $0x8] sm:$0xff]
        %v797 = vpack.c.bf16 %v796, %v795
        %v799 = vsel %vm537, %v797, 0
        %801 = vmatprep.subr.bf16.mxu0 0
        %802 = vmatpush1.bf16.msra.mxu0 0
        %803 = vmatprep.subr.bf16.mxu0 0
        %804 = vmatpush1.bf16.msra.mxu0 0
        %805 = vmatprep.subr.bf16.mxu0 0
        %806 = vmatpush1.bf16.msra.mxu0 0
        %807 = vmatprep.subr.bf16.mxu0 0
        %808 = vmatpush1.bf16.msra.mxu0 0
        %809 = vmatprep.subr.bf16.mxu0 0
        %810 = vmatpush1.bf16.msra.mxu0 0
        %811 = vmatprep.subr.bf16.mxu0 0
        %812 = vmatpush1.bf16.msra.mxu0 0
        %813 = vmatprep.subr.bf16.mxu0 0
        %814 = vmatpush1.bf16.msra.mxu0 %v534
        %815 = vmatprep.subr.bf16.mxu0 0
        %816 = vmatpush1.bf16.msra.mxu0 %v533
        %817 = vmatprep.subr.bf16.mxu0 0
        %818 = vmatpush2.bf16.msra.mxu0 0
        %819 = vmatprep.subr.bf16.mxu0 0
        %820 = vmatpush2.bf16.msra.mxu0 0
        %821 = vmatprep.subr.bf16.mxu0 0
        %822 = vmatpush2.bf16.msra.mxu0 0
        %823 = vmatprep.subr.bf16.mxu0 0
        %824 = vmatpush2.bf16.msra.mxu0 0
        %825 = vmatprep.subr.bf16.mxu0 0
        %826 = vmatpush2.bf16.msra.mxu0 0
        %827 = vmatprep.subr.bf16.mxu0 0
        %828 = vmatpush2.bf16.msra.mxu0 0
        %829 = vmatprep.subr.bf16.mxu0 0
        %830 = vmatpush2.bf16.msra.mxu0 0
        %831 = vmatprep.subr.bf16.mxu0 0
        %832 = vmatpush2.bf16.msra.mxu0 0
        %833 = vmatprep.mubr.bf16.mxu0 0
        %834 = vmatmul.mubr.bf16.gmra.mxu0 %v799
        %v835 = vpop.f32.mrf.mxu0
        %v836 = vadd.f32 %v523, %v835
        %v837 = vpop.f32.mrf.mxu0
        %v838 = vpop.f32.mrf.mxu0
        %v839 = vadd.f32 %v523, %v838
        %v840 = vpop.f32.mrf.mxu0
        %841 = vdwg.mxu0
        %v842 = vmax.f32 %v836, 0.0
        %v843 = vmax.f32 %v839, 0.0
        %v844 = vpack.c.bf16 %v843, %v842
        %v845 = vld [vmem:[%s463] sm:$0xff]
        %v846 = vld [vmem:[%s463 + $0x8] sm:$0xff]
        %v847 = vpack.c.bf16 %v846, %v845
        %v849 = vsel %vm537, %v847, 0
        %851 = vmatprep.subr.bf16.mxu0 0
        %852 = vmatpush1.bf16.msra.mxu0 0
        %853 = vmatprep.subr.bf16.mxu0 0
        %854 = vmatpush1.bf16.msra.mxu0 0
        %855 = vmatprep.subr.bf16.mxu0 0
        %856 = vmatpush1.bf16.msra.mxu0 0
        %857 = vmatprep.subr.bf16.mxu0 0
        %858 = vmatpush1.bf16.msra.mxu0 0
        %859 = vmatprep.subr.bf16.mxu0 0
        %860 = vmatpush1.bf16.msra.mxu0 0
        %861 = vmatprep.subr.bf16.mxu0 0
        %862 = vmatpush1.bf16.msra.mxu0 0
        %863 = vmatprep.subr.bf16.mxu0 0
        %864 = vmatpush1.bf16.msra.mxu0 %v534
        %865 = vmatprep.subr.bf16.mxu0 0
        %866 = vmatpush1.bf16.msra.mxu0 %v533
        %867 = vmatprep.subr.bf16.mxu0 0
        %868 = vmatpush2.bf16.msra.mxu0 0
        %869 = vmatprep.subr.bf16.mxu0 0
        %870 = vmatpush2.bf16.msra.mxu0 0
        %871 = vmatprep.subr.bf16.mxu0 0
        %872 = vmatpush2.bf16.msra.mxu0 0
        %873 = vmatprep.subr.bf16.mxu0 0
        %874 = vmatpush2.bf16.msra.mxu0 0
        %875 = vmatprep.subr.bf16.mxu0 0
        %876 = vmatpush2.bf16.msra.mxu0 0
        %877 = vmatprep.subr.bf16.mxu0 0
        %878 = vmatpush2.bf16.msra.mxu0 0
        %879 = vmatprep.subr.bf16.mxu0 0
        %880 = vmatpush2.bf16.msra.mxu0 0
        %881 = vmatprep.subr.bf16.mxu0 0
        %882 = vmatpush2.bf16.msra.mxu0 0
        %883 = vmatprep.mubr.bf16.mxu0 0
        %884 = vmatmul.mubr.bf16.gmra.mxu0 %v849
        %v885 = vpop.f32.mrf.mxu0
        %v886 = vadd.f32 %v523, %v885
        %v887 = vpop.f32.mrf.mxu0
        %v888 = vpop.f32.mrf.mxu0
        %v889 = vadd.f32 %v523, %v888
        %v890 = vpop.f32.mrf.mxu0
        %891 = vdwg.mxu0
        %v892 = vmax.f32 %v886, 0.0
        %v893 = vmax.f32 %v889, 0.0
        %v894 = vpack.c.bf16 %v893, %v892
        %v896 = vshrl.u32 %v844, 16
        %v898 = vrot.slane %v896, 7
        %v899 = vshll.u32 %v844, 16
        %v901 = vor.u32 %v898, %v899
        %v903 = vshrl.u32 %v779, 16
        %v905 = vrot.slane %v903, 7
        %v906 = vshll.u32 %v779, 16
        %v908 = vor.u32 %v905, %v906
        %v910 = vshrl.u32 %v780, 16
        %v912 = vrot.slane %v910, 7
        %v913 = vshll.u32 %v780, 16
        %v915 = vor.u32 %v912, %v913
        %v917 = vshrl.u32 %v781, 16
        %v919 = vrot.slane %v917, 7
        %v920 = vshll.u32 %v781, 16
        %v922 = vor.u32 %v919, %v920
        %v924 = vshrl.u32 %v782, 16
        %v926 = vrot.slane %v924, 7
        %v927 = vshll.u32 %v782, 16
        %v929 = vor.u32 %v926, %v927
        %v931 = vshrl.u32 %v783, 16
        %v933 = vrot.slane %v931, 7
        %v934 = vshll.u32 %v783, 16
        %v936 = vor.u32 %v933, %v934
        %v938 = vshrl.u32 %v784, 16
        %v940 = vrot.slane %v938, 7
        %v941 = vshll.u32 %v784, 16
        %v943 = vor.u32 %v940, %v941
        %v945 = vshrl.u32 %v785, 16
        %v947 = vrot.slane %v945, 7
        %v948 = vshll.u32 %v785, 16
        %v950 = vor.u32 %v947, %v948
        %v952 = vshrl.u32 %v786, 16
        %v954 = vrot.slane %v952, 7
        %v955 = vshll.u32 %v786, 16
        %v957 = vor.u32 %v954, %v955
        %v959 = vshrl.u32 %v787, 16
        %v961 = vrot.slane %v959, 7
        %v962 = vshll.u32 %v787, 16
        %v964 = vor.u32 %v961, %v962
        %v966 = vshrl.u32 %v788, 16
        %v968 = vrot.slane %v966, 7
        %v969 = vshll.u32 %v788, 16
        %v971 = vor.u32 %v968, %v969
        %v973 = vshrl.u32 %v789, 16
        %v975 = vrot.slane %v973, 7
        %v976 = vshll.u32 %v789, 16
        %v978 = vor.u32 %v975, %v976
        %v980 = vshrl.u32 %v790, 16
        %v982 = vrot.slane %v980, 7
        %v983 = vshll.u32 %v790, 16
        %v985 = vor.u32 %v982, %v983
        %v987 = vshrl.u32 %v791, 16
        %v989 = vrot.slane %v987, 7
        %v990 = vshll.u32 %v791, 16
        %v992 = vor.u32 %v989, %v990
        %v994 = vshrl.u32 %v792, 16
        %v996 = vrot.slane %v994, 7
        %v997 = vshll.u32 %v792, 16
        %v999 = vor.u32 %v996, %v997
        %v1001 = vshrl.u32 %v793, 16
        %v1003 = vrot.slane %v1001, 7
        %v1004 = vshll.u32 %v793, 16
        %v1006 = vor.u32 %v1003, %v1004
        %v1008 = vshrl.u32 %v794, 16
        %v1010 = vrot.slane %v1008, 7
        %v1011 = vshll.u32 %v794, 16
        %v1013 = vor.u32 %v1010, %v1011
        %v1015 = vshrl.u32 %v894, 16
        %v1017 = vrot.slane %v1015, 7
        %v1018 = vshll.u32 %v894, 16
        %v1020 = vor.u32 %v1017, %v1018
        %vm1057 = vcmask 1040384
        %vm1058 = vsmask.f32 256
        %vm1059 = vmand %vm1057, %vm1058
        %v1060 = vsel %vm1059, 0, %v901
        %v1061 = vsel %vm1059, 0, %v908
        %v1062 = vsel %vm1059, 0, %v915
        %v1063 = vsel %vm1059, 0, %v922
        %v1064 = vsel %vm1059, 0, %v929
        %v1065 = vsel %vm1059, 0, %v936
        %v1066 = vsel %vm1059, 0, %v943
        %v1067 = vsel %vm1059, 0, %v950
        %v1068 = vsel %vm1059, 0, %v957
        %v1069 = vsel %vm1059, 0, %v964
        %v1070 = vsel %vm1059, 0, %v971
        %v1071 = vsel %vm1059, 0, %v978
        %v1072 = vsel %vm1059, 0, %v985
        %v1073 = vsel %vm1059, 0, %v992
        %v1074 = vsel %vm1059, 0, %v999
        %v1075 = vsel %vm1059, 0, %v1006
        %v1076 = vsel %vm1059, 0, %v1013
        %v1077 = vsel %vm1059, 0, %v1020
        %v1078 = vsel %vm1059, %v898, 0
        %v1079 = vsel %vm1059, %v905, 0
        %v1080 = vsel %vm1059, %v912, 0
        %v1081 = vsel %vm1059, %v919, 0
        %v1082 = vsel %vm1059, %v926, 0
        %v1083 = vsel %vm1059, %v933, 0
        %v1084 = vsel %vm1059, %v940, 0
        %v1085 = vsel %vm1059, %v947, 0
        %v1086 = vsel %vm1059, %v954, 0
        %v1087 = vsel %vm1059, %v961, 0
        %v1088 = vsel %vm1059, %v968, 0
        %v1089 = vsel %vm1059, %v975, 0
        %v1090 = vsel %vm1059, %v982, 0
        %v1091 = vsel %vm1059, %v989, 0
        %v1092 = vsel %vm1059, %v996, 0
        %v1093 = vsel %vm1059, %v1003, 0
        %v1094 = vsel %vm1059, %v1010, 0
        %v1095 = vsel %vm1059, %v1017, 0
        %vm1096 = vsmask.f32 7424
        %v1098 = vshrl.u32 %v1060, 16
        %v1100 = vshll.u32 %v1060, 16
        %v1102 = vrot.slane %v1100, 1
        %v1103 = vor.u32 %v1098, %v1102
        %v1105 = vshll.u32 %v1078, 16
        %v1107 = vrot.slane %v1105, 1
        %v1108 = vsel %vm1096, %v1103, %v1107
        %v1110 = vshrl.u32 %v1061, 16
        %v1112 = vshll.u32 %v1061, 16
        %v1114 = vrot.slane %v1112, 1
        %v1115 = vor.u32 %v1110, %v1114
        %v1117 = vshll.u32 %v1079, 16
        %v1119 = vrot.slane %v1117, 1
        %v1120 = vsel %vm1096, %v1115, %v1119
        %v1122 = vshrl.u32 %v1062, 16
        %v1124 = vshll.u32 %v1062, 16
        %v1126 = vrot.slane %v1124, 1
        %v1127 = vor.u32 %v1122, %v1126
        %v1129 = vshll.u32 %v1080, 16
        %v1131 = vrot.slane %v1129, 1
        %v1132 = vsel %vm1096, %v1127, %v1131
        %v1134 = vshrl.u32 %v1063, 16
        %v1136 = vshll.u32 %v1063, 16
        %v1138 = vrot.slane %v1136, 1
        %v1139 = vor.u32 %v1134, %v1138
        %v1141 = vshll.u32 %v1081, 16
        %v1143 = vrot.slane %v1141, 1
        %v1144 = vsel %vm1096, %v1139, %v1143
        %v1146 = vshrl.u32 %v1064, 16
        %v1148 = vshll.u32 %v1064, 16
        %v1150 = vrot.slane %v1148, 1
        %v1151 = vor.u32 %v1146, %v1150
        %v1153 = vshll.u32 %v1082, 16
        %v1155 = vrot.slane %v1153, 1
        %v1156 = vsel %vm1096, %v1151, %v1155
        %v1158 = vshrl.u32 %v1065, 16
        %v1160 = vshll.u32 %v1065, 16
        %v1162 = vrot.slane %v1160, 1
        %v1163 = vor.u32 %v1158, %v1162
        %v1165 = vshll.u32 %v1083, 16
        %v1167 = vrot.slane %v1165, 1
        %v1168 = vsel %vm1096, %v1163, %v1167
        %v1170 = vshrl.u32 %v1066, 16
        %v1172 = vshll.u32 %v1066, 16
        %v1174 = vrot.slane %v1172, 1
        %v1175 = vor.u32 %v1170, %v1174
        %v1177 = vshll.u32 %v1084, 16
        %v1179 = vrot.slane %v1177, 1
        %v1180 = vsel %vm1096, %v1175, %v1179
        %v1182 = vshrl.u32 %v1067, 16
        %v1184 = vshll.u32 %v1067, 16
        %v1186 = vrot.slane %v1184, 1
        %v1187 = vor.u32 %v1182, %v1186
        %v1189 = vshll.u32 %v1085, 16
        %v1191 = vrot.slane %v1189, 1
        %v1192 = vsel %vm1096, %v1187, %v1191
        %v1194 = vshrl.u32 %v1068, 16
        %v1196 = vshll.u32 %v1068, 16
        %v1198 = vrot.slane %v1196, 1
        %v1199 = vor.u32 %v1194, %v1198
        %v1201 = vshll.u32 %v1086, 16
        %v1203 = vrot.slane %v1201, 1
        %v1204 = vsel %vm1096, %v1199, %v1203
        %v1206 = vshrl.u32 %v1069, 16
        %v1208 = vshll.u32 %v1069, 16
        %v1210 = vrot.slane %v1208, 1
        %v1211 = vor.u32 %v1206, %v1210
        %v1213 = vshll.u32 %v1087, 16
        %v1215 = vrot.slane %v1213, 1
        %v1216 = vsel %vm1096, %v1211, %v1215
        %v1218 = vshrl.u32 %v1070, 16
        %v1220 = vshll.u32 %v1070, 16
        %v1222 = vrot.slane %v1220, 1
        %v1223 = vor.u32 %v1218, %v1222
        %v1225 = vshll.u32 %v1088, 16
        %v1227 = vrot.slane %v1225, 1
        %v1228 = vsel %vm1096, %v1223, %v1227
        %v1230 = vshrl.u32 %v1071, 16
        %v1232 = vshll.u32 %v1071, 16
        %v1234 = vrot.slane %v1232, 1
        %v1235 = vor.u32 %v1230, %v1234
        %v1237 = vshll.u32 %v1089, 16
        %v1239 = vrot.slane %v1237, 1
        %v1240 = vsel %vm1096, %v1235, %v1239
        %v1242 = vshrl.u32 %v1072, 16
        %v1244 = vshll.u32 %v1072, 16
        %v1246 = vrot.slane %v1244, 1
        %v1247 = vor.u32 %v1242, %v1246
        %v1249 = vshll.u32 %v1090, 16
        %v1251 = vrot.slane %v1249, 1
        %v1252 = vsel %vm1096, %v1247, %v1251
        %v1254 = vshrl.u32 %v1073, 16
        %v1256 = vshll.u32 %v1073, 16
        %v1258 = vrot.slane %v1256, 1
        %v1259 = vor.u32 %v1254, %v1258
        %v1261 = vshll.u32 %v1091, 16
        %v1263 = vrot.slane %v1261, 1
        %v1264 = vsel %vm1096, %v1259, %v1263
        %v1266 = vshrl.u32 %v1074, 16
        %v1268 = vshll.u32 %v1074, 16
        %v1270 = vrot.slane %v1268, 1
        %v1271 = vor.u32 %v1266, %v1270
        %v1273 = vshll.u32 %v1092, 16
        %v1275 = vrot.slane %v1273, 1
        %v1276 = vsel %vm1096, %v1271, %v1275
        %v1278 = vshrl.u32 %v1075, 16
        %v1280 = vshll.u32 %v1075, 16
        %v1282 = vrot.slane %v1280, 1
        %v1283 = vor.u32 %v1278, %v1282
        %v1285 = vshll.u32 %v1093, 16
        %v1287 = vrot.slane %v1285, 1
        %v1288 = vsel %vm1096, %v1283, %v1287
        %1289 = vrot.lane.b32.xlu0 %v1108, 8
        %v1290 = vpop.permute.xlu0 %1289
        %1291 = vrot.lane.b32.xlu0 %v1120, 8
        %v1292 = vpop.permute.xlu0 %1291
        %1293 = vrot.lane.b32.xlu0 %v1132, 8
        %v1294 = vpop.permute.xlu0 %1293
        %1295 = vrot.lane.b32.xlu0 %v1144, 8
        %v1296 = vpop.permute.xlu0 %1295
        %1297 = vrot.lane.b32.xlu0 %v1156, 8
        %v1298 = vpop.permute.xlu0 %1297
        %1299 = vrot.lane.b32.xlu0 %v1168, 8
        %v1300 = vpop.permute.xlu0 %1299
        %1301 = vrot.lane.b32.xlu0 %v1180, 8
        %v1302 = vpop.permute.xlu0 %1301
        %1303 = vrot.lane.b32.xlu0 %v1192, 8
        %v1304 = vpop.permute.xlu0 %1303
        %1305 = vrot.lane.b32.xlu0 %v1204, 8
        %v1306 = vpop.permute.xlu0 %1305
        %1307 = vrot.lane.b32.xlu0 %v1216, 8
        %v1308 = vpop.permute.xlu0 %1307
        %1309 = vrot.lane.b32.xlu0 %v1228, 8
        %v1310 = vpop.permute.xlu0 %1309
        %1311 = vrot.lane.b32.xlu0 %v1240, 8
        %v1312 = vpop.permute.xlu0 %1311
        %1313 = vrot.lane.b32.xlu0 %v1252, 8
        %v1314 = vpop.permute.xlu0 %1313
        %1315 = vrot.lane.b32.xlu0 %v1264, 8
        %v1316 = vpop.permute.xlu0 %1315
        %1317 = vrot.lane.b32.xlu0 %v1276, 8
        %v1318 = vpop.permute.xlu0 %1317
        %1319 = vrot.lane.b32.xlu0 %v1288, 8
        %v1320 = vpop.permute.xlu0 %1319
        %vm1353 = vcmask 1046528
        %v1354 = vrot.slane %v1060, 1
        %v1355 = vrot.slane %v1078, 1
        %v1356 = vsel %vm1353, %v1354, %v1355
        %v1357 = vrot.slane %v1061, 1
        %v1358 = vrot.slane %v1079, 1
        %v1359 = vsel %vm1353, %v1357, %v1358
        %v1360 = vrot.slane %v1062, 1
        %v1361 = vrot.slane %v1080, 1
        %v1362 = vsel %vm1353, %v1360, %v1361
        %v1363 = vrot.slane %v1063, 1
        %v1364 = vrot.slane %v1081, 1
        %v1365 = vsel %vm1353, %v1363, %v1364
        %v1366 = vrot.slane %v1064, 1
        %v1367 = vrot.slane %v1082, 1
        %v1368 = vsel %vm1353, %v1366, %v1367
        %v1369 = vrot.slane %v1065, 1
        %v1370 = vrot.slane %v1083, 1
        %v1371 = vsel %vm1353, %v1369, %v1370
        %v1372 = vrot.slane %v1066, 1
        %v1373 = vrot.slane %v1084, 1
        %v1374 = vsel %vm1353, %v1372, %v1373
        %v1375 = vrot.slane %v1067, 1
        %v1376 = vrot.slane %v1085, 1
        %v1377 = vsel %vm1353, %v1375, %v1376
        %v1378 = vrot.slane %v1068, 1
        %v1379 = vrot.slane %v1086, 1
        %v1380 = vsel %vm1353, %v1378, %v1379
        %v1381 = vrot.slane %v1069, 1
        %v1382 = vrot.slane %v1087, 1
        %v1383 = vsel %vm1353, %v1381, %v1382
        %v1384 = vrot.slane %v1070, 1
        %v1385 = vrot.slane %v1088, 1
        %v1386 = vsel %vm1353, %v1384, %v1385
        %v1387 = vrot.slane %v1071, 1
        %v1388 = vrot.slane %v1089, 1
        %v1389 = vsel %vm1353, %v1387, %v1388
        %v1390 = vrot.slane %v1072, 1
        %v1391 = vrot.slane %v1090, 1
        %v1392 = vsel %vm1353, %v1390, %v1391
        %v1393 = vrot.slane %v1073, 1
        %v1394 = vrot.slane %v1091, 1
        %v1395 = vsel %vm1353, %v1393, %v1394
        %v1396 = vrot.slane %v1074, 1
        %v1397 = vrot.slane %v1092, 1
        %v1398 = vsel %vm1353, %v1396, %v1397
        %v1399 = vrot.slane %v1075, 1
        %v1400 = vrot.slane %v1093, 1
        %v1401 = vsel %vm1353, %v1399, %v1400
        %1402 = vrot.lane.b32.xlu0 %v1356, 16
        %v1403 = vpop.permute.xlu0 %1402
        %1404 = vrot.lane.b32.xlu0 %v1359, 16
        %v1405 = vpop.permute.xlu0 %1404
        %1406 = vrot.lane.b32.xlu0 %v1362, 16
        %v1407 = vpop.permute.xlu0 %1406
        %1408 = vrot.lane.b32.xlu0 %v1365, 16
        %v1409 = vpop.permute.xlu0 %1408
        %1410 = vrot.lane.b32.xlu0 %v1368, 16
        %v1411 = vpop.permute.xlu0 %1410
        %1412 = vrot.lane.b32.xlu0 %v1371, 16
        %v1413 = vpop.permute.xlu0 %1412
        %1414 = vrot.lane.b32.xlu0 %v1374, 16
        %v1415 = vpop.permute.xlu0 %1414
        %1416 = vrot.lane.b32.xlu0 %v1377, 16
        %v1417 = vpop.permute.xlu0 %1416
        %1418 = vrot.lane.b32.xlu0 %v1380, 16
        %v1419 = vpop.permute.xlu0 %1418
        %1420 = vrot.lane.b32.xlu0 %v1383, 16
        %v1421 = vpop.permute.xlu0 %1420
        %1422 = vrot.lane.b32.xlu0 %v1386, 16
        %v1423 = vpop.permute.xlu0 %1422
        %1424 = vrot.lane.b32.xlu0 %v1389, 16
        %v1425 = vpop.permute.xlu0 %1424
        %1426 = vrot.lane.b32.xlu0 %v1392, 16
        %v1427 = vpop.permute.xlu0 %1426
        %1428 = vrot.lane.b32.xlu0 %v1395, 16
        %v1429 = vpop.permute.xlu0 %1428
        %1430 = vrot.lane.b32.xlu0 %v1398, 16
        %v1431 = vpop.permute.xlu0 %1430
        %1432 = vrot.lane.b32.xlu0 %v1401, 16
        %v1433 = vpop.permute.xlu0 %1432
        %vm1434 = vcmask 64512
        %v1436 = vsel %vm1434, %v1060, %v1290
        %v1438 = vsel %vm1434, %v1061, %v1292
        %v1440 = vsel %vm1434, %v1062, %v1294
        %v1442 = vsel %vm1434, %v1063, %v1296
        %v1444 = vsel %vm1434, %v1064, %v1298
        %v1446 = vsel %vm1434, %v1065, %v1300
        %v1448 = vsel %vm1434, %v1066, %v1302
        %v1450 = vsel %vm1434, %v1067, %v1304
        %v1452 = vsel %vm1434, %v1068, %v1306
        %v1454 = vsel %vm1434, %v1069, %v1308
        %v1456 = vsel %vm1434, %v1070, %v1310
        %v1458 = vsel %vm1434, %v1071, %v1312
        %v1460 = vsel %vm1434, %v1072, %v1314
        %v1462 = vsel %vm1434, %v1073, %v1316
        %v1464 = vsel %vm1434, %v1074, %v1318
        %v1466 = vsel %vm1434, %v1075, %v1320
        %vm1467 = vcmask 130048
        %v1469 = vsel %vm1467, %v1436, %v1403
        %v1471 = vsel %vm1467, %v1438, %v1405
        %v1473 = vsel %vm1467, %v1440, %v1407
        %v1475 = vsel %vm1467, %v1442, %v1409
        %v1477 = vsel %vm1467, %v1444, %v1411
        %v1479 = vsel %vm1467, %v1446, %v1413
        %v1481 = vsel %vm1467, %v1448, %v1415
        %v1483 = vsel %vm1467, %v1450, %v1417
        %v1485 = vsel %vm1467, %v1452, %v1419
        %v1487 = vsel %vm1467, %v1454, %v1421
        %v1489 = vsel %vm1467, %v1456, %v1423
        %v1491 = vsel %vm1467, %v1458, %v1425
        %v1493 = vsel %vm1467, %v1460, %v1427
        %v1495 = vsel %vm1467, %v1462, %v1429
        %v1497 = vsel %vm1467, %v1464, %v1431
        %v1499 = vsel %vm1467, %v1466, %v1433
        %v1500 = vld [vmem:[%s5] sm:$0xf]
        %v1501 = vld [vmem:[%s5 + $0x4] sm:$0xf]
        %v1502 = vld [vmem:[%s5 + $0x8] sm:$0xf]
        %v1504 = vshrl.u32 %v1076, 16
        %v1506 = vshll.u32 %v1076, 16
        %v1508 = vrot.slane %v1506, 1
        %v1509 = vor.u32 %v1504, %v1508
        %v1511 = vshll.u32 %v1094, 16
        %v1513 = vrot.slane %v1511, 1
        %v1514 = vsel %vm1096, %v1509, %v1513
        %1515 = vrot.lane.b32.xlu0 %v1514, 8
        %v1516 = vpop.permute.xlu0 %1515
        %v1519 = vrot.slane %v1076, 1
        %v1520 = vrot.slane %v1094, 1
        %v1521 = vsel %vm1353, %v1519, %v1520
        %1522 = vrot.lane.b32.xlu0 %v1521, 16
        %v1523 = vpop.permute.xlu0 %1522
        %v1525 = vsel %vm1434, %v1076, %v1516
        %v1527 = vsel %vm1467, %v1525, %v1523
        %s1528 = scalar_lea.vmem %s5, 12
        %v1529 = vld [vmem:[%s1528] sm:$0xf]
        %v1530 = vld [vmem:[%s1528 + $0x4] sm:$0xf]
        %v1531 = vld [vmem:[%s1528 + $0x8] sm:$0xf]
        %v1535 = vunpack.c.l.b16 %v1529
        %v1536 = vunpack.c.l.b16 %v1530
        %v1537 = vunpack.c.l.b16 %v1531
        %v1538 = vpack.c.b16 %v1536, %v1535
        %v1539 = vpack.c.b16 %v1537, %v1537
        %vm1541 = vcmask 195584
        %v1542 = vsel %vm1541, %v1471, 0
        %v1544 = vsel %vm1541, %v1473, 0
        %v1546 = vsel %vm1541, %v1475, 0
        %v1548 = vsel %vm1541, %v1477, 0
        %v1550 = vsel %vm1541, %v1479, 0
        %v1552 = vsel %vm1541, %v1481, 0
        %v1554 = vsel %vm1541, %v1483, 0
        %v1556 = vsel %vm1541, %v1485, 0
        %v1558 = vsel %vm1541, %v1487, 0
        %v1560 = vsel %vm1541, %v1489, 0
        %v1562 = vsel %vm1541, %v1491, 0
        %v1564 = vsel %vm1541, %v1493, 0
        %v1566 = vsel %vm1541, %v1495, 0
        %v1568 = vsel %vm1541, %v1497, 0
        %v1570 = vsel %vm1541, %v1499, 0
        %v1572 = vsel %vm1541, %v1527, 0
        %vm1574 = vcmask 1043456
        %v1576 = vsel %vm1574, %v1539, 0
        %1578 = vmatprep.subr.bf16.mxu0 0
        %1579 = vmatpush1.bf16.msra.mxu0 0
        %1580 = vmatprep.subr.bf16.mxu0 0
        %1581 = vmatpush1.bf16.msra.mxu0 0
        %1582 = vmatprep.subr.bf16.mxu0 0
        %1583 = vmatpush1.bf16.msra.mxu0 0
        %1584 = vmatprep.subr.bf16.mxu0 0
        %1585 = vmatpush1.bf16.msra.mxu0 0
        %1586 = vmatprep.subr.bf16.mxu0 0
        %1587 = vmatpush1.bf16.msra.mxu0 0
        %1588 = vmatprep.subr.bf16.mxu0 0
        %1589 = vmatpush1.bf16.msra.mxu0 0
        %1590 = vmatprep.subr.bf16.mxu0 0
        %1591 = vmatpush1.bf16.msra.mxu0 %v1576
        %1592 = vmatprep.subr.bf16.mxu0 0
        %1593 = vmatpush1.bf16.msra.mxu0 %v1538
        %1594 = vmatprep.subr.bf16.mxu0 0
        %1595 = vmatpush2.bf16.msra.mxu0 0
        %1596 = vmatprep.subr.bf16.mxu0 0
        %1597 = vmatpush2.bf16.msra.mxu0 0
        %1598 = vmatprep.subr.bf16.mxu0 0
        %1599 = vmatpush2.bf16.msra.mxu0 0
        %1600 = vmatprep.subr.bf16.mxu0 0
        %1601 = vmatpush2.bf16.msra.mxu0 0
        %1602 = vmatprep.subr.bf16.mxu0 0
        %1603 = vmatpush2.bf16.msra.mxu0 0
        %1604 = vmatprep.subr.bf16.mxu0 0
        %1605 = vmatpush2.bf16.msra.mxu0 0
        %1606 = vmatprep.subr.bf16.mxu0 0
        %1607 = vmatpush2.bf16.msra.mxu0 0
        %1608 = vmatprep.subr.bf16.mxu0 0
        %1609 = vmatpush2.bf16.msra.mxu0 0
        %1610 = vmatprep.mubr.bf16.mxu0 0
        %1611 = vmatmul.mubr.bf16.gmra.mxu0 %v1542
        %v1612 = vpop.f32.mrf.mxu0
        %v1613 = vadd.f32 0.0, %v1612
        %v1614 = vpop.f32.mrf.mxu0
        %v1615 = vpop.f32.mrf.mxu0
        %v1616 = vadd.f32 0.0, %v1615
        %v1617 = vpop.f32.mrf.mxu0
        %1618 = vmatprep.mubr.bf16.mxu0 0
        %1619 = vmatmul.mubr.bf16.gmra.mxu0 %v1544
        %v1620 = vpop.f32.mrf.mxu0
        %v1621 = vadd.f32 0.0, %v1620
        %v1622 = vpop.f32.mrf.mxu0
        %v1623 = vpop.f32.mrf.mxu0
        %v1624 = vadd.f32 0.0, %v1623
        %v1625 = vpop.f32.mrf.mxu0
        %1626 = vmatprep.mubr.bf16.mxu0 0
        %1627 = vmatmul.mubr.bf16.gmra.mxu0 %v1546
        %v1628 = vpop.f32.mrf.mxu0
        %v1629 = vadd.f32 0.0, %v1628
        %v1630 = vpop.f32.mrf.mxu0
        %v1631 = vpop.f32.mrf.mxu0
        %v1632 = vadd.f32 0.0, %v1631
        %v1633 = vpop.f32.mrf.mxu0
        %1634 = vmatprep.mubr.bf16.mxu0 0
        %1635 = vmatmul.mubr.bf16.gmra.mxu0 %v1548
        %v1636 = vpop.f32.mrf.mxu0
        %v1637 = vadd.f32 0.0, %v1636
        %v1638 = vpop.f32.mrf.mxu0
        %v1639 = vpop.f32.mrf.mxu0
        %v1640 = vadd.f32 0.0, %v1639
        %v1641 = vpop.f32.mrf.mxu0
        %1642 = vmatprep.mubr.bf16.mxu0 0
        %1643 = vmatmul.mubr.bf16.gmra.mxu0 %v1550
        %v1644 = vpop.f32.mrf.mxu0
        %v1645 = vadd.f32 0.0, %v1644
        %v1646 = vpop.f32.mrf.mxu0
        %v1647 = vpop.f32.mrf.mxu0
        %v1648 = vadd.f32 0.0, %v1647
        %v1649 = vpop.f32.mrf.mxu0
        %1650 = vmatprep.mubr.bf16.mxu0 0
        %1651 = vmatmul.mubr.bf16.gmra.mxu0 %v1552
        %v1652 = vpop.f32.mrf.mxu0
        %v1653 = vadd.f32 0.0, %v1652
        %v1654 = vpop.f32.mrf.mxu0
        %v1655 = vpop.f32.mrf.mxu0
        %v1656 = vadd.f32 0.0, %v1655
        %v1657 = vpop.f32.mrf.mxu0
        %1658 = vmatprep.mubr.bf16.mxu0 0
        %1659 = vmatmul.mubr.bf16.gmra.mxu0 %v1554
        %v1660 = vpop.f32.mrf.mxu0
        %v1661 = vadd.f32 0.0, %v1660
        %v1662 = vpop.f32.mrf.mxu0
        %v1663 = vpop.f32.mrf.mxu0
        %v1664 = vadd.f32 0.0, %v1663
        %v1665 = vpop.f32.mrf.mxu0
        %1666 = vmatprep.mubr.bf16.mxu0 0
        %1667 = vmatmul.mubr.bf16.gmra.mxu0 %v1556
        %v1668 = vpop.f32.mrf.mxu0
        %v1669 = vadd.f32 0.0, %v1668
        %v1670 = vpop.f32.mrf.mxu0
        %v1671 = vpop.f32.mrf.mxu0
        %v1672 = vadd.f32 0.0, %v1671
        %v1673 = vpop.f32.mrf.mxu0
        %1674 = vmatprep.mubr.bf16.mxu0 0
        %1675 = vmatmul.mubr.bf16.gmra.mxu0 %v1558
        %v1676 = vpop.f32.mrf.mxu0
        %v1677 = vadd.f32 0.0, %v1676
        %v1678 = vpop.f32.mrf.mxu0
        %v1679 = vpop.f32.mrf.mxu0
        %v1680 = vadd.f32 0.0, %v1679
        %v1681 = vpop.f32.mrf.mxu0
        %1682 = vmatprep.mubr.bf16.mxu0 0
        %1683 = vmatmul.mubr.bf16.gmra.mxu0 %v1560
        %v1684 = vpop.f32.mrf.mxu0
        %v1685 = vadd.f32 0.0, %v1684
        %v1686 = vpop.f32.mrf.mxu0
        %v1687 = vpop.f32.mrf.mxu0
        %v1688 = vadd.f32 0.0, %v1687
        %v1689 = vpop.f32.mrf.mxu0
        %1690 = vmatprep.mubr.bf16.mxu0 0
        %1691 = vmatmul.mubr.bf16.gmra.mxu0 %v1562
        %v1692 = vpop.f32.mrf.mxu0
        %v1693 = vadd.f32 0.0, %v1692
        %v1694 = vpop.f32.mrf.mxu0
        %v1695 = vpop.f32.mrf.mxu0
        %v1696 = vadd.f32 0.0, %v1695
        %v1697 = vpop.f32.mrf.mxu0
        %1698 = vmatprep.mubr.bf16.mxu0 0
        %1699 = vmatmul.mubr.bf16.gmra.mxu0 %v1564
        %v1700 = vpop.f32.mrf.mxu0
        %v1701 = vadd.f32 0.0, %v1700
        %v1702 = vpop.f32.mrf.mxu0
        %v1703 = vpop.f32.mrf.mxu0
        %v1704 = vadd.f32 0.0, %v1703
        %v1705 = vpop.f32.mrf.mxu0
        %1706 = vmatprep.mubr.bf16.mxu0 0
        %1707 = vmatmul.mubr.bf16.gmra.mxu0 %v1566
        %v1708 = vpop.f32.mrf.mxu0
        %v1709 = vadd.f32 0.0, %v1708
        %v1710 = vpop.f32.mrf.mxu0
        %v1711 = vpop.f32.mrf.mxu0
        %v1712 = vadd.f32 0.0, %v1711
        %v1713 = vpop.f32.mrf.mxu0
        %1714 = vmatprep.mubr.bf16.mxu0 0
        %1715 = vmatmul.mubr.bf16.gmra.mxu0 %v1568
        %v1716 = vpop.f32.mrf.mxu0
        %v1717 = vadd.f32 0.0, %v1716
        %v1718 = vpop.f32.mrf.mxu0
        %v1719 = vpop.f32.mrf.mxu0
        %v1720 = vadd.f32 0.0, %v1719
        %v1721 = vpop.f32.mrf.mxu0
        %1722 = vmatprep.mubr.bf16.mxu0 0
        %1723 = vmatmul.mubr.bf16.gmra.mxu0 %v1570
        %v1724 = vpop.f32.mrf.mxu0
        %v1725 = vadd.f32 0.0, %v1724
        %v1726 = vpop.f32.mrf.mxu0
        %v1727 = vpop.f32.mrf.mxu0
        %v1728 = vadd.f32 0.0, %v1727
        %v1729 = vpop.f32.mrf.mxu0
        %1730 = vmatprep.mubr.bf16.mxu0 0
        %1731 = vmatmul.mubr.bf16.gmra.mxu0 %v1572
        %v1732 = vpop.f32.mrf.mxu0
        %v1733 = vadd.f32 0.0, %v1732
        %v1734 = vpop.f32.mrf.mxu0
        %v1735 = vpop.f32.mrf.mxu0
        %v1736 = vadd.f32 0.0, %v1735
        %v1737 = vpop.f32.mrf.mxu0
        %1738 = vdwg.mxu0
        %v1742 = vunpack.c.l.b16 %v1500
        %v1743 = vunpack.c.l.b16 %v1501
        %v1744 = vunpack.c.l.b16 %v1502
        %v1745 = vpack.c.b16 %v1743, %v1742
        %v1746 = vpack.c.b16 %v1744, %v1744
        %v1748 = vsel %vm1541, %v1469, 0
        %v1751 = vsel %vm1574, %v1746, 0
        %1753 = vmatprep.subr.bf16.mxu0 0
        %1754 = vmatpush1.bf16.msra.mxu0 0
        %1755 = vmatprep.subr.bf16.mxu0 0
        %1756 = vmatpush1.bf16.msra.mxu0 0
        %1757 = vmatprep.subr.bf16.mxu0 0
        %1758 = vmatpush1.bf16.msra.mxu0 0
        %1759 = vmatprep.subr.bf16.mxu0 0
        %1760 = vmatpush1.bf16.msra.mxu0 0
        %1761 = vmatprep.subr.bf16.mxu0 0
        %1762 = vmatpush1.bf16.msra.mxu0 0
        %1763 = vmatprep.subr.bf16.mxu0 0
        %1764 = vmatpush1.bf16.msra.mxu0 0
        %1765 = vmatprep.subr.bf16.mxu0 0
        %1766 = vmatpush1.bf16.msra.mxu0 %v1751
        %1767 = vmatprep.subr.bf16.mxu0 0
        %1768 = vmatpush1.bf16.msra.mxu0 %v1745
        %1769 = vmatprep.subr.bf16.mxu0 0
        %1770 = vmatpush2.bf16.msra.mxu0 0
        %1771 = vmatprep.subr.bf16.mxu0 0
        %1772 = vmatpush2.bf16.msra.mxu0 0
        %1773 = vmatprep.subr.bf16.mxu0 0
        %1774 = vmatpush2.bf16.msra.mxu0 0
        %1775 = vmatprep.subr.bf16.mxu0 0
        %1776 = vmatpush2.bf16.msra.mxu0 0
        %1777 = vmatprep.subr.bf16.mxu0 0
        %1778 = vmatpush2.bf16.msra.mxu0 0
        %1779 = vmatprep.subr.bf16.mxu0 0
        %1780 = vmatpush2.bf16.msra.mxu0 0
        %1781 = vmatprep.subr.bf16.mxu0 0
        %1782 = vmatpush2.bf16.msra.mxu0 0
        %1783 = vmatprep.subr.bf16.mxu0 0
        %1784 = vmatpush2.bf16.msra.mxu0 0
        %1785 = vmatprep.mubr.bf16.mxu0 0
        %1786 = vmatmul.mubr.bf16.gmra.mxu0 %v1748
        %v1787 = vpop.f32.mrf.mxu0
        %v1788 = vadd.f32 %v1613, %v1787
        %v1789 = vpop.f32.mrf.mxu0
        %v1790 = vpop.f32.mrf.mxu0
        %v1791 = vadd.f32 %v1616, %v1790
        %v1792 = vpop.f32.mrf.mxu0
        %1793 = vmatprep.mubr.bf16.mxu0 0
        %1794 = vmatmul.mubr.bf16.gmra.mxu0 %v1542
        %v1795 = vpop.f32.mrf.mxu0
        %v1796 = vadd.f32 %v1621, %v1795
        %v1797 = vpop.f32.mrf.mxu0
        %v1798 = vpop.f32.mrf.mxu0
        %v1799 = vadd.f32 %v1624, %v1798
        %v1800 = vpop.f32.mrf.mxu0
        %1801 = vmatprep.mubr.bf16.mxu0 0
        %1802 = vmatmul.mubr.bf16.gmra.mxu0 %v1544
        %v1803 = vpop.f32.mrf.mxu0
        %v1804 = vadd.f32 %v1629, %v1803
        %v1805 = vpop.f32.mrf.mxu0
        %v1806 = vpop.f32.mrf.mxu0
        %v1807 = vadd.f32 %v1632, %v1806
        %v1808 = vpop.f32.mrf.mxu0
        %1809 = vmatprep.mubr.bf16.mxu0 0
        %1810 = vmatmul.mubr.bf16.gmra.mxu0 %v1546
        %v1811 = vpop.f32.mrf.mxu0
        %v1812 = vadd.f32 %v1637, %v1811
        %v1813 = vpop.f32.mrf.mxu0
        %v1814 = vpop.f32.mrf.mxu0
        %v1815 = vadd.f32 %v1640, %v1814
        %v1816 = vpop.f32.mrf.mxu0
        %1817 = vmatprep.mubr.bf16.mxu0 0
        %1818 = vmatmul.mubr.bf16.gmra.mxu0 %v1548
        %v1819 = vpop.f32.mrf.mxu0
        %v1820 = vadd.f32 %v1645, %v1819
        %v1821 = vpop.f32.mrf.mxu0
        %v1822 = vpop.f32.mrf.mxu0
        %v1823 = vadd.f32 %v1648, %v1822
        %v1824 = vpop.f32.mrf.mxu0
        %1825 = vmatprep.mubr.bf16.mxu0 0
        %1826 = vmatmul.mubr.bf16.gmra.mxu0 %v1550
        %v1827 = vpop.f32.mrf.mxu0
        %v1828 = vadd.f32 %v1653, %v1827
        %v1829 = vpop.f32.mrf.mxu0
        %v1830 = vpop.f32.mrf.mxu0
        %v1831 = vadd.f32 %v1656, %v1830
        %v1832 = vpop.f32.mrf.mxu0
        %1833 = vmatprep.mubr.bf16.mxu0 0
        %1834 = vmatmul.mubr.bf16.gmra.mxu0 %v1552
        %v1835 = vpop.f32.mrf.mxu0
        %v1836 = vadd.f32 %v1661, %v1835
        %v1837 = vpop.f32.mrf.mxu0
        %v1838 = vpop.f32.mrf.mxu0
        %v1839 = vadd.f32 %v1664, %v1838
        %v1840 = vpop.f32.mrf.mxu0
        %1841 = vmatprep.mubr.bf16.mxu0 0
        %1842 = vmatmul.mubr.bf16.gmra.mxu0 %v1554
        %v1843 = vpop.f32.mrf.mxu0
        %v1844 = vadd.f32 %v1669, %v1843
        %v1845 = vpop.f32.mrf.mxu0
        %v1846 = vpop.f32.mrf.mxu0
        %v1847 = vadd.f32 %v1672, %v1846
        %v1848 = vpop.f32.mrf.mxu0
        %1849 = vmatprep.mubr.bf16.mxu0 0
        %1850 = vmatmul.mubr.bf16.gmra.mxu0 %v1556
        %v1851 = vpop.f32.mrf.mxu0
        %v1852 = vadd.f32 %v1677, %v1851
        %v1853 = vpop.f32.mrf.mxu0
        %v1854 = vpop.f32.mrf.mxu0
        %v1855 = vadd.f32 %v1680, %v1854
        %v1856 = vpop.f32.mrf.mxu0
        %1857 = vmatprep.mubr.bf16.mxu0 0
        %1858 = vmatmul.mubr.bf16.gmra.mxu0 %v1558
        %v1859 = vpop.f32.mrf.mxu0
        %v1860 = vadd.f32 %v1685, %v1859
        %v1861 = vpop.f32.mrf.mxu0
        %v1862 = vpop.f32.mrf.mxu0
        %v1863 = vadd.f32 %v1688, %v1862
        %v1864 = vpop.f32.mrf.mxu0
        %1865 = vmatprep.mubr.bf16.mxu0 0
        %1866 = vmatmul.mubr.bf16.gmra.mxu0 %v1560
        %v1867 = vpop.f32.mrf.mxu0
        %v1868 = vadd.f32 %v1693, %v1867
        %v1869 = vpop.f32.mrf.mxu0
        %v1870 = vpop.f32.mrf.mxu0
        %v1871 = vadd.f32 %v1696, %v1870
        %v1872 = vpop.f32.mrf.mxu0
        %1873 = vmatprep.mubr.bf16.mxu0 0
        %1874 = vmatmul.mubr.bf16.gmra.mxu0 %v1562
        %v1875 = vpop.f32.mrf.mxu0
        %v1876 = vadd.f32 %v1701, %v1875
        %v1877 = vpop.f32.mrf.mxu0
        %v1878 = vpop.f32.mrf.mxu0
        %v1879 = vadd.f32 %v1704, %v1878
        %v1880 = vpop.f32.mrf.mxu0
        %1881 = vmatprep.mubr.bf16.mxu0 0
        %1882 = vmatmul.mubr.bf16.gmra.mxu0 %v1564
        %v1883 = vpop.f32.mrf.mxu0
        %v1884 = vadd.f32 %v1709, %v1883
        %v1885 = vpop.f32.mrf.mxu0
        %v1886 = vpop.f32.mrf.mxu0
        %v1887 = vadd.f32 %v1712, %v1886
        %v1888 = vpop.f32.mrf.mxu0
        %1889 = vmatprep.mubr.bf16.mxu0 0
        %1890 = vmatmul.mubr.bf16.gmra.mxu0 %v1566
        %v1891 = vpop.f32.mrf.mxu0
        %v1892 = vadd.f32 %v1717, %v1891
        %v1893 = vpop.f32.mrf.mxu0
        %v1894 = vpop.f32.mrf.mxu0
        %v1895 = vadd.f32 %v1720, %v1894
        %v1896 = vpop.f32.mrf.mxu0
        %1897 = vmatprep.mubr.bf16.mxu0 0
        %1898 = vmatmul.mubr.bf16.gmra.mxu0 %v1568
        %v1899 = vpop.f32.mrf.mxu0
        %v1900 = vadd.f32 %v1725, %v1899
        %v1901 = vpop.f32.mrf.mxu0
        %v1902 = vpop.f32.mrf.mxu0
        %v1903 = vadd.f32 %v1728, %v1902
        %v1904 = vpop.f32.mrf.mxu0
        %1905 = vmatprep.mubr.bf16.mxu0 0
        %1906 = vmatmul.mubr.bf16.gmra.mxu0 %v1570
        %v1907 = vpop.f32.mrf.mxu0
        %v1908 = vadd.f32 %v1733, %v1907
        %v1909 = vpop.f32.mrf.mxu0
        %v1910 = vpop.f32.mrf.mxu0
        %v1911 = vadd.f32 %v1736, %v1910
        %v1912 = vpop.f32.mrf.mxu0
        %1913 = vdwg.mxu0
        %v1915 = vshrl.u32 %v1077, 16
        %v1917 = vshll.u32 %v1077, 16
        %v1919 = vrot.slane %v1917, 1
        %v1920 = vor.u32 %v1915, %v1919
        %v1922 = vshll.u32 %v1095, 16
        %v1924 = vrot.slane %v1922, 1
        %v1925 = vsel %vm1096, %v1920, %v1924
        %1926 = vrot.lane.b32.xlu0 %v1925, 8
        %v1927 = vpop.permute.xlu0 %1926
        %v1930 = vrot.slane %v1077, 1
        %v1931 = vrot.slane %v1095, 1
        %v1932 = vsel %vm1353, %v1930, %v1931
        %1933 = vrot.lane.b32.xlu0 %v1932, 16
        %v1934 = vpop.permute.xlu0 %1933
        %v1936 = vsel %vm1434, %v1077, %v1927
        %v1938 = vsel %vm1467, %v1936, %v1934
        %s1939 = scalar_lea.vmem %s5, 24
        %v1940 = vld [vmem:[%s1939] sm:$0xf]
        %v1941 = vld [vmem:[%s1939 + $0x4] sm:$0xf]
        %v1942 = vld [vmem:[%s1939 + $0x8] sm:$0xf]
        %v1946 = vunpack.c.l.b16 %v1940
        %v1947 = vunpack.c.l.b16 %v1941
        %v1948 = vunpack.c.l.b16 %v1942
        %v1949 = vpack.c.b16 %v1947, %v1946
        %v1950 = vpack.c.b16 %v1948, %v1948
        %v1952 = vsel %vm1541, %v1938, 0
        %v1955 = vsel %vm1574, %v1950, 0
        %1957 = vmatprep.subr.bf16.mxu0 0
        %1958 = vmatpush1.bf16.msra.mxu0 0
        %1959 = vmatprep.subr.bf16.mxu0 0
        %1960 = vmatpush1.bf16.msra.mxu0 0
        %1961 = vmatprep.subr.bf16.mxu0 0
        %1962 = vmatpush1.bf16.msra.mxu0 0
        %1963 = vmatprep.subr.bf16.mxu0 0
        %1964 = vmatpush1.bf16.msra.mxu0 0
        %1965 = vmatprep.subr.bf16.mxu0 0
        %1966 = vmatpush1.bf16.msra.mxu0 0
        %1967 = vmatprep.subr.bf16.mxu0 0
        %1968 = vmatpush1.bf16.msra.mxu0 0
        %1969 = vmatprep.subr.bf16.mxu0 0
        %1970 = vmatpush1.bf16.msra.mxu0 %v1955
        %1971 = vmatprep.subr.bf16.mxu0 0
        %1972 = vmatpush1.bf16.msra.mxu0 %v1949
        %1973 = vmatprep.subr.bf16.mxu0 0
        %1974 = vmatpush2.bf16.msra.mxu0 0
        %1975 = vmatprep.subr.bf16.mxu0 0
        %1976 = vmatpush2.bf16.msra.mxu0 0
        %1977 = vmatprep.subr.bf16.mxu0 0
        %1978 = vmatpush2.bf16.msra.mxu0 0
        %1979 = vmatprep.subr.bf16.mxu0 0
        %1980 = vmatpush2.bf16.msra.mxu0 0
        %1981 = vmatprep.subr.bf16.mxu0 0
        %1982 = vmatpush2.bf16.msra.mxu0 0
        %1983 = vmatprep.subr.bf16.mxu0 0
        %1984 = vmatpush2.bf16.msra.mxu0 0
        %1985 = vmatprep.subr.bf16.mxu0 0
        %1986 = vmatpush2.bf16.msra.mxu0 0
        %1987 = vmatprep.subr.bf16.mxu0 0
        %1988 = vmatpush2.bf16.msra.mxu0 0
        %1989 = vmatprep.mubr.bf16.mxu0 0
        %1990 = vmatmul.mubr.bf16.gmra.mxu0 %v1544
        %v1991 = vpop.f32.mrf.mxu0
        %v1992 = vadd.f32 0.0, %v1991
        %v1993 = vpop.f32.mrf.mxu0
        %v1994 = vpop.f32.mrf.mxu0
        %v1995 = vadd.f32 0.0, %v1994
        %v1996 = vpop.f32.mrf.mxu0
        %1997 = vmatprep.mubr.bf16.mxu0 0
        %1998 = vmatmul.mubr.bf16.gmra.mxu0 %v1546
        %v1999 = vpop.f32.mrf.mxu0
        %v2000 = vadd.f32 0.0, %v1999
        %v2001 = vpop.f32.mrf.mxu0
        %v2002 = vpop.f32.mrf.mxu0
        %v2003 = vadd.f32 0.0, %v2002
        %v2004 = vpop.f32.mrf.mxu0
        %2005 = vmatprep.mubr.bf16.mxu0 0
        %2006 = vmatmul.mubr.bf16.gmra.mxu0 %v1548
        %v2007 = vpop.f32.mrf.mxu0
        %v2008 = vadd.f32 0.0, %v2007
        %v2009 = vpop.f32.mrf.mxu0
        %v2010 = vpop.f32.mrf.mxu0
        %v2011 = vadd.f32 0.0, %v2010
        %v2012 = vpop.f32.mrf.mxu0
        %2013 = vmatprep.mubr.bf16.mxu0 0
        %2014 = vmatmul.mubr.bf16.gmra.mxu0 %v1550
        %v2015 = vpop.f32.mrf.mxu0
        %v2016 = vadd.f32 0.0, %v2015
        %v2017 = vpop.f32.mrf.mxu0
        %v2018 = vpop.f32.mrf.mxu0
        %v2019 = vadd.f32 0.0, %v2018
        %v2020 = vpop.f32.mrf.mxu0
        %2021 = vmatprep.mubr.bf16.mxu0 0
        %2022 = vmatmul.mubr.bf16.gmra.mxu0 %v1552
        %v2023 = vpop.f32.mrf.mxu0
        %v2024 = vadd.f32 0.0, %v2023
        %v2025 = vpop.f32.mrf.mxu0
        %v2026 = vpop.f32.mrf.mxu0
        %v2027 = vadd.f32 0.0, %v2026
        %v2028 = vpop.f32.mrf.mxu0
        %2029 = vmatprep.mubr.bf16.mxu0 0
        %2030 = vmatmul.mubr.bf16.gmra.mxu0 %v1554
        %v2031 = vpop.f32.mrf.mxu0
        %v2032 = vadd.f32 0.0, %v2031
        %v2033 = vpop.f32.mrf.mxu0
        %v2034 = vpop.f32.mrf.mxu0
        %v2035 = vadd.f32 0.0, %v2034
        %v2036 = vpop.f32.mrf.mxu0
        %2037 = vmatprep.mubr.bf16.mxu0 0
        %2038 = vmatmul.mubr.bf16.gmra.mxu0 %v1556
        %v2039 = vpop.f32.mrf.mxu0
        %v2040 = vadd.f32 0.0, %v2039
        %v2041 = vpop.f32.mrf.mxu0
        %v2042 = vpop.f32.mrf.mxu0
        %v2043 = vadd.f32 0.0, %v2042
        %v2044 = vpop.f32.mrf.mxu0
        %2045 = vmatprep.mubr.bf16.mxu0 0
        %2046 = vmatmul.mubr.bf16.gmra.mxu0 %v1558
        %v2047 = vpop.f32.mrf.mxu0
        %v2048 = vadd.f32 0.0, %v2047
        %v2049 = vpop.f32.mrf.mxu0
        %v2050 = vpop.f32.mrf.mxu0
        %v2051 = vadd.f32 0.0, %v2050
        %v2052 = vpop.f32.mrf.mxu0
        %2053 = vmatprep.mubr.bf16.mxu0 0
        %2054 = vmatmul.mubr.bf16.gmra.mxu0 %v1560
        %v2055 = vpop.f32.mrf.mxu0
        %v2056 = vadd.f32 0.0, %v2055
        %v2057 = vpop.f32.mrf.mxu0
        %v2058 = vpop.f32.mrf.mxu0
        %v2059 = vadd.f32 0.0, %v2058
        %v2060 = vpop.f32.mrf.mxu0
        %2061 = vmatprep.mubr.bf16.mxu0 0
        %2062 = vmatmul.mubr.bf16.gmra.mxu0 %v1562
        %v2063 = vpop.f32.mrf.mxu0
        %v2064 = vadd.f32 0.0, %v2063
        %v2065 = vpop.f32.mrf.mxu0
        %v2066 = vpop.f32.mrf.mxu0
        %v2067 = vadd.f32 0.0, %v2066
        %v2068 = vpop.f32.mrf.mxu0
        %2069 = vmatprep.mubr.bf16.mxu0 0
        %2070 = vmatmul.mubr.bf16.gmra.mxu0 %v1564
        %v2071 = vpop.f32.mrf.mxu0
        %v2072 = vadd.f32 0.0, %v2071
        %v2073 = vpop.f32.mrf.mxu0
        %v2074 = vpop.f32.mrf.mxu0
        %v2075 = vadd.f32 0.0, %v2074
        %v2076 = vpop.f32.mrf.mxu0
        %2077 = vmatprep.mubr.bf16.mxu0 0
        %2078 = vmatmul.mubr.bf16.gmra.mxu0 %v1566
        %v2079 = vpop.f32.mrf.mxu0
        %v2080 = vadd.f32 0.0, %v2079
        %v2081 = vpop.f32.mrf.mxu0
        %v2082 = vpop.f32.mrf.mxu0
        %v2083 = vadd.f32 0.0, %v2082
        %v2084 = vpop.f32.mrf.mxu0
        %2085 = vmatprep.mubr.bf16.mxu0 0
        %2086 = vmatmul.mubr.bf16.gmra.mxu0 %v1568
        %v2087 = vpop.f32.mrf.mxu0
        %v2088 = vadd.f32 0.0, %v2087
        %v2089 = vpop.f32.mrf.mxu0
        %v2090 = vpop.f32.mrf.mxu0
        %v2091 = vadd.f32 0.0, %v2090
        %v2092 = vpop.f32.mrf.mxu0
        %2093 = vmatprep.mubr.bf16.mxu0 0
        %2094 = vmatmul.mubr.bf16.gmra.mxu0 %v1570
        %v2095 = vpop.f32.mrf.mxu0
        %v2096 = vadd.f32 0.0, %v2095
        %v2097 = vpop.f32.mrf.mxu0
        %v2098 = vpop.f32.mrf.mxu0
        %v2099 = vadd.f32 0.0, %v2098
        %v2100 = vpop.f32.mrf.mxu0
        %2101 = vmatprep.mubr.bf16.mxu0 0
        %2102 = vmatmul.mubr.bf16.gmra.mxu0 %v1572
        %v2103 = vpop.f32.mrf.mxu0
        %v2104 = vadd.f32 0.0, %v2103
        %v2105 = vpop.f32.mrf.mxu0
        %v2106 = vpop.f32.mrf.mxu0
        %v2107 = vadd.f32 0.0, %v2106
        %v2108 = vpop.f32.mrf.mxu0
        %2109 = vmatprep.mubr.bf16.mxu0 0
        %2110 = vmatmul.mubr.bf16.gmra.mxu0 %v1952
        %v2111 = vpop.f32.mrf.mxu0
        %v2112 = vadd.f32 0.0, %v2111
        %v2113 = vpop.f32.mrf.mxu0
        %v2114 = vpop.f32.mrf.mxu0
        %v2115 = vadd.f32 0.0, %v2114
        %v2116 = vpop.f32.mrf.mxu0
        %2117 = vdwg.mxu0
        %v2118 = vadd.f32 %v1788, %v1992
        %v2119 = vadd.f32 %v1791, %v1995
        %v2120 = vadd.f32 %v1796, %v2000
        %v2121 = vadd.f32 %v1799, %v2003
        %v2122 = vadd.f32 %v1804, %v2008
        %v2123 = vadd.f32 %v1807, %v2011
        %v2124 = vadd.f32 %v1812, %v2016
        %v2125 = vadd.f32 %v1815, %v2019
        %v2126 = vadd.f32 %v1820, %v2024
        %v2127 = vadd.f32 %v1823, %v2027
        %v2128 = vadd.f32 %v1828, %v2032
        %v2129 = vadd.f32 %v1831, %v2035
        %v2130 = vadd.f32 %v1836, %v2040
        %v2131 = vadd.f32 %v1839, %v2043
        %v2132 = vadd.f32 %v1844, %v2048
        %v2133 = vadd.f32 %v1847, %v2051
        %v2134 = vadd.f32 %v1852, %v2056
        %v2135 = vadd.f32 %v1855, %v2059
        %v2136 = vadd.f32 %v1860, %v2064
        %v2137 = vadd.f32 %v1863, %v2067
        %v2138 = vadd.f32 %v1868, %v2072
        %v2139 = vadd.f32 %v1871, %v2075
        %v2140 = vadd.f32 %v1876, %v2080
        %v2141 = vadd.f32 %v1879, %v2083
        %v2142 = vadd.f32 %v1884, %v2088
        %v2143 = vadd.f32 %v1887, %v2091
        %v2144 = vadd.f32 %v1892, %v2096
        %v2145 = vadd.f32 %v1895, %v2099
        %v2146 = vadd.f32 %v1900, %v2104
        %v2147 = vadd.f32 %v1903, %v2107
        %v2148 = vadd.f32 %v1908, %v2112
        %v2149 = vadd.f32 %v1911, %v2115
        %v2150 = vld [vmem:[#allocation7] sm:$0x1]
        %v2152 = vlaneseq
        %v2153 = vshrl.u32 %v2152, 7
        %v2154 = vsub.s32 0, %v2153
        %v2155 = vrot.slane %v2150, %v2154
        %v2157 = vadd.f32 %v2118, %v2155
        %v2158 = vadd.f32 %v2119, %v2155
        %v2159 = vadd.f32 %v2120, %v2155
        %v2160 = vadd.f32 %v2121, %v2155
        %v2161 = vadd.f32 %v2122, %v2155
        %v2162 = vadd.f32 %v2123, %v2155
        %v2163 = vadd.f32 %v2124, %v2155
        %v2164 = vadd.f32 %v2125, %v2155
        %v2165 = vadd.f32 %v2126, %v2155
        %v2166 = vadd.f32 %v2127, %v2155
        %v2167 = vadd.f32 %v2128, %v2155
        %v2168 = vadd.f32 %v2129, %v2155
        %v2169 = vadd.f32 %v2130, %v2155
        %v2170 = vadd.f32 %v2131, %v2155
        %v2171 = vadd.f32 %v2132, %v2155
        %v2172 = vadd.f32 %v2133, %v2155
        %v2173 = vadd.f32 %v2134, %v2155
        %v2174 = vadd.f32 %v2135, %v2155
        %v2175 = vadd.f32 %v2136, %v2155
        %v2176 = vadd.f32 %v2137, %v2155
        %v2177 = vadd.f32 %v2138, %v2155
        %v2178 = vadd.f32 %v2139, %v2155
        %v2179 = vadd.f32 %v2140, %v2155
        %v2180 = vadd.f32 %v2141, %v2155
        %v2181 = vadd.f32 %v2142, %v2155
        %v2182 = vadd.f32 %v2143, %v2155
        %v2183 = vadd.f32 %v2144, %v2155
        %v2184 = vadd.f32 %v2145, %v2155
        %v2185 = vadd.f32 %v2146, %v2155
        %v2186 = vadd.f32 %v2147, %v2155
        %v2187 = vadd.f32 %v2148, %v2155
        %v2188 = vadd.f32 %v2149, %v2155
        %v2189 = vmax.f32 %v2157, 0.0
        %v2190 = vmax.f32 %v2158, 0.0
        %v2191 = vmax.f32 %v2159, 0.0
        %v2192 = vmax.f32 %v2160, 0.0
        %v2193 = vmax.f32 %v2161, 0.0
        %v2194 = vmax.f32 %v2162, 0.0
        %v2195 = vmax.f32 %v2163, 0.0
        %v2196 = vmax.f32 %v2164, 0.0
        %v2197 = vmax.f32 %v2165, 0.0
        %v2198 = vmax.f32 %v2166, 0.0
        %v2199 = vmax.f32 %v2167, 0.0
        %v2200 = vmax.f32 %v2168, 0.0
        %v2201 = vmax.f32 %v2169, 0.0
        %v2202 = vmax.f32 %v2170, 0.0
        %v2203 = vmax.f32 %v2171, 0.0
        %v2204 = vmax.f32 %v2172, 0.0
        %v2205 = vmax.f32 %v2173, 0.0
        %v2206 = vmax.f32 %v2174, 0.0
        %v2207 = vmax.f32 %v2175, 0.0
        %v2208 = vmax.f32 %v2176, 0.0
        %v2209 = vmax.f32 %v2177, 0.0
        %v2210 = vmax.f32 %v2178, 0.0
        %v2211 = vmax.f32 %v2179, 0.0
        %v2212 = vmax.f32 %v2180, 0.0
        %v2213 = vmax.f32 %v2181, 0.0
        %v2214 = vmax.f32 %v2182, 0.0
        %v2215 = vmax.f32 %v2183, 0.0
        %v2216 = vmax.f32 %v2184, 0.0
        %v2217 = vmax.f32 %v2185, 0.0
        %v2218 = vmax.f32 %v2186, 0.0
        %v2219 = vmax.f32 %v2187, 0.0
        %v2220 = vmax.f32 %v2188, 0.0
        %v2221 = vpack.c.bf16 %v2190, %v2189
        %v2222 = vpack.c.bf16 %v2192, %v2191
        %v2223 = vpack.c.bf16 %v2194, %v2193
        %v2224 = vpack.c.bf16 %v2196, %v2195
        %v2225 = vpack.c.bf16 %v2198, %v2197
        %v2226 = vpack.c.bf16 %v2200, %v2199
        %v2227 = vpack.c.bf16 %v2202, %v2201
        %v2228 = vpack.c.bf16 %v2204, %v2203
        %v2229 = vpack.c.bf16 %v2206, %v2205
        %v2230 = vpack.c.bf16 %v2208, %v2207
        %v2231 = vpack.c.bf16 %v2210, %v2209
        %v2232 = vpack.c.bf16 %v2212, %v2211
        %v2233 = vpack.c.bf16 %v2214, %v2213
        %v2234 = vpack.c.bf16 %v2216, %v2215
        %v2235 = vpack.c.bf16 %v2218, %v2217
        %v2236 = vpack.c.bf16 %v2220, %v2219
        %v2237 = vld [vmem:[%s7] sm:$0xf]
        %v2238 = vld [vmem:[%s8] sm:$0x1]
        %v2240 = vlaneseq
        %v2241 = vshrl.u32 %v2240, 7
        %v2242 = vsub.s32 0, %v2241
        %v2243 = vrot.slane %v2238, %v2242
        %v2246 = vsel %vm1434, %v2221, 0
        %v2249 = vsel %vm1434, %v2222, 0
        %v2252 = vsel %vm1434, %v2223, 0
        %v2255 = vsel %vm1434, %v2224, 0
        %v2258 = vsel %vm1434, %v2225, 0
        %v2261 = vsel %vm1434, %v2226, 0
        %v2264 = vsel %vm1434, %v2227, 0
        %v2267 = vsel %vm1434, %v2228, 0
        %v2270 = vsel %vm1434, %v2229, 0
        %v2273 = vsel %vm1434, %v2230, 0
        %v2276 = vsel %vm1434, %v2231, 0
        %v2279 = vsel %vm1434, %v2232, 0
        %v2282 = vsel %vm1434, %v2233, 0
        %v2285 = vsel %vm1434, %v2234, 0
        %v2288 = vsel %vm1434, %v2235, 0
        %v2291 = vsel %vm1434, %v2236, 0
        %v2294 = vsel %vm1574, %v2237, 0
        %2296 = vmatprep.subr.bf16.mxu0 0
        %2297 = vmatpush1.bf16.msra.mxu0 0
        %2298 = vmatprep.subr.bf16.mxu0 0
        %2299 = vmatpush1.bf16.msra.mxu0 0
        %2300 = vmatprep.subr.bf16.mxu0 0
        %2301 = vmatpush1.bf16.msra.mxu0 0
        %2302 = vmatprep.subr.bf16.mxu0 0
        %2303 = vmatpush1.bf16.msra.mxu0 0
        %2304 = vmatprep.subr.bf16.mxu0 0
        %2305 = vmatpush1.bf16.msra.mxu0 0
        %2306 = vmatprep.subr.bf16.mxu0 0
        %2307 = vmatpush1.bf16.msra.mxu0 0
        %2308 = vmatprep.subr.bf16.mxu0 0
        %2309 = vmatpush1.bf16.msra.mxu0 0
        %2310 = vmatprep.subr.bf16.mxu0 0
        %2311 = vmatpush1.bf16.msra.mxu0 %v2294
        %2312 = vmatprep.subr.bf16.mxu0 0
        %2313 = vmatpush2.bf16.msra.mxu0 0
        %2314 = vmatprep.subr.bf16.mxu0 0
        %2315 = vmatpush2.bf16.msra.mxu0 0
        %2316 = vmatprep.subr.bf16.mxu0 0
        %2317 = vmatpush2.bf16.msra.mxu0 0
        %2318 = vmatprep.subr.bf16.mxu0 0
        %2319 = vmatpush2.bf16.msra.mxu0 0
        %2320 = vmatprep.subr.bf16.mxu0 0
        %2321 = vmatpush2.bf16.msra.mxu0 0
        %2322 = vmatprep.subr.bf16.mxu0 0
        %2323 = vmatpush2.bf16.msra.mxu0 0
        %2324 = vmatprep.subr.bf16.mxu0 0
        %2325 = vmatpush2.bf16.msra.mxu0 0
        %2326 = vmatprep.subr.bf16.mxu0 0
        %2327 = vmatpush2.bf16.msra.mxu0 0
        %2328 = vmatprep.mubr.bf16.mxu0 0
        %2329 = vmatmul.mubr.bf16.gmra.mxu0 %v2246
        %v2330 = vpop.f32.mrf.mxu0
        %v2331 = vadd.f32 %v2243, %v2330
        %v2332 = vpop.f32.mrf.mxu0
        %v2333 = vpop.f32.mrf.mxu0
        %v2334 = vadd.f32 %v2243, %v2333
        %v2335 = vpop.f32.mrf.mxu0
        %2336 = vmatprep.mubr.bf16.mxu0 0
        %2337 = vmatmul.mubr.bf16.gmra.mxu0 %v2249
        %v2338 = vpop.f32.mrf.mxu0
        %v2339 = vadd.f32 %v2243, %v2338
        %v2340 = vpop.f32.mrf.mxu0
        %v2341 = vpop.f32.mrf.mxu0
        %v2342 = vadd.f32 %v2243, %v2341
        %v2343 = vpop.f32.mrf.mxu0
        %2344 = vmatprep.mubr.bf16.mxu0 0
        %2345 = vmatmul.mubr.bf16.gmra.mxu0 %v2252
        %v2346 = vpop.f32.mrf.mxu0
        %v2347 = vadd.f32 %v2243, %v2346
        %v2348 = vpop.f32.mrf.mxu0
        %v2349 = vpop.f32.mrf.mxu0
        %v2350 = vadd.f32 %v2243, %v2349
        %v2351 = vpop.f32.mrf.mxu0
        %2352 = vmatprep.mubr.bf16.mxu0 0
        %2353 = vmatmul.mubr.bf16.gmra.mxu0 %v2255
        %v2354 = vpop.f32.mrf.mxu0
        %v2355 = vadd.f32 %v2243, %v2354
        %v2356 = vpop.f32.mrf.mxu0
        %v2357 = vpop.f32.mrf.mxu0
        %v2358 = vadd.f32 %v2243, %v2357
        %v2359 = vpop.f32.mrf.mxu0
        %2360 = vmatprep.mubr.bf16.mxu0 0
        %2361 = vmatmul.mubr.bf16.gmra.mxu0 %v2258
        %v2362 = vpop.f32.mrf.mxu0
        %v2363 = vadd.f32 %v2243, %v2362
        %v2364 = vpop.f32.mrf.mxu0
        %v2365 = vpop.f32.mrf.mxu0
        %v2366 = vadd.f32 %v2243, %v2365
        %v2367 = vpop.f32.mrf.mxu0
        %2368 = vmatprep.mubr.bf16.mxu0 0
        %2369 = vmatmul.mubr.bf16.gmra.mxu0 %v2261
        %v2370 = vpop.f32.mrf.mxu0
        %v2371 = vadd.f32 %v2243, %v2370
        %v2372 = vpop.f32.mrf.mxu0
        %v2373 = vpop.f32.mrf.mxu0
        %v2374 = vadd.f32 %v2243, %v2373
        %v2375 = vpop.f32.mrf.mxu0
        %2376 = vmatprep.mubr.bf16.mxu0 0
        %2377 = vmatmul.mubr.bf16.gmra.mxu0 %v2264
        %v2378 = vpop.f32.mrf.mxu0
        %v2379 = vadd.f32 %v2243, %v2378
        %v2380 = vpop.f32.mrf.mxu0
        %v2381 = vpop.f32.mrf.mxu0
        %v2382 = vadd.f32 %v2243, %v2381
        %v2383 = vpop.f32.mrf.mxu0
        %2384 = vmatprep.mubr.bf16.mxu0 0
        %2385 = vmatmul.mubr.bf16.gmra.mxu0 %v2267
        %v2386 = vpop.f32.mrf.mxu0
        %v2387 = vadd.f32 %v2243, %v2386
        %v2388 = vpop.f32.mrf.mxu0
        %v2389 = vpop.f32.mrf.mxu0
        %v2390 = vadd.f32 %v2243, %v2389
        %v2391 = vpop.f32.mrf.mxu0
        %2392 = vmatprep.mubr.bf16.mxu0 0
        %2393 = vmatmul.mubr.bf16.gmra.mxu0 %v2270
        %v2394 = vpop.f32.mrf.mxu0
        %v2395 = vadd.f32 %v2243, %v2394
        %v2396 = vpop.f32.mrf.mxu0
        %v2397 = vpop.f32.mrf.mxu0
        %v2398 = vadd.f32 %v2243, %v2397
        %v2399 = vpop.f32.mrf.mxu0
        %2400 = vmatprep.mubr.bf16.mxu0 0
        %2401 = vmatmul.mubr.bf16.gmra.mxu0 %v2273
        %v2402 = vpop.f32.mrf.mxu0
        %v2403 = vadd.f32 %v2243, %v2402
        %v2404 = vpop.f32.mrf.mxu0
        %v2405 = vpop.f32.mrf.mxu0
        %v2406 = vadd.f32 %v2243, %v2405
        %v2407 = vpop.f32.mrf.mxu0
        %2408 = vmatprep.mubr.bf16.mxu0 0
        %2409 = vmatmul.mubr.bf16.gmra.mxu0 %v2276
        %v2410 = vpop.f32.mrf.mxu0
        %v2411 = vadd.f32 %v2243, %v2410
        %v2412 = vpop.f32.mrf.mxu0
        %v2413 = vpop.f32.mrf.mxu0
        %v2414 = vadd.f32 %v2243, %v2413
        %v2415 = vpop.f32.mrf.mxu0
        %2416 = vmatprep.mubr.bf16.mxu0 0
        %2417 = vmatmul.mubr.bf16.gmra.mxu0 %v2279
        %v2418 = vpop.f32.mrf.mxu0
        %v2419 = vadd.f32 %v2243, %v2418
        %v2420 = vpop.f32.mrf.mxu0
        %v2421 = vpop.f32.mrf.mxu0
        %v2422 = vadd.f32 %v2243, %v2421
        %v2423 = vpop.f32.mrf.mxu0
        %2424 = vmatprep.mubr.bf16.mxu0 0
        %2425 = vmatmul.mubr.bf16.gmra.mxu0 %v2282
        %v2426 = vpop.f32.mrf.mxu0
        %v2427 = vadd.f32 %v2243, %v2426
        %v2428 = vpop.f32.mrf.mxu0
        %v2429 = vpop.f32.mrf.mxu0
        %v2430 = vadd.f32 %v2243, %v2429
        %v2431 = vpop.f32.mrf.mxu0
        %2432 = vmatprep.mubr.bf16.mxu0 0
        %2433 = vmatmul.mubr.bf16.gmra.mxu0 %v2285
        %v2434 = vpop.f32.mrf.mxu0
        %v2435 = vadd.f32 %v2243, %v2434
        %v2436 = vpop.f32.mrf.mxu0
        %v2437 = vpop.f32.mrf.mxu0
        %v2438 = vadd.f32 %v2243, %v2437
        %v2439 = vpop.f32.mrf.mxu0
        %2440 = vmatprep.mubr.bf16.mxu0 0
        %2441 = vmatmul.mubr.bf16.gmra.mxu0 %v2288
        %v2442 = vpop.f32.mrf.mxu0
        %v2443 = vadd.f32 %v2243, %v2442
        %v2444 = vpop.f32.mrf.mxu0
        %v2445 = vpop.f32.mrf.mxu0
        %v2446 = vadd.f32 %v2243, %v2445
        %v2447 = vpop.f32.mrf.mxu0
        %2448 = vmatprep.mubr.bf16.mxu0 0
        %2449 = vmatmul.mubr.bf16.gmra.mxu0 %v2291
        %v2450 = vpop.f32.mrf.mxu0
        %v2451 = vadd.f32 %v2243, %v2450
        %v2452 = vpop.f32.mrf.mxu0
        %v2453 = vpop.f32.mrf.mxu0
        %v2454 = vadd.f32 %v2243, %v2453
        %v2455 = vpop.f32.mrf.mxu0
        %2456 = vdwg.mxu0
        %v2457 = vadd.f32 %v2331, %v471
        %v2458 = vadd.f32 %v2334, %v472
        %v2459 = vadd.f32 %v2339, %v473
        %v2460 = vadd.f32 %v2342, %v474
        %v2461 = vadd.f32 %v2347, %v475
        %v2462 = vadd.f32 %v2350, %v476
        %v2463 = vadd.f32 %v2355, %v477
        %v2464 = vadd.f32 %v2358, %v478
        %v2465 = vadd.f32 %v2363, %v479
        %v2466 = vadd.f32 %v2366, %v480
        %v2467 = vadd.f32 %v2371, %v481
        %v2468 = vadd.f32 %v2374, %v482
        %v2469 = vadd.f32 %v2379, %v483
        %v2470 = vadd.f32 %v2382, %v484
        %v2471 = vadd.f32 %v2387, %v485
        %v2472 = vadd.f32 %v2390, %v486
        %v2473 = vadd.f32 %v2395, %v487
        %v2474 = vadd.f32 %v2398, %v488
        %v2475 = vadd.f32 %v2403, %v489
        %v2476 = vadd.f32 %v2406, %v490
        %v2477 = vadd.f32 %v2411, %v491
        %v2478 = vadd.f32 %v2414, %v492
        %v2479 = vadd.f32 %v2419, %v493
        %v2480 = vadd.f32 %v2422, %v494
        %v2481 = vadd.f32 %v2427, %v495
        %v2482 = vadd.f32 %v2430, %v496
        %v2483 = vadd.f32 %v2435, %v497
        %v2484 = vadd.f32 %v2438, %v498
        %v2485 = vadd.f32 %v2443, %v499
        %v2486 = vadd.f32 %v2446, %v500
        %v2487 = vadd.f32 %v2451, %v501
        %v2488 = vadd.f32 %v2454, %v502
        %v2489 = vmax.f32 %v2457, 0.0
        %v2490 = vmax.f32 %v2458, 0.0
        %v2491 = vmax.f32 %v2459, 0.0
        %v2492 = vmax.f32 %v2460, 0.0
        %v2493 = vmax.f32 %v2461, 0.0
        %v2494 = vmax.f32 %v2462, 0.0
        %v2495 = vmax.f32 %v2463, 0.0
        %v2496 = vmax.f32 %v2464, 0.0
        %v2497 = vmax.f32 %v2465, 0.0
        %v2498 = vmax.f32 %v2466, 0.0
        %v2499 = vmax.f32 %v2467, 0.0
        %v2500 = vmax.f32 %v2468, 0.0
        %v2501 = vmax.f32 %v2469, 0.0
        %v2502 = vmax.f32 %v2470, 0.0
        %v2503 = vmax.f32 %v2471, 0.0
        %v2504 = vmax.f32 %v2472, 0.0
        %v2505 = vmax.f32 %v2473, 0.0
        %v2506 = vmax.f32 %v2474, 0.0
        %v2507 = vmax.f32 %v2475, 0.0
        %v2508 = vmax.f32 %v2476, 0.0
        %v2509 = vmax.f32 %v2477, 0.0
        %v2510 = vmax.f32 %v2478, 0.0
        %v2511 = vmax.f32 %v2479, 0.0
        %v2512 = vmax.f32 %v2480, 0.0
        %v2513 = vmax.f32 %v2481, 0.0
        %v2514 = vmax.f32 %v2482, 0.0
        %v2515 = vmax.f32 %v2483, 0.0
        %v2516 = vmax.f32 %v2484, 0.0
        %v2517 = vmax.f32 %v2485, 0.0
        %v2518 = vmax.f32 %v2486, 0.0
        %v2519 = vmax.f32 %v2487, 0.0
        %v2520 = vmax.f32 %v2488, 0.0
        %2521 = vst.msk [vmem:[%s444] sm:$0xff] %vm537, %v2489
        %2522 = vst.msk [vmem:[%s444 + $0x8] sm:$0xff] %vm537, %v2490
        %2523 = vst.msk [vmem:[%s444 + $0x10] sm:$0xff] %vm537, %v2491
        %2524 = vst.msk [vmem:[%s444 + $0x18] sm:$0xff] %vm537, %v2492
        %2525 = vst.msk [vmem:[%s444 + $0x20] sm:$0xff] %vm537, %v2493
        %2526 = vst.msk [vmem:[%s444 + $0x28] sm:$0xff] %vm537, %v2494
        %2527 = vst.msk [vmem:[%s444 + $0x30] sm:$0xff] %vm537, %v2495
        %2528 = vst.msk [vmem:[%s444 + $0x38] sm:$0xff] %vm537, %v2496
        %2529 = vst.msk [vmem:[%s444 + $0x40] sm:$0xff] %vm537, %v2497
        %2530 = vst.msk [vmem:[%s444 + $0x48] sm:$0xff] %vm537, %v2498
        %2531 = vst.msk [vmem:[%s444 + $0x50] sm:$0xff] %vm537, %v2499
        %2532 = vst.msk [vmem:[%s444 + $0x58] sm:$0xff] %vm537, %v2500
        %2533 = vst.msk [vmem:[%s444 + $0x60] sm:$0xff] %vm537, %v2501
        %2534 = vst.msk [vmem:[%s444 + $0x68] sm:$0xff] %vm537, %v2502
        %2535 = vst.msk [vmem:[%s444 + $0x70] sm:$0xff] %vm537, %v2503
        %2536 = vst.msk [vmem:[%s444 + $0x78] sm:$0xff] %vm537, %v2504
        %2537 = vst.msk [vmem:[%s444 + $0x80] sm:$0xff] %vm537, %v2505
        %2538 = vst.msk [vmem:[%s444 + $0x88] sm:$0xff] %vm537, %v2506
        %2539 = vst.msk [vmem:[%s444 + $0x90] sm:$0xff] %vm537, %v2507
        %2540 = vst.msk [vmem:[%s444 + $0x98] sm:$0xff] %vm537, %v2508
        %2541 = vst.msk [vmem:[%s444 + $0xa0] sm:$0xff] %vm537, %v2509
        %2542 = vst.msk [vmem:[%s444 + $0xa8] sm:$0xff] %vm537, %v2510
        %2543 = vst.msk [vmem:[%s444 + $0xb0] sm:$0xff] %vm537, %v2511
        %2544 = vst.msk [vmem:[%s444 + $0xb8] sm:$0xff] %vm537, %v2512
        %2545 = vst.msk [vmem:[%s444 + $0xc0] sm:$0xff] %vm537, %v2513
        %2546 = vst.msk [vmem:[%s444 + $0xc8] sm:$0xff] %vm537, %v2514
        %2547 = vst.msk [vmem:[%s444 + $0xd0] sm:$0xff] %vm537, %v2515
        %2548 = vst.msk [vmem:[%s444 + $0xd8] sm:$0xff] %vm537, %v2516
        %2549 = vst.msk [vmem:[%s444 + $0xe0] sm:$0xff] %vm537, %v2517
        %2550 = vst.msk [vmem:[%s444 + $0xe8] sm:$0xff] %vm537, %v2518
        %2551 = vst.msk [vmem:[%s444 + $0xf0] sm:$0xff] %vm537, %v2519
        %2552 = vst.msk [vmem:[%s444 + $0xf8] sm:$0xff] %vm537, %v2520
        %s2553 = sand.u32 %s259, 1
        %s2554 = scalar_lea.sflag [#allocation4], %s2553
        %s2555 = sand.u32 %s259, 1
        %s2556 = smul.addr %s2555, 256
        %s2557 = scalar_lea.vmem [#allocation8], %s2556
        // Predicated region
        $region69: #{tpu_custom_call.1} parent=55 // pred_check
          %p2558 = pneg %p269
        $region70: #{tpu_custom_call.1} parent=55 // pred_check_branch
          %2560 = sbr.rel (%p2558) target = $region72
        $region71: #{tpu_custom_call.1} parent=55 // pred_region
          %s2561 = smul.u32 16, %s32
          %s2563 = ssub.s32 4096, 4096
          %2564 = vsyncadd %s2554, %s2563
          %s2565 = smul.addr %s2561, 2
          %s2566 = smul.addr %s31, 32
          %s2567 = sadd.s32 %s2565, %s2566
          %s2568 = smul.addr %s2567, 128
          %s2569 = scalar_lea.hbm %s9, %s2568
          %s2570 = sshll.u32 %s2557, 4
          %s2571 = int_to_ptr.vmem [resolvable:$true] %s2570
          %2576 = dma.vmem_to_hbm [thread:$0]  %s2571, 4096, %s2569, %s2554, 128, 128, 8
        $region72: #{tpu_custom_call.1} parent=55 // pred_fallthru
          _
      $region56: #{tpu_custom_call.1} parent=5 // pred_fallthru
        _
      %p2577 = scmp.le.s32.totalorder 2, %s22
      // Predicated region
      $region73: #{tpu_custom_call.1} parent=5 // pred_check
        %p2578 = pneg %p2577
      $region74: #{tpu_custom_call.1} parent=5 // pred_check_branch
        %2580 = sbr.rel (%p2578) target = $region76
      $region75: #{tpu_custom_call.1} parent=5 // pred_region
        %s2581 = ssub.s32 %s22, 2
        // Predicated region
        $region77: #{tpu_custom_call.1} parent=75 // pred_check
          %p2582 = pneg %p275
        $region78: #{tpu_custom_call.1} parent=75 // pred_check_branch
          %2584 = sbr.rel (%p2582) target = $region80
        $region79: #{tpu_custom_call.1} parent=75 // pred_region
          %s2585 = sand.u32 %s260, 1
          %s2586 = scalar_lea.sflag [#allocation4], %s2585
          %s2587 = sand.u32 %s260, 1
          %s2588 = smul.addr %s2587, 256
          %s2589 = scalar_lea.vmem [#allocation8], %s2588
          %2590 = dma.done %s2586, 4096
        $region80: #{tpu_custom_call.1} parent=75 // pred_fallthru
          _
      $region76: #{tpu_custom_call.1} parent=5 // pred_fallthru
        _
    $region6: #{tpu_custom_call.1} parent=1 // loop_footer
      %s26 = sadd.s32 1, %s22
    $region7: #{tpu_custom_call.1} parent=1 // loop_footer_branch
      %21 = sbr.rel target = $region3
    $region8: #{tpu_custom_call.1} parent=1 // loop_exit
      _
    %2591 = vsyncpa [#allocation3], 1
    %s2592 = scalar_lea.sflag [#allocation3], 1
    %2593 = vsyncpa %s2592, 1
    %2594 = vsyncpa [#allocation6], 1
    %2595 = vsyncpa [#allocation4], 1
    %s2596 = scalar_lea.sflag [#allocation4], 1
    %2597 = vsyncpa %s2596, 1

</llo_original>
